<compile_context>
chip_gen: v7x
topology: tpu7x:2x2x1
jax: 0.10.0
libtpu: 0.0.40
codegen_flags: <defaults>
</compile_context>

<pallas_src>
import jax
import jax.numpy as jnp
from jax import lax
from jax.experimental import pallas as pl
from jax.experimental.pallas import tpu as pltpu

_HIGHEST = jax.lax.Precision.HIGHEST


# ----------------------------------------------------------------------------
# Fused recurrent core: attention + GRU cell, T steps unrolled in-kernel.
# ----------------------------------------------------------------------------
def _decoder_core_kernel(
    gates_emb_ref,   # (T, tb, 3H)  precomputed W_ih,embed @ prev_embed + b_ih
    enc_ref,         # (tb, S, 2H)  attention values
    pk_ref,          # (tb, S, H)   projected keys
    mask_ref,        # (tb, S)      1.0 = valid, 0.0 = pad
    h0_ref,          # (tb, H)      bridge-initialised hidden
    w_hq_ref,        # (H, 4H)      packed [W_query^T | W_hh^T]
    b_hq_ref,        # (1, 4H)      packed [0 | b_hh]
    v_ref,           # (1, H)       attention energy vector
    w_ihc_ref,       # (2H, 3H)     GRU W_ih, context chunk (transposed)
    dec_ref,         # out (T, tb, H)
    ctx_ref,         # out (T, tb, 2H)
    hfin_ref,        # out (tb, H)
):
    T = gates_emb_ref.shape[0]
    H = h0_ref.shape[1]

    # Loop-invariant loads / precomputation, hoisted out of the serial chain.
    enc = enc_ref[...]
    pk = pk_ref[...]
    w_hq = w_hq_ref[...]
    b_hq = b_hq_ref[...]
    v = v_ref[...]
    w_ihc = w_ihc_ref[...]
    # Additive mask (0 for valid, -1e30 for pad), computed once.
    mask_bias = jnp.where(mask_ref[...] > 0, jnp.float32(0.0), jnp.float32(-1e30))

    def step(t, h):
        # One fused MXU push for [query | W_hh @ h]: (tb, 4H) = 128 lanes @ H=32.
        hq = jnp.dot(h, w_hq, preferred_element_type=jnp.float32) + b_hq
        q = hq[:, :H]                       # attention query
        gh = hq[:, H:]                      # recurrent gate pre-activations

        # ---- Bahdanau attention ------------------------------------------
        # Max-subtracted softmax: a fully-masked row degrades to uniform
        # attention (exp(0) everywhere), never 0/0 NaN.
        e = jnp.tanh(q[:, None, :] + pk)                       # (tb, S, H)
        scores = jnp.sum(e * v, axis=-1) + mask_bias           # (tb, S)
        smax = jnp.max(scores, axis=-1, keepdims=True)
        p = jnp.exp(scores - smax)
        # Exact divide keeps the tight f32 tolerance; at production sizes use
        # pl.reciprocal(denom, approx=True) to move this onto the EUP slot.
        alphas = p / jnp.sum(p, axis=-1, keepdims=True)        # (tb, S)
        # VPU broadcast-multiply + reduce; swap for a batched einsum at real S.
        context = jnp.sum(alphas[:, :, None] * enc, axis=1)    # (tb, 2H)

        # ---- GRU cell (PyTorch gate order [r, z, n]) -----------------------
        # Embed-dependent part of gx was precomputed outside the recurrence.
        gx = gates_emb_ref[t] + jnp.dot(context, w_ihc,
                                        preferred_element_type=jnp.float32)
        r = jax.nn.sigmoid(gx[:, 0:H] + gh[:, 0:H])
        z = jax.nn.sigmoid(gx[:, H:2 * H] + gh[:, H:2 * H])
        n = jnp.tanh(gx[:, 2 * H:3 * H] + r * gh[:, 2 * H:3 * H])
        h_new = (1.0 - z) * n + z * h

        dec_ref[t] = h_new
        ctx_ref[t] = context
        return h_new

    h_final = lax.fori_loop(0, T, step, h0_ref[...], unroll=True)
    hfin_ref[...] = h_final


# ----------------------------------------------------------------------------
# Wrapper
# ----------------------------------------------------------------------------
def decoder_forward(params, trg_embed, encoder_hidden, encoder_final, src_mask,
                    batch_tile=None):
    """Pallas equivalent of Decoder.forward (num_layers=1, inference mode).

    trg_embed:      (B, T, E)
    encoder_hidden: (B, S, 2H)
    encoder_final:  (1, B, 2H)
    src_mask:       (B, 1, S) or (B, S), nonzero = valid
    returns (decoder_states (B,T,H), hidden (1,B,H), pre_output (B,T,H))
    """
    B, T, E = trg_embed.shape
    _, S, twoH = encoder_hidden.shape
    H = twoH // 2
    if batch_tile is None:
        batch_tile = B
    assert B % batch_tile == 0
    nb = B // batch_tile
    tb = batch_tile

    # --- one-time prep + embed-dependent projections: dense, parallel over ---
    # --- T*B rows, computed off the serial path with plain XLA matmuls.    ---
    proj_key = jnp.einsum("bsk,kh->bsh", encoder_hidden, params["wk_t"],
                          precision=_HIGHEST)                         # (B,S,H)
    h0 = jnp.tanh(jnp.dot(encoder_final.reshape(B, twoH), params["wb_t"],
                          precision=_HIGHEST) + params["bb"])         # (B,H)
    emb_tm = jnp.transpose(trg_embed, (1, 0, 2))                      # (T,B,E)
    gates_emb = jnp.einsum("tbe,eg->tbg", emb_tm, params["w_ih_e_t"],
                           precision=_HIGHEST) + params["b_ih"]       # (T,B,3H)
    mask = src_mask.reshape(B, S).astype(jnp.float32)

    dec_tm, ctx_tm, h_final = pl.pallas_call(
        _decoder_core_kernel,
        out_shape=(jax.ShapeDtypeStruct((T, B, H), jnp.float32),
                   jax.ShapeDtypeStruct((T, B, 2 * H), jnp.float32),
                   jax.ShapeDtypeStruct((B, H), jnp.float32)),
        grid=(nb,),
        in_specs=[
            pl.BlockSpec((T, tb, 3 * H), lambda i: (0, i, 0)),   # gates_emb
            pl.BlockSpec((tb, S, twoH), lambda i: (i, 0, 0)),    # encoder_hidden
            pl.BlockSpec((tb, S, H), lambda i: (i, 0, 0)),       # proj_key
            pl.BlockSpec((tb, S), lambda i: (i, 0)),             # src_mask
            pl.BlockSpec((tb, H), lambda i: (i, 0)),             # h0
            pl.BlockSpec((H, 4 * H), lambda i: (0, 0)),          # packed [Wq|Whh]
            pl.BlockSpec((1, 4 * H), lambda i: (0, 0)),          # packed [0|b_hh]
            pl.BlockSpec((1, H), lambda i: (0, 0)),              # energy vector
            pl.BlockSpec((twoH, 3 * H), lambda i: (0, 0)),       # W_ih (context)
        ],
        out_specs=(pl.BlockSpec((T, tb, H), lambda i: (0, i, 0)),
                   pl.BlockSpec((T, tb, 2 * H), lambda i: (0, i, 0)),
                   pl.BlockSpec((tb, H), lambda i: (i, 0))),
        compiler_params=pltpu.CompilerParams(
            dimension_semantics=("parallel",),      # independent batch shards
        ),
    )(gates_emb, encoder_hidden, proj_key, mask, h0,
      params["w_hq"], params["b_hq"], params["v_e"], params["w_ihc_t"])

    # --- deferred pre-output projection: one dense matmul set over T*B rows ---
    # TODO(synk): dropout_layer is an inference-mode identity; GRU inter-layer
    # dropout (num_layers > 1) is not implemented (module default is 1 layer).
    pre_tm = (jnp.einsum("tbe,eh->tbh", emb_tm, params["w_pre_e_t"], precision=_HIGHEST)
              + jnp.einsum("tbk,kh->tbh", dec_tm, params["w_pre_o_t"], precision=_HIGHEST)
              + jnp.einsum("tbc,ch->tbh", ctx_tm, params["w_pre_c_t"], precision=_HIGHEST))

    decoder_states = jnp.transpose(dec_tm, (1, 0, 2))     # (B, T, H)
    pre_output = jnp.transpose(pre_tm, (1, 0, 2))         # (B, T, H)
    hidden = h_final[None]                                 # (1, B, H)
    return decoder_states, hidden, pre_output


# ----------------------------------------------------------------------------
# Parameter construction (PyTorch layout) and one-time kernel-layout prep
# ----------------------------------------------------------------------------
def init_torch_params(key, E, H):
    ks = jax.random.split(key, 10)
    s = 0.1
    p = {
        "W_key":    jax.random.normal(ks[0], (H, 2 * H)) * s,          # key_layer
        "W_query":  jax.random.normal(ks[1], (H, H)) * s,              # query_layer
        "W_energy": jax.random.normal(ks[2], (1, H)) * s,              # energy_layer
        "W_ih":     jax.random.normal(ks[3], (3 * H, E + 2 * H)) * s,  # GRU
        "W_hh":     jax.random.normal(ks[4], (3 * H, H)) * s,
        "b_ih":     jax.random.normal(ks[5], (3 * H,)) * s,
        "b_hh":     jax.random.normal(ks[6], (3 * H,)) * s,
        "W_bridge": jax.random.normal(ks[7], (H, 2 * H)) * s,
        "b_bridge": jax.random.normal(ks[8], (H,)) * s,
        "W_pre":    jax.random.normal(ks[9], (H, H + 2 * H + E)) * s,  # pre_output
    }
    return {k: v.astype(jnp.float32) for k, v in p.items()}


def to_kernel_params(p, E, H):
    """One-time transpose/split/pack into kernel layout (hoisted out of the call)."""
    W_ih = p["W_ih"]     # (3H, E + 2H): columns = [embed | context]
    W_pre = p["W_pre"]   # (H, E + H + 2H): columns = [embed | output | context]
    return {
        # used by the XLA prep / deferred projections
        "wk_t":      p["W_key"].T,                    # (2H, H)
        "wb_t":      p["W_bridge"].T,                 # (2H, H)
        "bb":        p["b_bridge"].reshape(1, H),
        "w_ih_e_t":  W_ih[:, :E].T,                   # (E, 3H)
        "b_ih":      p["b_ih"],                       # (3H,)
        "w_pre_e_t": W_pre[:, :E].T,                  # (E, H)
        "w_pre_o_t": W_pre[:, E:E + H].T,             # (H, H)
        "w_pre_c_t": W_pre[:, E + H:].T,              # (2H, H)
        # used inside the recurrent kernel
        "w_hq":      jnp.concatenate([p["W_query"].T, p["W_hh"].T], axis=1),  # (H,4H)
        "b_hq":      jnp.concatenate([jnp.zeros((H,), jnp.float32),
                                      p["b_hh"]]).reshape(1, 4 * H),
        "v_e":       p["W_energy"].reshape(1, H),     # (1, H)
        "w_ihc_t":   W_ih[:, E:].T,                   # (2H, 3H)
    }


# ----------------------------------------------------------------------------
# Pure-JAX reference (mirrors the PyTorch module math) for the sanity check
# ----------------------------------------------------------------------------
def decoder_forward_ref(p, trg_embed, encoder_hidden, encoder_final, src_mask):
    B, T, E = trg_embed.shape
    _, S, twoH = encoder_hidden.shape
    H = twoH // 2
    hp = _HIGHEST
    mask = src_mask.reshape(B, S)
    proj_key = jnp.einsum("bsk,hk->bsh", encoder_hidden, p["W_key"], precision=hp)
    h = jnp.tanh(jnp.dot(encoder_final.reshape(B, twoH), p["W_bridge"].T,
                         precision=hp) + p["b_bridge"])
    dec_list, pre_list = [], []
    for t in range(T):
        prev = trg_embed[:, t]
        q = jnp.dot(h, p["W_query"].T, precision=hp)
        energy = jnp.tanh(q[:, None, :] + proj_key)
        scores = jnp.einsum("bsh,h->bs", energy, p["W_energy"].reshape(H), precision=hp)
        scores = jnp.where(mask > 0, scores, jnp.float32(-1e30))
        alphas = jax.nn.softmax(scores, axis=-1)
        context = jnp.einsum("bs,bsk->bk", alphas, encoder_hidden, precision=hp)
        x = jnp.concatenate([prev, context], axis=-1)
        gx = jnp.dot(x, p["W_ih"].T, precision=hp) + p["b_ih"]
        gh = jnp.dot(h, p["W_hh"].T, precision=hp) + p["b_hh"]
        r = jax.nn.sigmoid(gx[:, :H] + gh[:, :H])
        z = jax.nn.sigmoid(gx[:, H:2 * H] + gh[:, H:2 * H])
        n = jnp.tanh(gx[:, 2 * H:] + r * gh[:, 2 * H:])
        h = (1.0 - z) * n + z * h
        pre_in = jnp.concatenate([prev, h, context], axis=-1)
        dec_list.append(h)
        pre_list.append(jnp.dot(pre_in, p["W_pre"].T, precision=hp))
    return jnp.stack(dec_list, axis=1), h[None], jnp.stack(pre_list, axis=1)


if __name__ == "__main__":
    # Small shapes consistent with the module: batch=2, trg_len=8, src_len=8,
    # emb_size=32, hidden_size=32 (bidirectional encoder -> 2*hidden features).
    B, T, S, E, H = 2, 8, 8, 32, 32

    key = jax.random.PRNGKey(0)
    k_par, k_trg, k_enc, k_fin = jax.random.split(key, 4)
    torch_params = init_torch_params(k_par, E, H)
    kernel_params = to_kernel_params(torch_params, E, H)

    trg_embed = jax.random.normal(k_trg, (B, T, E), dtype=jnp.float32)
    encoder_hidden = jax.random.normal(k_enc, (B, S, 2 * H), dtype=jnp.float32)
    encoder_final = jax.random.normal(k_fin, (1, B, 2 * H), dtype=jnp.float32)
    lengths = jnp.array([S, S - 2])
    src_mask = (jnp.arange(S)[None, :] < lengths[:, None]).astype(jnp.float32)
    src_mask = src_mask[:, None, :]   # (B, 1, S), PyTorch-style

    dec, hid, pre = jax.jit(decoder_forward)(
        kernel_params, trg_embed, encoder_hidden, encoder_final, src_mask)
    dec, hid, pre = jax.block_until_ready((dec, hid, pre))

    dec_r, hid_r, pre_r = decoder_forward_ref(
        torch_params, trg_embed, encoder_hidden, encoder_final, src_mask)

    assert dec.shape == (B, T, H) and pre.shape == (B, T, H) and hid.shape == (1, B, H)
    # Tight f32 tolerance: would catch an accidental bf16 downcast (≈1e-2-scale
    # errors) while leaving margin for MXU f32 pass-count and transcendental
    # ULP differences accumulated over the 8-step recurrence.
    assert jnp.allclose(dec, dec_r, atol=5e-4, rtol=5e-4), \
        float(jnp.max(jnp.abs(dec - dec_r)))
    assert jnp.allclose(hid, hid_r, atol=5e-4, rtol=5e-4), \
        float(jnp.max(jnp.abs(hid - hid_r)))
    assert jnp.allclose(pre, pre_r, atol=5e-4, rtol=5e-4), \
        float(jnp.max(jnp.abs(pre - pre_r)))

    print("KERNEL_OK")
</pallas_src>

<mosaic_0001>
module attributes {stable_mosaic.version = 11 : i64} {
  func.func @_decoder_core_kernel(%arg0: i32, %arg1: memref<8x2x96xf32, #tpu.memory_space<vmem>>, %arg2: memref<2x8x64xf32, #tpu.memory_space<vmem>>, %arg3: memref<2x8x32xf32, #tpu.memory_space<vmem>>, %arg4: memref<2x8xf32, #tpu.memory_space<vmem>>, %arg5: memref<2x32xf32, #tpu.memory_space<vmem>>, %arg6: memref<32x128xf32, #tpu.memory_space<vmem>>, %arg7: memref<1x128xf32, #tpu.memory_space<vmem>>, %arg8: memref<1x32xf32, #tpu.memory_space<vmem>>, %arg9: memref<64x96xf32, #tpu.memory_space<vmem>>, %arg10: memref<8x2x32xf32, #tpu.memory_space<vmem>>, %arg11: memref<8x2x64xf32, #tpu.memory_space<vmem>>, %arg12: memref<2x32xf32, #tpu.memory_space<vmem>>) attributes {dimension_semantics = [#tpu.dimension_semantics<parallel>], iteration_bounds = array<i64: 1>, scalar_prefetch = 0 : i64, scratch_operands = 0 : i64, tpu.core_type = #tpu.core_type<tc>, window_params = [{transform_indices = @transform_0, window_bounds = array<i64: 8, 2, 96>}, {transform_indices = @transform_1, window_bounds = array<i64: 2, 8, 64>}, {transform_indices = @transform_2, window_bounds = array<i64: 2, 8, 32>}, {transform_indices = @transform_3, window_bounds = array<i64: 2, 8>}, {transform_indices = @transform_4, window_bounds = array<i64: 2, 32>}, {pipeline_mode = #tpu.pipeline_mode<synchronous>, transform_indices = @transform_5, window_bounds = array<i64: 32, 128>}, {pipeline_mode = #tpu.pipeline_mode<synchronous>, transform_indices = @transform_6, window_bounds = array<i64: 1, 128>}, {pipeline_mode = #tpu.pipeline_mode<synchronous>, transform_indices = @transform_7, window_bounds = array<i64: 1, 32>}, {pipeline_mode = #tpu.pipeline_mode<synchronous>, transform_indices = @transform_8, window_bounds = array<i64: 64, 96>}, {transform_indices = @transform_9, window_bounds = array<i64: 8, 2, 32>}, {transform_indices = @transform_10, window_bounds = array<i64: 8, 2, 64>}, {transform_indices = @transform_11, window_bounds = array<i64: 2, 32>}]} {
    %c0 = arith.constant 0 : index
    %c0_0 = arith.constant 0 : index
    %c0_1 = arith.constant 0 : index
    %0 = vector.load %arg2[%c0, %c0_0, %c0_1] : memref<2x8x64xf32, #tpu.memory_space<vmem>>, vector<2x8x64xf32>
    %c0_2 = arith.constant 0 : index
    %c0_3 = arith.constant 0 : index
    %c0_4 = arith.constant 0 : index
    %1 = vector.load %arg3[%c0_2, %c0_3, %c0_4] : memref<2x8x32xf32, #tpu.memory_space<vmem>>, vector<2x8x32xf32>
    %c0_5 = arith.constant 0 : index
    %c0_6 = arith.constant 0 : index
    %2 = vector.load %arg6[%c0_5, %c0_6] : memref<32x128xf32, #tpu.memory_space<vmem>>, vector<32x128xf32>
    %c0_7 = arith.constant 0 : index
    %c0_8 = arith.constant 0 : index
    %3 = vector.load %arg7[%c0_7, %c0_8] : memref<1x128xf32, #tpu.memory_space<vmem>>, vector<1x128xf32>
    %c0_9 = arith.constant 0 : index
    %c0_10 = arith.constant 0 : index
    %4 = vector.load %arg8[%c0_9, %c0_10] : memref<1x32xf32, #tpu.memory_space<vmem>>, vector<1x32xf32>
    %c0_11 = arith.constant 0 : index
    %c0_12 = arith.constant 0 : index
    %5 = vector.load %arg9[%c0_11, %c0_12] : memref<64x96xf32, #tpu.memory_space<vmem>>, vector<64x96xf32>
    %c0_13 = arith.constant 0 : index
    %c0_14 = arith.constant 0 : index
    %6 = vector.load %arg4[%c0_13, %c0_14] : memref<2x8xf32, #tpu.memory_space<vmem>>, vector<2x8xf32>
    %cst = arith.constant 0.000000e+00 : f32
    %7 = vector.broadcast %cst : f32 to vector<2x8xf32>
    %8 = arith.cmpf ogt, %6, %7 : vector<2x8xf32>
    %cst_15 = arith.constant 0.000000e+00 : f32
    %cst_16 = arith.constant -1.000000e+30 : f32
    %9 = vector.broadcast %cst_15 : f32 to vector<2x8xf32>
    %10 = vector.broadcast %cst_16 : f32 to vector<2x8xf32>
    %11 = arith.select %8, %9, %10 : vector<2x8xi1>, vector<2x8xf32>
    %c0_17 = arith.constant 0 : index
    %c0_18 = arith.constant 0 : index
    %12 = vector.load %arg5[%c0_17, %c0_18] : memref<2x32xf32, #tpu.memory_space<vmem>>, vector<2x32xf32>
    %c0_i32 = arith.constant 0 : i32
    %cst_19 = arith.constant dense<0.000000e+00> : vector<2x128xf32>
    %13 = tpu.matmul %12, %2, %cst_19 {dimension_numbers = #tpu.dot_dimension_numbers<[1], [0], [0], [1], [0, 0, 1, 1], [], []>} : vector<2x32xf32>, vector<32x128xf32>, vector<2x128xf32> -> vector<2x128xf32>
    %14 = vector.broadcast %3 : vector<1x128xf32> to vector<2x128xf32>
    %15 = arith.addf %13, %14 : vector<2x128xf32>
    %16 = vector.extract_strided_slice %15 {offsets = [0, 0], sizes = [2, 32], strides = [1, 1]} : vector<2x128xf32> to vector<2x32xf32>
    %17 = vector.extract_strided_slice %15 {offsets = [0, 32], sizes = [2, 96], strides = [1, 1]} : vector<2x128xf32> to vector<2x96xf32>
    %18 = vector.shape_cast %16 : vector<2x32xf32> to vector<2x1x32xf32>
    %19 = vector.broadcast %18 : vector<2x1x32xf32> to vector<2x8x32xf32>
    %20 = arith.addf %19, %1 : vector<2x8x32xf32>
    %21 = math.tanh %20 : vector<2x8x32xf32>
    %22 = vector.shape_cast %4 : vector<1x32xf32> to vector<1x1x32xf32>
    %23 = vector.broadcast %22 : vector<1x1x32xf32> to vector<2x8x32xf32>
    %24 = arith.mulf %21, %23 : vector<2x8x32xf32>
    %cst_20 = arith.constant dense<0.000000e+00> : vector<2x8xf32>
    %25 = vector.multi_reduction <add>, %24, %cst_20 [2] : vector<2x8x32xf32> to vector<2x8xf32>
    %26 = arith.addf %25, %11 : vector<2x8xf32>
    %cst_21 = arith.constant dense<0xFF800000> : vector<2xf32>
    %27 = vector.multi_reduction <maximumf>, %26, %cst_21 [1] : vector<2x8xf32> to vector<2xf32>
    %28 = vector.shape_cast %27 : vector<2xf32> to vector<2x1xf32>
    %29 = vector.broadcast %28 : vector<2x1xf32> to vector<2x8xf32>
    %30 = arith.subf %26, %29 : vector<2x8xf32>
    %31 = math.exp %30 : vector<2x8xf32>
    %cst_22 = arith.constant dense<0.000000e+00> : vector<2xf32>
    %32 = vector.multi_reduction <add>, %31, %cst_22 [1] : vector<2x8xf32> to vector<2xf32>
    %33 = vector.shape_cast %32 : vector<2xf32> to vector<2x1xf32>
    %34 = vector.broadcast %33 : vector<2x1xf32> to vector<2x8xf32>
    %35 = arith.divf %31, %34 : vector<2x8xf32>
    %36 = vector.shape_cast %35 : vector<2x8xf32> to vector<2x8x1xf32>
    %37 = vector.broadcast %36 : vector<2x8x1xf32> to vector<2x8x64xf32>
    %38 = arith.mulf %37, %0 : vector<2x8x64xf32>
    %cst_23 = arith.constant dense<0.000000e+00> : vector<2x64xf32>
    %39 = vector.multi_reduction <add>, %38, %cst_23 [1] : vector<2x8x64xf32> to vector<2x64xf32>
    %40 = arith.index_cast %c0_i32 : i32 to index
    %c0_24 = arith.constant 0 : index
    %c0_25 = arith.constant 0 : index
    %41 = vector.load %arg1[%40, %c0_24, %c0_25] : memref<8x2x96xf32, #tpu.memory_space<vmem>>, vector<1x2x96xf32>
    %42 = vector.shape_cast %41 : vector<1x2x96xf32> to vector<2x96xf32>
    %cst_26 = arith.constant dense<0.000000e+00> : vector<2x96xf32>
    %43 = tpu.matmul %39, %5, %cst_26 {dimension_numbers = #tpu.dot_dimension_numbers<[1], [0], [0], [1], [0, 0, 1, 1], [], []>} : vector<2x64xf32>, vector<64x96xf32>, vector<2x96xf32> -> vector<2x96xf32>
    %44 = arith.addf %42, %43 : vector<2x96xf32>
    %45 = vector.extract_strided_slice %44 {offsets = [0, 0], sizes = [2, 32], strides = [1, 1]} : vector<2x96xf32> to vector<2x32xf32>
    %46 = vector.extract_strided_slice %17 {offsets = [0, 0], sizes = [2, 32], strides = [1, 1]} : vector<2x96xf32> to vector<2x32xf32>
    %47 = arith.addf %45, %46 : vector<2x32xf32>
    %48 = arith.negf %47 : vector<2x32xf32>
    %49 = math.exp %48 : vector<2x32xf32>
    %cst_27 = arith.constant 1.000000e+00 : f32
    %50 = vector.broadcast %cst_27 : f32 to vector<2x32xf32>
    %51 = arith.addf %50, %49 : vector<2x32xf32>
    %52 = arith.divf %50, %51 : vector<2x32xf32>
    %53 = vector.extract_strided_slice %44 {offsets = [0, 32], sizes = [2, 32], strides = [1, 1]} : vector<2x96xf32> to vector<2x32xf32>
    %54 = vector.extract_strided_slice %17 {offsets = [0, 32], sizes = [2, 32], strides = [1, 1]} : vector<2x96xf32> to vector<2x32xf32>
    %55 = arith.addf %53, %54 : vector<2x32xf32>
    %56 = arith.negf %55 : vector<2x32xf32>
    %57 = math.exp %56 : vector<2x32xf32>
    %cst_28 = arith.constant 1.000000e+00 : f32
    %58 = vector.broadcast %cst_28 : f32 to vector<2x32xf32>
    %59 = arith.addf %58, %57 : vector<2x32xf32>
    %60 = arith.divf %58, %59 : vector<2x32xf32>
    %61 = vector.extract_strided_slice %44 {offsets = [0, 64], sizes = [2, 32], strides = [1, 1]} : vector<2x96xf32> to vector<2x32xf32>
    %62 = vector.extract_strided_slice %17 {offsets = [0, 64], sizes = [2, 32], strides = [1, 1]} : vector<2x96xf32> to vector<2x32xf32>
    %63 = arith.mulf %52, %62 : vector<2x32xf32>
    %64 = arith.addf %61, %63 : vector<2x32xf32>
    %65 = math.tanh %64 : vector<2x32xf32>
    %cst_29 = arith.constant 1.000000e+00 : f32
    %66 = vector.broadcast %cst_29 : f32 to vector<2x32xf32>
    %67 = arith.subf %66, %60 : vector<2x32xf32>
    %68 = arith.mulf %67, %65 : vector<2x32xf32>
    %69 = arith.mulf %60, %12 : vector<2x32xf32>
    %70 = arith.addf %68, %69 : vector<2x32xf32>
    %71 = arith.index_cast %c0_i32 : i32 to index
    %c0_30 = arith.constant 0 : index
    %c0_31 = arith.constant 0 : index
    %72 = vector.load %arg10[%71, %c0_30, %c0_31] : memref<8x2x32xf32, #tpu.memory_space<vmem>>, vector<1x2x32xf32>
    %73 = vector.shape_cast %72 : vector<1x2x32xf32> to vector<2x32xf32>
    %74 = vector.shape_cast %70 : vector<2x32xf32> to vector<1x2x32xf32>
    tpu.vector_store %arg10[%71, %c0_30, %c0_31], %74 {strides = array<i32>} : memref<8x2x32xf32, #tpu.memory_space<vmem>>, vector<1x2x32xf32>,
    %75 = arith.index_cast %c0_i32 : i32 to index
    %c0_32 = arith.constant 0 : index
    %c0_33 = arith.constant 0 : index
    %76 = vector.load %arg11[%75, %c0_32, %c0_33] : memref<8x2x64xf32, #tpu.memory_space<vmem>>, vector<1x2x64xf32>
    %77 = vector.shape_cast %76 : vector<1x2x64xf32> to vector<2x64xf32>
    %78 = vector.shape_cast %39 : vector<2x64xf32> to vector<1x2x64xf32>
    tpu.vector_store %arg11[%75, %c0_32, %c0_33], %78 {strides = array<i32>} : memref<8x2x64xf32, #tpu.memory_space<vmem>>, vector<1x2x64xf32>,
    %c1_i32 = arith.constant 1 : i32
    %cst_34 = arith.constant dense<0.000000e+00> : vector<2x128xf32>
    %79 = tpu.matmul %70, %2, %cst_34 {dimension_numbers = #tpu.dot_dimension_numbers<[1], [0], [0], [1], [0, 0, 1, 1], [], []>} : vector<2x32xf32>, vector<32x128xf32>, vector<2x128xf32> -> vector<2x128xf32>
    %80 = vector.broadcast %3 : vector<1x128xf32> to vector<2x128xf32>
    %81 = arith.addf %79, %80 : vector<2x128xf32>
    %82 = vector.extract_strided_slice %81 {offsets = [0, 0], sizes = [2, 32], strides = [1, 1]} : vector<2x128xf32> to vector<2x32xf32>
    %83 = vector.extract_strided_slice %81 {offsets = [0, 32], sizes = [2, 96], strides = [1, 1]} : vector<2x128xf32> to vector<2x96xf32>
    %84 = vector.shape_cast %82 : vector<2x32xf32> to vector<2x1x32xf32>
    %85 = vector.broadcast %84 : vector<2x1x32xf32> to vector<2x8x32xf32>
    %86 = arith.addf %85, %1 : vector<2x8x32xf32>
    %87 = math.tanh %86 : vector<2x8x32xf32>
    %88 = vector.shape_cast %4 : vector<1x32xf32> to vector<1x1x32xf32>
    %89 = vector.broadcast %88 : vector<1x1x32xf32> to vector<2x8x32xf32>
    %90 = arith.mulf %87, %89 : vector<2x8x32xf32>
    %cst_35 = arith.constant dense<0.000000e+00> : vector<2x8xf32>
    %91 = vector.multi_reduction <add>, %90, %cst_35 [2] : vector<2x8x32xf32> to vector<2x8xf32>
    %92 = arith.addf %91, %11 : vector<2x8xf32>
    %cst_36 = arith.constant dense<0xFF800000> : vector<2xf32>
    %93 = vector.multi_reduction <maximumf>, %92, %cst_36 [1] : vector<2x8xf32> to vector<2xf32>
    %94 = vector.shape_cast %93 : vector<2xf32> to vector<2x1xf32>
    %95 = vector.broadcast %94 : vector<2x1xf32> to vector<2x8xf32>
    %96 = arith.subf %92, %95 : vector<2x8xf32>
    %97 = math.exp %96 : vector<2x8xf32>
    %cst_37 = arith.constant dense<0.000000e+00> : vector<2xf32>
    %98 = vector.multi_reduction <add>, %97, %cst_37 [1] : vector<2x8xf32> to vector<2xf32>
    %99 = vector.shape_cast %98 : vector<2xf32> to vector<2x1xf32>
    %100 = vector.broadcast %99 : vector<2x1xf32> to vector<2x8xf32>
    %101 = arith.divf %97, %100 : vector<2x8xf32>
    %102 = vector.shape_cast %101 : vector<2x8xf32> to vector<2x8x1xf32>
    %103 = vector.broadcast %102 : vector<2x8x1xf32> to vector<2x8x64xf32>
    %104 = arith.mulf %103, %0 : vector<2x8x64xf32>
    %cst_38 = arith.constant dense<0.000000e+00> : vector<2x64xf32>
    %105 = vector.multi_reduction <add>, %104, %cst_38 [1] : vector<2x8x64xf32> to vector<2x64xf32>
    %106 = arith.index_cast %c1_i32 : i32 to index
    %c0_39 = arith.constant 0 : index
    %c0_40 = arith.constant 0 : index
    %107 = vector.load %arg1[%106, %c0_39, %c0_40] : memref<8x2x96xf32, #tpu.memory_space<vmem>>, vector<1x2x96xf32>
    %108 = vector.shape_cast %107 : vector<1x2x96xf32> to vector<2x96xf32>
    %cst_41 = arith.constant dense<0.000000e+00> : vector<2x96xf32>
    %109 = tpu.matmul %105, %5, %cst_41 {dimension_numbers = #tpu.dot_dimension_numbers<[1], [0], [0], [1], [0, 0, 1, 1], [], []>} : vector<2x64xf32>, vector<64x96xf32>, vector<2x96xf32> -> vector<2x96xf32>
    %110 = arith.addf %108, %109 : vector<2x96xf32>
    %111 = vector.extract_strided_slice %110 {offsets = [0, 0], sizes = [2, 32], strides = [1, 1]} : vector<2x96xf32> to vector<2x32xf32>
    %112 = vector.extract_strided_slice %83 {offsets = [0, 0], sizes = [2, 32], strides = [1, 1]} : vector<2x96xf32> to vector<2x32xf32>
    %113 = arith.addf %111, %112 : vector<2x32xf32>
    %114 = arith.negf %113 : vector<2x32xf32>
    %115 = math.exp %114 : vector<2x32xf32>
    %cst_42 = arith.constant 1.000000e+00 : f32
    %116 = vector.broadcast %cst_42 : f32 to vector<2x32xf32>
    %117 = arith.addf %116, %115 : vector<2x32xf32>
    %118 = arith.divf %116, %117 : vector<2x32xf32>
    %119 = vector.extract_strided_slice %110 {offsets = [0, 32], sizes = [2, 32], strides = [1, 1]} : vector<2x96xf32> to vector<2x32xf32>
    %120 = vector.extract_strided_slice %83 {offsets = [0, 32], sizes = [2, 32], strides = [1, 1]} : vector<2x96xf32> to vector<2x32xf32>
    %121 = arith.addf %119, %120 : vector<2x32xf32>
    %122 = arith.negf %121 : vector<2x32xf32>
    %123 = math.exp %122 : vector<2x32xf32>
    %cst_43 = arith.constant 1.000000e+00 : f32
    %124 = vector.broadcast %cst_43 : f32 to vector<2x32xf32>
    %125 = arith.addf %124, %123 : vector<2x32xf32>
    %126 = arith.divf %124, %125 : vector<2x32xf32>
    %127 = vector.extract_strided_slice %110 {offsets = [0, 64], sizes = [2, 32], strides = [1, 1]} : vector<2x96xf32> to vector<2x32xf32>
    %128 = vector.extract_strided_slice %83 {offsets = [0, 64], sizes = [2, 32], strides = [1, 1]} : vector<2x96xf32> to vector<2x32xf32>
    %129 = arith.mulf %118, %128 : vector<2x32xf32>
    %130 = arith.addf %127, %129 : vector<2x32xf32>
    %131 = math.tanh %130 : vector<2x32xf32>
    %cst_44 = arith.constant 1.000000e+00 : f32
    %132 = vector.broadcast %cst_44 : f32 to vector<2x32xf32>
    %133 = arith.subf %132, %126 : vector<2x32xf32>
    %134 = arith.mulf %133, %131 : vector<2x32xf32>
    %135 = arith.mulf %126, %70 : vector<2x32xf32>
    %136 = arith.addf %134, %135 : vector<2x32xf32>
    %137 = arith.index_cast %c1_i32 : i32 to index
    %c0_45 = arith.constant 0 : index
    %c0_46 = arith.constant 0 : index
    %138 = vector.load %arg10[%137, %c0_45, %c0_46] : memref<8x2x32xf32, #tpu.memory_space<vmem>>, vector<1x2x32xf32>
    %139 = vector.shape_cast %138 : vector<1x2x32xf32> to vector<2x32xf32>
    %140 = vector.shape_cast %136 : vector<2x32xf32> to vector<1x2x32xf32>
    tpu.vector_store %arg10[%137, %c0_45, %c0_46], %140 {strides = array<i32>} : memref<8x2x32xf32, #tpu.memory_space<vmem>>, vector<1x2x32xf32>,
    %141 = arith.index_cast %c1_i32 : i32 to index
    %c0_47 = arith.constant 0 : index
    %c0_48 = arith.constant 0 : index
    %142 = vector.load %arg11[%141, %c0_47, %c0_48] : memref<8x2x64xf32, #tpu.memory_space<vmem>>, vector<1x2x64xf32>
    %143 = vector.shape_cast %142 : vector<1x2x64xf32> to vector<2x64xf32>
    %144 = vector.shape_cast %105 : vector<2x64xf32> to vector<1x2x64xf32>
    tpu.vector_store %arg11[%141, %c0_47, %c0_48], %144 {strides = array<i32>} : memref<8x2x64xf32, #tpu.memory_space<vmem>>, vector<1x2x64xf32>,
    %c2_i32 = arith.constant 2 : i32
    %cst_49 = arith.constant dense<0.000000e+00> : vector<2x128xf32>
    %145 = tpu.matmul %136, %2, %cst_49 {dimension_numbers = #tpu.dot_dimension_numbers<[1], [0], [0], [1], [0, 0, 1, 1], [], []>} : vector<2x32xf32>, vector<32x128xf32>, vector<2x128xf32> -> vector<2x128xf32>
    %146 = vector.broadcast %3 : vector<1x128xf32> to vector<2x128xf32>
    %147 = arith.addf %145, %146 : vector<2x128xf32>
    %148 = vector.extract_strided_slice %147 {offsets = [0, 0], sizes = [2, 32], strides = [1, 1]} : vector<2x128xf32> to vector<2x32xf32>
    %149 = vector.extract_strided_slice %147 {offsets = [0, 32], sizes = [2, 96], strides = [1, 1]} : vector<2x128xf32> to vector<2x96xf32>
    %150 = vector.shape_cast %148 : vector<2x32xf32> to vector<2x1x32xf32>
    %151 = vector.broadcast %150 : vector<2x1x32xf32> to vector<2x8x32xf32>
    %152 = arith.addf %151, %1 : vector<2x8x32xf32>
    %153 = math.tanh %152 : vector<2x8x32xf32>
    %154 = vector.shape_cast %4 : vector<1x32xf32> to vector<1x1x32xf32>
    %155 = vector.broadcast %154 : vector<1x1x32xf32> to vector<2x8x32xf32>
    %156 = arith.mulf %153, %155 : vector<2x8x32xf32>
    %cst_50 = arith.constant dense<0.000000e+00> : vector<2x8xf32>
    %157 = vector.multi_reduction <add>, %156, %cst_50 [2] : vector<2x8x32xf32> to vector<2x8xf32>
    %158 = arith.addf %157, %11 : vector<2x8xf32>
    %cst_51 = arith.constant dense<0xFF800000> : vector<2xf32>
    %159 = vector.multi_reduction <maximumf>, %158, %cst_51 [1] : vector<2x8xf32> to vector<2xf32>
    %160 = vector.shape_cast %159 : vector<2xf32> to vector<2x1xf32>
    %161 = vector.broadcast %160 : vector<2x1xf32> to vector<2x8xf32>
    %162 = arith.subf %158, %161 : vector<2x8xf32>
    %163 = math.exp %162 : vector<2x8xf32>
    %cst_52 = arith.constant dense<0.000000e+00> : vector<2xf32>
    %164 = vector.multi_reduction <add>, %163, %cst_52 [1] : vector<2x8xf32> to vector<2xf32>
    %165 = vector.shape_cast %164 : vector<2xf32> to vector<2x1xf32>
    %166 = vector.broadcast %165 : vector<2x1xf32> to vector<2x8xf32>
    %167 = arith.divf %163, %166 : vector<2x8xf32>
    %168 = vector.shape_cast %167 : vector<2x8xf32> to vector<2x8x1xf32>
    %169 = vector.broadcast %168 : vector<2x8x1xf32> to vector<2x8x64xf32>
    %170 = arith.mulf %169, %0 : vector<2x8x64xf32>
    %cst_53 = arith.constant dense<0.000000e+00> : vector<2x64xf32>
    %171 = vector.multi_reduction <add>, %170, %cst_53 [1] : vector<2x8x64xf32> to vector<2x64xf32>
    %172 = arith.index_cast %c2_i32 : i32 to index
    %c0_54 = arith.constant 0 : index
    %c0_55 = arith.constant 0 : index
    %173 = vector.load %arg1[%172, %c0_54, %c0_55] : memref<8x2x96xf32, #tpu.memory_space<vmem>>, vector<1x2x96xf32>
    %174 = vector.shape_cast %173 : vector<1x2x96xf32> to vector<2x96xf32>
    %cst_56 = arith.constant dense<0.000000e+00> : vector<2x96xf32>
    %175 = tpu.matmul %171, %5, %cst_56 {dimension_numbers = #tpu.dot_dimension_numbers<[1], [0], [0], [1], [0, 0, 1, 1], [], []>} : vector<2x64xf32>, vector<64x96xf32>, vector<2x96xf32> -> vector<2x96xf32>
    %176 = arith.addf %174, %175 : vector<2x96xf32>
    %177 = vector.extract_strided_slice %176 {offsets = [0, 0], sizes = [2, 32], strides = [1, 1]} : vector<2x96xf32> to vector<2x32xf32>
    %178 = vector.extract_strided_slice %149 {offsets = [0, 0], sizes = [2, 32], strides = [1, 1]} : vector<2x96xf32> to vector<2x32xf32>
    %179 = arith.addf %177, %178 : vector<2x32xf32>
    %180 = arith.negf %179 : vector<2x32xf32>
    %181 = math.exp %180 : vector<2x32xf32>
    %cst_57 = arith.constant 1.000000e+00 : f32
    %182 = vector.broadcast %cst_57 : f32 to vector<2x32xf32>
    %183 = arith.addf %182, %181 : vector<2x32xf32>
    %184 = arith.divf %182, %183 : vector<2x32xf32>
    %185 = vector.extract_strided_slice %176 {offsets = [0, 32], sizes = [2, 32], strides = [1, 1]} : vector<2x96xf32> to vector<2x32xf32>
    %186 = vector.extract_strided_slice %149 {offsets = [0, 32], sizes = [2, 32], strides = [1, 1]} : vector<2x96xf32> to vector<2x32xf32>
    %187 = arith.addf %185, %186 : vector<2x32xf32>
    %188 = arith.negf %187 : vector<2x32xf32>
    %189 = math.exp %188 : vector<2x32xf32>
    %cst_58 = arith.constant 1.000000e+00 : f32
    %190 = vector.broadcast %cst_58 : f32 to vector<2x32xf32>
    %191 = arith.addf %190, %189 : vector<2x32xf32>
    %192 = arith.divf %190, %191 : vector<2x32xf32>
    %193 = vector.extract_strided_slice %176 {offsets = [0, 64], sizes = [2, 32], strides = [1, 1]} : vector<2x96xf32> to vector<2x32xf32>
    %194 = vector.extract_strided_slice %149 {offsets = [0, 64], sizes = [2, 32], strides = [1, 1]} : vector<2x96xf32> to vector<2x32xf32>
    %195 = arith.mulf %184, %194 : vector<2x32xf32>
    %196 = arith.addf %193, %195 : vector<2x32xf32>
    %197 = math.tanh %196 : vector<2x32xf32>
    %cst_59 = arith.constant 1.000000e+00 : f32
    %198 = vector.broadcast %cst_59 : f32 to vector<2x32xf32>
    %199 = arith.subf %198, %192 : vector<2x32xf32>
    %200 = arith.mulf %199, %197 : vector<2x32xf32>
    %201 = arith.mulf %192, %136 : vector<2x32xf32>
    %202 = arith.addf %200, %201 : vector<2x32xf32>
    %203 = arith.index_cast %c2_i32 : i32 to index
    %c0_60 = arith.constant 0 : index
    %c0_61 = arith.constant 0 : index
    %204 = vector.load %arg10[%203, %c0_60, %c0_61] : memref<8x2x32xf32, #tpu.memory_space<vmem>>, vector<1x2x32xf32>
    %205 = vector.shape_cast %204 : vector<1x2x32xf32> to vector<2x32xf32>
    %206 = vector.shape_cast %202 : vector<2x32xf32> to vector<1x2x32xf32>
    tpu.vector_store %arg10[%203, %c0_60, %c0_61], %206 {strides = array<i32>} : memref<8x2x32xf32, #tpu.memory_space<vmem>>, vector<1x2x32xf32>,
    %207 = arith.index_cast %c2_i32 : i32 to index
    %c0_62 = arith.constant 0 : index
    %c0_63 = arith.constant 0 : index
    %208 = vector.load %arg11[%207, %c0_62, %c0_63] : memref<8x2x64xf32, #tpu.memory_space<vmem>>, vector<1x2x64xf32>
    %209 = vector.shape_cast %208 : vector<1x2x64xf32> to vector<2x64xf32>
    %210 = vector.shape_cast %171 : vector<2x64xf32> to vector<1x2x64xf32>
    tpu.vector_store %arg11[%207, %c0_62, %c0_63], %210 {strides = array<i32>} : memref<8x2x64xf32, #tpu.memory_space<vmem>>, vector<1x2x64xf32>,
    %c3_i32 = arith.constant 3 : i32
    %cst_64 = arith.constant dense<0.000000e+00> : vector<2x128xf32>
    %211 = tpu.matmul %202, %2, %cst_64 {dimension_numbers = #tpu.dot_dimension_numbers<[1], [0], [0], [1], [0, 0, 1, 1], [], []>} : vector<2x32xf32>, vector<32x128xf32>, vector<2x128xf32> -> vector<2x128xf32>
    %212 = vector.broadcast %3 : vector<1x128xf32> to vector<2x128xf32>
    %213 = arith.addf %211, %212 : vector<2x128xf32>
    %214 = vector.extract_strided_slice %213 {offsets = [0, 0], sizes = [2, 32], strides = [1, 1]} : vector<2x128xf32> to vector<2x32xf32>
    %215 = vector.extract_strided_slice %213 {offsets = [0, 32], sizes = [2, 96], strides = [1, 1]} : vector<2x128xf32> to vector<2x96xf32>
    %216 = vector.shape_cast %214 : vector<2x32xf32> to vector<2x1x32xf32>
    %217 = vector.broadcast %216 : vector<2x1x32xf32> to vector<2x8x32xf32>
    %218 = arith.addf %217, %1 : vector<2x8x32xf32>
    %219 = math.tanh %218 : vector<2x8x32xf32>
    %220 = vector.shape_cast %4 : vector<1x32xf32> to vector<1x1x32xf32>
    %221 = vector.broadcast %220 : vector<1x1x32xf32> to vector<2x8x32xf32>
    %222 = arith.mulf %219, %221 : vector<2x8x32xf32>
    %cst_65 = arith.constant dense<0.000000e+00> : vector<2x8xf32>
    %223 = vector.multi_reduction <add>, %222, %cst_65 [2] : vector<2x8x32xf32> to vector<2x8xf32>
    %224 = arith.addf %223, %11 : vector<2x8xf32>
    %cst_66 = arith.constant dense<0xFF800000> : vector<2xf32>
    %225 = vector.multi_reduction <maximumf>, %224, %cst_66 [1] : vector<2x8xf32> to vector<2xf32>
    %226 = vector.shape_cast %225 : vector<2xf32> to vector<2x1xf32>
    %227 = vector.broadcast %226 : vector<2x1xf32> to vector<2x8xf32>
    %228 = arith.subf %224, %227 : vector<2x8xf32>
    %229 = math.exp %228 : vector<2x8xf32>
    %cst_67 = arith.constant dense<0.000000e+00> : vector<2xf32>
    %230 = vector.multi_reduction <add>, %229, %cst_67 [1] : vector<2x8xf32> to vector<2xf32>
    %231 = vector.shape_cast %230 : vector<2xf32> to vector<2x1xf32>
    %232 = vector.broadcast %231 : vector<2x1xf32> to vector<2x8xf32>
    %233 = arith.divf %229, %232 : vector<2x8xf32>
    %234 = vector.shape_cast %233 : vector<2x8xf32> to vector<2x8x1xf32>
    %235 = vector.broadcast %234 : vector<2x8x1xf32> to vector<2x8x64xf32>
    %236 = arith.mulf %235, %0 : vector<2x8x64xf32>
    %cst_68 = arith.constant dense<0.000000e+00> : vector<2x64xf32>
    %237 = vector.multi_reduction <add>, %236, %cst_68 [1] : vector<2x8x64xf32> to vector<2x64xf32>
    %238 = arith.index_cast %c3_i32 : i32 to index
    %c0_69 = arith.constant 0 : index
    %c0_70 = arith.constant 0 : index
    %239 = vector.load %arg1[%238, %c0_69, %c0_70] : memref<8x2x96xf32, #tpu.memory_space<vmem>>, vector<1x2x96xf32>
    %240 = vector.shape_cast %239 : vector<1x2x96xf32> to vector<2x96xf32>
    %cst_71 = arith.constant dense<0.000000e+00> : vector<2x96xf32>
    %241 = tpu.matmul %237, %5, %cst_71 {dimension_numbers = #tpu.dot_dimension_numbers<[1], [0], [0], [1], [0, 0, 1, 1], [], []>} : vector<2x64xf32>, vector<64x96xf32>, vector<2x96xf32> -> vector<2x96xf32>
    %242 = arith.addf %240, %241 : vector<2x96xf32>
    %243 = vector.extract_strided_slice %242 {offsets = [0, 0], sizes = [2, 32], strides = [1, 1]} : vector<2x96xf32> to vector<2x32xf32>
    %244 = vector.extract_strided_slice %215 {offsets = [0, 0], sizes = [2, 32], strides = [1, 1]} : vector<2x96xf32> to vector<2x32xf32>
    %245 = arith.addf %243, %244 : vector<2x32xf32>
    %246 = arith.negf %245 : vector<2x32xf32>
    %247 = math.exp %246 : vector<2x32xf32>
    %cst_72 = arith.constant 1.000000e+00 : f32
    %248 = vector.broadcast %cst_72 : f32 to vector<2x32xf32>
    %249 = arith.addf %248, %247 : vector<2x32xf32>
    %250 = arith.divf %248, %249 : vector<2x32xf32>
    %251 = vector.extract_strided_slice %242 {offsets = [0, 32], sizes = [2, 32], strides = [1, 1]} : vector<2x96xf32> to vector<2x32xf32>
    %252 = vector.extract_strided_slice %215 {offsets = [0, 32], sizes = [2, 32], strides = [1, 1]} : vector<2x96xf32> to vector<2x32xf32>
    %253 = arith.addf %251, %252 : vector<2x32xf32>
    %254 = arith.negf %253 : vector<2x32xf32>
    %255 = math.exp %254 : vector<2x32xf32>
    %cst_73 = arith.constant 1.000000e+00 : f32
    %256 = vector.broadcast %cst_73 : f32 to vector<2x32xf32>
    %257 = arith.addf %256, %255 : vector<2x32xf32>
    %258 = arith.divf %256, %257 : vector<2x32xf32>
    %259 = vector.extract_strided_slice %242 {offsets = [0, 64], sizes = [2, 32], strides = [1, 1]} : vector<2x96xf32> to vector<2x32xf32>
    %260 = vector.extract_strided_slice %215 {offsets = [0, 64], sizes = [2, 32], strides = [1, 1]} : vector<2x96xf32> to vector<2x32xf32>
    %261 = arith.mulf %250, %260 : vector<2x32xf32>
    %262 = arith.addf %259, %261 : vector<2x32xf32>
    %263 = math.tanh %262 : vector<2x32xf32>
    %cst_74 = arith.constant 1.000000e+00 : f32
    %264 = vector.broadcast %cst_74 : f32 to vector<2x32xf32>
    %265 = arith.subf %264, %258 : vector<2x32xf32>
    %266 = arith.mulf %265, %263 : vector<2x32xf32>
    %267 = arith.mulf %258, %202 : vector<2x32xf32>
    %268 = arith.addf %266, %267 : vector<2x32xf32>
    %269 = arith.index_cast %c3_i32 : i32 to index
    %c0_75 = arith.constant 0 : index
    %c0_76 = arith.constant 0 : index
    %270 = vector.load %arg10[%269, %c0_75, %c0_76] : memref<8x2x32xf32, #tpu.memory_space<vmem>>, vector<1x2x32xf32>
    %271 = vector.shape_cast %270 : vector<1x2x32xf32> to vector<2x32xf32>
    %272 = vector.shape_cast %268 : vector<2x32xf32> to vector<1x2x32xf32>
    tpu.vector_store %arg10[%269, %c0_75, %c0_76], %272 {strides = array<i32>} : memref<8x2x32xf32, #tpu.memory_space<vmem>>, vector<1x2x32xf32>,
    %273 = arith.index_cast %c3_i32 : i32 to index
    %c0_77 = arith.constant 0 : index
    %c0_78 = arith.constant 0 : index
    %274 = vector.load %arg11[%273, %c0_77, %c0_78] : memref<8x2x64xf32, #tpu.memory_space<vmem>>, vector<1x2x64xf32>
    %275 = vector.shape_cast %274 : vector<1x2x64xf32> to vector<2x64xf32>
    %276 = vector.shape_cast %237 : vector<2x64xf32> to vector<1x2x64xf32>
    tpu.vector_store %arg11[%273, %c0_77, %c0_78], %276 {strides = array<i32>} : memref<8x2x64xf32, #tpu.memory_space<vmem>>, vector<1x2x64xf32>,
    %c4_i32 = arith.constant 4 : i32
    %cst_79 = arith.constant dense<0.000000e+00> : vector<2x128xf32>
    %277 = tpu.matmul %268, %2, %cst_79 {dimension_numbers = #tpu.dot_dimension_numbers<[1], [0], [0], [1], [0, 0, 1, 1], [], []>} : vector<2x32xf32>, vector<32x128xf32>, vector<2x128xf32> -> vector<2x128xf32>
    %278 = vector.broadcast %3 : vector<1x128xf32> to vector<2x128xf32>
    %279 = arith.addf %277, %278 : vector<2x128xf32>
    %280 = vector.extract_strided_slice %279 {offsets = [0, 0], sizes = [2, 32], strides = [1, 1]} : vector<2x128xf32> to vector<2x32xf32>
    %281 = vector.extract_strided_slice %279 {offsets = [0, 32], sizes = [2, 96], strides = [1, 1]} : vector<2x128xf32> to vector<2x96xf32>
    %282 = vector.shape_cast %280 : vector<2x32xf32> to vector<2x1x32xf32>
    %283 = vector.broadcast %282 : vector<2x1x32xf32> to vector<2x8x32xf32>
    %284 = arith.addf %283, %1 : vector<2x8x32xf32>
    %285 = math.tanh %284 : vector<2x8x32xf32>
    %286 = vector.shape_cast %4 : vector<1x32xf32> to vector<1x1x32xf32>
    %287 = vector.broadcast %286 : vector<1x1x32xf32> to vector<2x8x32xf32>
    %288 = arith.mulf %285, %287 : vector<2x8x32xf32>
    %cst_80 = arith.constant dense<0.000000e+00> : vector<2x8xf32>
    %289 = vector.multi_reduction <add>, %288, %cst_80 [2] : vector<2x8x32xf32> to vector<2x8xf32>
    %290 = arith.addf %289, %11 : vector<2x8xf32>
    %cst_81 = arith.constant dense<0xFF800000> : vector<2xf32>
    %291 = vector.multi_reduction <maximumf>, %290, %cst_81 [1] : vector<2x8xf32> to vector<2xf32>
    %292 = vector.shape_cast %291 : vector<2xf32> to vector<2x1xf32>
    %293 = vector.broadcast %292 : vector<2x1xf32> to vector<2x8xf32>
    %294 = arith.subf %290, %293 : vector<2x8xf32>
    %295 = math.exp %294 : vector<2x8xf32>
    %cst_82 = arith.constant dense<0.000000e+00> : vector<2xf32>
    %296 = vector.multi_reduction <add>, %295, %cst_82 [1] : vector<2x8xf32> to vector<2xf32>
    %297 = vector.shape_cast %296 : vector<2xf32> to vector<2x1xf32>
    %298 = vector.broadcast %297 : vector<2x1xf32> to vector<2x8xf32>
    %299 = arith.divf %295, %298 : vector<2x8xf32>
    %300 = vector.shape_cast %299 : vector<2x8xf32> to vector<2x8x1xf32>
    %301 = vector.broadcast %300 : vector<2x8x1xf32> to vector<2x8x64xf32>
    %302 = arith.mulf %301, %0 : vector<2x8x64xf32>
    %cst_83 = arith.constant dense<0.000000e+00> : vector<2x64xf32>
    %303 = vector.multi_reduction <add>, %302, %cst_83 [1] : vector<2x8x64xf32> to vector<2x64xf32>
    %304 = arith.index_cast %c4_i32 : i32 to index
    %c0_84 = arith.constant 0 : index
    %c0_85 = arith.constant 0 : index
    %305 = vector.load %arg1[%304, %c0_84, %c0_85] : memref<8x2x96xf32, #tpu.memory_space<vmem>>, vector<1x2x96xf32>
    %306 = vector.shape_cast %305 : vector<1x2x96xf32> to vector<2x96xf32>
    %cst_86 = arith.constant dense<0.000000e+00> : vector<2x96xf32>
    %307 = tpu.matmul %303, %5, %cst_86 {dimension_numbers = #tpu.dot_dimension_numbers<[1], [0], [0], [1], [0, 0, 1, 1], [], []>} : vector<2x64xf32>, vector<64x96xf32>, vector<2x96xf32> -> vector<2x96xf32>
    %308 = arith.addf %306, %307 : vector<2x96xf32>
    %309 = vector.extract_strided_slice %308 {offsets = [0, 0], sizes = [2, 32], strides = [1, 1]} : vector<2x96xf32> to vector<2x32xf32>
    %310 = vector.extract_strided_slice %281 {offsets = [0, 0], sizes = [2, 32], strides = [1, 1]} : vector<2x96xf32> to vector<2x32xf32>
    %311 = arith.addf %309, %310 : vector<2x32xf32>
    %312 = arith.negf %311 : vector<2x32xf32>
    %313 = math.exp %312 : vector<2x32xf32>
    %cst_87 = arith.constant 1.000000e+00 : f32
    %314 = vector.broadcast %cst_87 : f32 to vector<2x32xf32>
    %315 = arith.addf %314, %313 : vector<2x32xf32>
    %316 = arith.divf %314, %315 : vector<2x32xf32>
    %317 = vector.extract_strided_slice %308 {offsets = [0, 32], sizes = [2, 32], strides = [1, 1]} : vector<2x96xf32> to vector<2x32xf32>
    %318 = vector.extract_strided_slice %281 {offsets = [0, 32], sizes = [2, 32], strides = [1, 1]} : vector<2x96xf32> to vector<2x32xf32>
    %319 = arith.addf %317, %318 : vector<2x32xf32>
    %320 = arith.negf %319 : vector<2x32xf32>
    %321 = math.exp %320 : vector<2x32xf32>
    %cst_88 = arith.constant 1.000000e+00 : f32
    %322 = vector.broadcast %cst_88 : f32 to vector<2x32xf32>
    %323 = arith.addf %322, %321 : vector<2x32xf32>
    %324 = arith.divf %322, %323 : vector<2x32xf32>
    %325 = vector.extract_strided_slice %308 {offsets = [0, 64], sizes = [2, 32], strides = [1, 1]} : vector<2x96xf32> to vector<2x32xf32>
    %326 = vector.extract_strided_slice %281 {offsets = [0, 64], sizes = [2, 32], strides = [1, 1]} : vector<2x96xf32> to vector<2x32xf32>
    %327 = arith.mulf %316, %326 : vector<2x32xf32>
    %328 = arith.addf %325, %327 : vector<2x32xf32>
    %329 = math.tanh %328 : vector<2x32xf32>
    %cst_89 = arith.constant 1.000000e+00 : f32
    %330 = vector.broadcast %cst_89 : f32 to vector<2x32xf32>
    %331 = arith.subf %330, %324 : vector<2x32xf32>
    %332 = arith.mulf %331, %329 : vector<2x32xf32>
    %333 = arith.mulf %324, %268 : vector<2x32xf32>
    %334 = arith.addf %332, %333 : vector<2x32xf32>
    %335 = arith.index_cast %c4_i32 : i32 to index
    %c0_90 = arith.constant 0 : index
    %c0_91 = arith.constant 0 : index
    %336 = vector.load %arg10[%335, %c0_90, %c0_91] : memref<8x2x32xf32, #tpu.memory_space<vmem>>, vector<1x2x32xf32>
    %337 = vector.shape_cast %336 : vector<1x2x32xf32> to vector<2x32xf32>
    %338 = vector.shape_cast %334 : vector<2x32xf32> to vector<1x2x32xf32>
    tpu.vector_store %arg10[%335, %c0_90, %c0_91], %338 {strides = array<i32>} : memref<8x2x32xf32, #tpu.memory_space<vmem>>, vector<1x2x32xf32>,
    %339 = arith.index_cast %c4_i32 : i32 to index
    %c0_92 = arith.constant 0 : index
    %c0_93 = arith.constant 0 : index
    %340 = vector.load %arg11[%339, %c0_92, %c0_93] : memref<8x2x64xf32, #tpu.memory_space<vmem>>, vector<1x2x64xf32>
    %341 = vector.shape_cast %340 : vector<1x2x64xf32> to vector<2x64xf32>
    %342 = vector.shape_cast %303 : vector<2x64xf32> to vector<1x2x64xf32>
    tpu.vector_store %arg11[%339, %c0_92, %c0_93], %342 {strides = array<i32>} : memref<8x2x64xf32, #tpu.memory_space<vmem>>, vector<1x2x64xf32>,
    %c5_i32 = arith.constant 5 : i32
    %cst_94 = arith.constant dense<0.000000e+00> : vector<2x128xf32>
    %343 = tpu.matmul %334, %2, %cst_94 {dimension_numbers = #tpu.dot_dimension_numbers<[1], [0], [0], [1], [0, 0, 1, 1], [], []>} : vector<2x32xf32>, vector<32x128xf32>, vector<2x128xf32> -> vector<2x128xf32>
    %344 = vector.broadcast %3 : vector<1x128xf32> to vector<2x128xf32>
    %345 = arith.addf %343, %344 : vector<2x128xf32>
    %346 = vector.extract_strided_slice %345 {offsets = [0, 0], sizes = [2, 32], strides = [1, 1]} : vector<2x128xf32> to vector<2x32xf32>
    %347 = vector.extract_strided_slice %345 {offsets = [0, 32], sizes = [2, 96], strides = [1, 1]} : vector<2x128xf32> to vector<2x96xf32>
    %348 = vector.shape_cast %346 : vector<2x32xf32> to vector<2x1x32xf32>
    %349 = vector.broadcast %348 : vector<2x1x32xf32> to vector<2x8x32xf32>
    %350 = arith.addf %349, %1 : vector<2x8x32xf32>
    %351 = math.tanh %350 : vector<2x8x32xf32>
    %352 = vector.shape_cast %4 : vector<1x32xf32> to vector<1x1x32xf32>
    %353 = vector.broadcast %352 : vector<1x1x32xf32> to vector<2x8x32xf32>
    %354 = arith.mulf %351, %353 : vector<2x8x32xf32>
    %cst_95 = arith.constant dense<0.000000e+00> : vector<2x8xf32>
    %355 = vector.multi_reduction <add>, %354, %cst_95 [2] : vector<2x8x32xf32> to vector<2x8xf32>
    %356 = arith.addf %355, %11 : vector<2x8xf32>
    %cst_96 = arith.constant dense<0xFF800000> : vector<2xf32>
    %357 = vector.multi_reduction <maximumf>, %356, %cst_96 [1] : vector<2x8xf32> to vector<2xf32>
    %358 = vector.shape_cast %357 : vector<2xf32> to vector<2x1xf32>
    %359 = vector.broadcast %358 : vector<2x1xf32> to vector<2x8xf32>
    %360 = arith.subf %356, %359 : vector<2x8xf32>
    %361 = math.exp %360 : vector<2x8xf32>
    %cst_97 = arith.constant dense<0.000000e+00> : vector<2xf32>
    %362 = vector.multi_reduction <add>, %361, %cst_97 [1] : vector<2x8xf32> to vector<2xf32>
    %363 = vector.shape_cast %362 : vector<2xf32> to vector<2x1xf32>
    %364 = vector.broadcast %363 : vector<2x1xf32> to vector<2x8xf32>
    %365 = arith.divf %361, %364 : vector<2x8xf32>
    %366 = vector.shape_cast %365 : vector<2x8xf32> to vector<2x8x1xf32>
    %367 = vector.broadcast %366 : vector<2x8x1xf32> to vector<2x8x64xf32>
    %368 = arith.mulf %367, %0 : vector<2x8x64xf32>
    %cst_98 = arith.constant dense<0.000000e+00> : vector<2x64xf32>
    %369 = vector.multi_reduction <add>, %368, %cst_98 [1] : vector<2x8x64xf32> to vector<2x64xf32>
    %370 = arith.index_cast %c5_i32 : i32 to index
    %c0_99 = arith.constant 0 : index
    %c0_100 = arith.constant 0 : index
    %371 = vector.load %arg1[%370, %c0_99, %c0_100] : memref<8x2x96xf32, #tpu.memory_space<vmem>>, vector<1x2x96xf32>
    %372 = vector.shape_cast %371 : vector<1x2x96xf32> to vector<2x96xf32>
    %cst_101 = arith.constant dense<0.000000e+00> : vector<2x96xf32>
    %373 = tpu.matmul %369, %5, %cst_101 {dimension_numbers = #tpu.dot_dimension_numbers<[1], [0], [0], [1], [0, 0, 1, 1], [], []>} : vector<2x64xf32>, vector<64x96xf32>, vector<2x96xf32> -> vector<2x96xf32>
    %374 = arith.addf %372, %373 : vector<2x96xf32>
    %375 = vector.extract_strided_slice %374 {offsets = [0, 0], sizes = [2, 32], strides = [1, 1]} : vector<2x96xf32> to vector<2x32xf32>
    %376 = vector.extract_strided_slice %347 {offsets = [0, 0], sizes = [2, 32], strides = [1, 1]} : vector<2x96xf32> to vector<2x32xf32>
    %377 = arith.addf %375, %376 : vector<2x32xf32>
    %378 = arith.negf %377 : vector<2x32xf32>
    %379 = math.exp %378 : vector<2x32xf32>
    %cst_102 = arith.constant 1.000000e+00 : f32
    %380 = vector.broadcast %cst_102 : f32 to vector<2x32xf32>
    %381 = arith.addf %380, %379 : vector<2x32xf32>
    %382 = arith.divf %380, %381 : vector<2x32xf32>
    %383 = vector.extract_strided_slice %374 {offsets = [0, 32], sizes = [2, 32], strides = [1, 1]} : vector<2x96xf32> to vector<2x32xf32>
    %384 = vector.extract_strided_slice %347 {offsets = [0, 32], sizes = [2, 32], strides = [1, 1]} : vector<2x96xf32> to vector<2x32xf32>
    %385 = arith.addf %383, %384 : vector<2x32xf32>
    %386 = arith.negf %385 : vector<2x32xf32>
    %387 = math.exp %386 : vector<2x32xf32>
    %cst_103 = arith.constant 1.000000e+00 : f32
    %388 = vector.broadcast %cst_103 : f32 to vector<2x32xf32>
    %389 = arith.addf %388, %387 : vector<2x32xf32>
    %390 = arith.divf %388, %389 : vector<2x32xf32>
    %391 = vector.extract_strided_slice %374 {offsets = [0, 64], sizes = [2, 32], strides = [1, 1]} : vector<2x96xf32> to vector<2x32xf32>
    %392 = vector.extract_strided_slice %347 {offsets = [0, 64], sizes = [2, 32], strides = [1, 1]} : vector<2x96xf32> to vector<2x32xf32>
    %393 = arith.mulf %382, %392 : vector<2x32xf32>
    %394 = arith.addf %391, %393 : vector<2x32xf32>
    %395 = math.tanh %394 : vector<2x32xf32>
    %cst_104 = arith.constant 1.000000e+00 : f32
    %396 = vector.broadcast %cst_104 : f32 to vector<2x32xf32>
    %397 = arith.subf %396, %390 : vector<2x32xf32>
    %398 = arith.mulf %397, %395 : vector<2x32xf32>
    %399 = arith.mulf %390, %334 : vector<2x32xf32>
    %400 = arith.addf %398, %399 : vector<2x32xf32>
    %401 = arith.index_cast %c5_i32 : i32 to index
    %c0_105 = arith.constant 0 : index
    %c0_106 = arith.constant 0 : index
    %402 = vector.load %arg10[%401, %c0_105, %c0_106] : memref<8x2x32xf32, #tpu.memory_space<vmem>>, vector<1x2x32xf32>
    %403 = vector.shape_cast %402 : vector<1x2x32xf32> to vector<2x32xf32>
    %404 = vector.shape_cast %400 : vector<2x32xf32> to vector<1x2x32xf32>
    tpu.vector_store %arg10[%401, %c0_105, %c0_106], %404 {strides = array<i32>} : memref<8x2x32xf32, #tpu.memory_space<vmem>>, vector<1x2x32xf32>,
    %405 = arith.index_cast %c5_i32 : i32 to index
    %c0_107 = arith.constant 0 : index
    %c0_108 = arith.constant 0 : index
    %406 = vector.load %arg11[%405, %c0_107, %c0_108] : memref<8x2x64xf32, #tpu.memory_space<vmem>>, vector<1x2x64xf32>
    %407 = vector.shape_cast %406 : vector<1x2x64xf32> to vector<2x64xf32>
    %408 = vector.shape_cast %369 : vector<2x64xf32> to vector<1x2x64xf32>
    tpu.vector_store %arg11[%405, %c0_107, %c0_108], %408 {strides = array<i32>} : memref<8x2x64xf32, #tpu.memory_space<vmem>>, vector<1x2x64xf32>,
    %c6_i32 = arith.constant 6 : i32
    %cst_109 = arith.constant dense<0.000000e+00> : vector<2x128xf32>
    %409 = tpu.matmul %400, %2, %cst_109 {dimension_numbers = #tpu.dot_dimension_numbers<[1], [0], [0], [1], [0, 0, 1, 1], [], []>} : vector<2x32xf32>, vector<32x128xf32>, vector<2x128xf32> -> vector<2x128xf32>
    %410 = vector.broadcast %3 : vector<1x128xf32> to vector<2x128xf32>
    %411 = arith.addf %409, %410 : vector<2x128xf32>
    %412 = vector.extract_strided_slice %411 {offsets = [0, 0], sizes = [2, 32], strides = [1, 1]} : vector<2x128xf32> to vector<2x32xf32>
    %413 = vector.extract_strided_slice %411 {offsets = [0, 32], sizes = [2, 96], strides = [1, 1]} : vector<2x128xf32> to vector<2x96xf32>
    %414 = vector.shape_cast %412 : vector<2x32xf32> to vector<2x1x32xf32>
    %415 = vector.broadcast %414 : vector<2x1x32xf32> to vector<2x8x32xf32>
    %416 = arith.addf %415, %1 : vector<2x8x32xf32>
    %417 = math.tanh %416 : vector<2x8x32xf32>
    %418 = vector.shape_cast %4 : vector<1x32xf32> to vector<1x1x32xf32>
    %419 = vector.broadcast %418 : vector<1x1x32xf32> to vector<2x8x32xf32>
    %420 = arith.mulf %417, %419 : vector<2x8x32xf32>
    %cst_110 = arith.constant dense<0.000000e+00> : vector<2x8xf32>
    %421 = vector.multi_reduction <add>, %420, %cst_110 [2] : vector<2x8x32xf32> to vector<2x8xf32>
    %422 = arith.addf %421, %11 : vector<2x8xf32>
    %cst_111 = arith.constant dense<0xFF800000> : vector<2xf32>
    %423 = vector.multi_reduction <maximumf>, %422, %cst_111 [1] : vector<2x8xf32> to vector<2xf32>
    %424 = vector.shape_cast %423 : vector<2xf32> to vector<2x1xf32>
    %425 = vector.broadcast %424 : vector<2x1xf32> to vector<2x8xf32>
    %426 = arith.subf %422, %425 : vector<2x8xf32>
    %427 = math.exp %426 : vector<2x8xf32>
    %cst_112 = arith.constant dense<0.000000e+00> : vector<2xf32>
    %428 = vector.multi_reduction <add>, %427, %cst_112 [1] : vector<2x8xf32> to vector<2xf32>
    %429 = vector.shape_cast %428 : vector<2xf32> to vector<2x1xf32>
    %430 = vector.broadcast %429 : vector<2x1xf32> to vector<2x8xf32>
    %431 = arith.divf %427, %430 : vector<2x8xf32>
    %432 = vector.shape_cast %431 : vector<2x8xf32> to vector<2x8x1xf32>
    %433 = vector.broadcast %432 : vector<2x8x1xf32> to vector<2x8x64xf32>
    %434 = arith.mulf %433, %0 : vector<2x8x64xf32>
    %cst_113 = arith.constant dense<0.000000e+00> : vector<2x64xf32>
    %435 = vector.multi_reduction <add>, %434, %cst_113 [1] : vector<2x8x64xf32> to vector<2x64xf32>
    %436 = arith.index_cast %c6_i32 : i32 to index
    %c0_114 = arith.constant 0 : index
    %c0_115 = arith.constant 0 : index
    %437 = vector.load %arg1[%436, %c0_114, %c0_115] : memref<8x2x96xf32, #tpu.memory_space<vmem>>, vector<1x2x96xf32>
    %438 = vector.shape_cast %437 : vector<1x2x96xf32> to vector<2x96xf32>
    %cst_116 = arith.constant dense<0.000000e+00> : vector<2x96xf32>
    %439 = tpu.matmul %435, %5, %cst_116 {dimension_numbers = #tpu.dot_dimension_numbers<[1], [0], [0], [1], [0, 0, 1, 1], [], []>} : vector<2x64xf32>, vector<64x96xf32>, vector<2x96xf32> -> vector<2x96xf32>
    %440 = arith.addf %438, %439 : vector<2x96xf32>
    %441 = vector.extract_strided_slice %440 {offsets = [0, 0], sizes = [2, 32], strides = [1, 1]} : vector<2x96xf32> to vector<2x32xf32>
    %442 = vector.extract_strided_slice %413 {offsets = [0, 0], sizes = [2, 32], strides = [1, 1]} : vector<2x96xf32> to vector<2x32xf32>
    %443 = arith.addf %441, %442 : vector<2x32xf32>
    %444 = arith.negf %443 : vector<2x32xf32>
    %445 = math.exp %444 : vector<2x32xf32>
    %cst_117 = arith.constant 1.000000e+00 : f32
    %446 = vector.broadcast %cst_117 : f32 to vector<2x32xf32>
    %447 = arith.addf %446, %445 : vector<2x32xf32>
    %448 = arith.divf %446, %447 : vector<2x32xf32>
    %449 = vector.extract_strided_slice %440 {offsets = [0, 32], sizes = [2, 32], strides = [1, 1]} : vector<2x96xf32> to vector<2x32xf32>
    %450 = vector.extract_strided_slice %413 {offsets = [0, 32], sizes = [2, 32], strides = [1, 1]} : vector<2x96xf32> to vector<2x32xf32>
    %451 = arith.addf %449, %450 : vector<2x32xf32>
    %452 = arith.negf %451 : vector<2x32xf32>
    %453 = math.exp %452 : vector<2x32xf32>
    %cst_118 = arith.constant 1.000000e+00 : f32
    %454 = vector.broadcast %cst_118 : f32 to vector<2x32xf32>
    %455 = arith.addf %454, %453 : vector<2x32xf32>
    %456 = arith.divf %454, %455 : vector<2x32xf32>
    %457 = vector.extract_strided_slice %440 {offsets = [0, 64], sizes = [2, 32], strides = [1, 1]} : vector<2x96xf32> to vector<2x32xf32>
    %458 = vector.extract_strided_slice %413 {offsets = [0, 64], sizes = [2, 32], strides = [1, 1]} : vector<2x96xf32> to vector<2x32xf32>
    %459 = arith.mulf %448, %458 : vector<2x32xf32>
    %460 = arith.addf %457, %459 : vector<2x32xf32>
    %461 = math.tanh %460 : vector<2x32xf32>
    %cst_119 = arith.constant 1.000000e+00 : f32
    %462 = vector.broadcast %cst_119 : f32 to vector<2x32xf32>
    %463 = arith.subf %462, %456 : vector<2x32xf32>
    %464 = arith.mulf %463, %461 : vector<2x32xf32>
    %465 = arith.mulf %456, %400 : vector<2x32xf32>
    %466 = arith.addf %464, %465 : vector<2x32xf32>
    %467 = arith.index_cast %c6_i32 : i32 to index
    %c0_120 = arith.constant 0 : index
    %c0_121 = arith.constant 0 : index
    %468 = vector.load %arg10[%467, %c0_120, %c0_121] : memref<8x2x32xf32, #tpu.memory_space<vmem>>, vector<1x2x32xf32>
    %469 = vector.shape_cast %468 : vector<1x2x32xf32> to vector<2x32xf32>
    %470 = vector.shape_cast %466 : vector<2x32xf32> to vector<1x2x32xf32>
    tpu.vector_store %arg10[%467, %c0_120, %c0_121], %470 {strides = array<i32>} : memref<8x2x32xf32, #tpu.memory_space<vmem>>, vector<1x2x32xf32>,
    %471 = arith.index_cast %c6_i32 : i32 to index
    %c0_122 = arith.constant 0 : index
    %c0_123 = arith.constant 0 : index
    %472 = vector.load %arg11[%471, %c0_122, %c0_123] : memref<8x2x64xf32, #tpu.memory_space<vmem>>, vector<1x2x64xf32>
    %473 = vector.shape_cast %472 : vector<1x2x64xf32> to vector<2x64xf32>
    %474 = vector.shape_cast %435 : vector<2x64xf32> to vector<1x2x64xf32>
    tpu.vector_store %arg11[%471, %c0_122, %c0_123], %474 {strides = array<i32>} : memref<8x2x64xf32, #tpu.memory_space<vmem>>, vector<1x2x64xf32>,
    %c7_i32 = arith.constant 7 : i32
    %cst_124 = arith.constant dense<0.000000e+00> : vector<2x128xf32>
    %475 = tpu.matmul %466, %2, %cst_124 {dimension_numbers = #tpu.dot_dimension_numbers<[1], [0], [0], [1], [0, 0, 1, 1], [], []>} : vector<2x32xf32>, vector<32x128xf32>, vector<2x128xf32> -> vector<2x128xf32>
    %476 = vector.broadcast %3 : vector<1x128xf32> to vector<2x128xf32>
    %477 = arith.addf %475, %476 : vector<2x128xf32>
    %478 = vector.extract_strided_slice %477 {offsets = [0, 0], sizes = [2, 32], strides = [1, 1]} : vector<2x128xf32> to vector<2x32xf32>
    %479 = vector.extract_strided_slice %477 {offsets = [0, 32], sizes = [2, 96], strides = [1, 1]} : vector<2x128xf32> to vector<2x96xf32>
    %480 = vector.shape_cast %478 : vector<2x32xf32> to vector<2x1x32xf32>
    %481 = vector.broadcast %480 : vector<2x1x32xf32> to vector<2x8x32xf32>
    %482 = arith.addf %481, %1 : vector<2x8x32xf32>
    %483 = math.tanh %482 : vector<2x8x32xf32>
    %484 = vector.shape_cast %4 : vector<1x32xf32> to vector<1x1x32xf32>
    %485 = vector.broadcast %484 : vector<1x1x32xf32> to vector<2x8x32xf32>
    %486 = arith.mulf %483, %485 : vector<2x8x32xf32>
    %cst_125 = arith.constant dense<0.000000e+00> : vector<2x8xf32>
    %487 = vector.multi_reduction <add>, %486, %cst_125 [2] : vector<2x8x32xf32> to vector<2x8xf32>
    %488 = arith.addf %487, %11 : vector<2x8xf32>
    %cst_126 = arith.constant dense<0xFF800000> : vector<2xf32>
    %489 = vector.multi_reduction <maximumf>, %488, %cst_126 [1] : vector<2x8xf32> to vector<2xf32>
    %490 = vector.shape_cast %489 : vector<2xf32> to vector<2x1xf32>
    %491 = vector.broadcast %490 : vector<2x1xf32> to vector<2x8xf32>
    %492 = arith.subf %488, %491 : vector<2x8xf32>
    %493 = math.exp %492 : vector<2x8xf32>
    %cst_127 = arith.constant dense<0.000000e+00> : vector<2xf32>
    %494 = vector.multi_reduction <add>, %493, %cst_127 [1] : vector<2x8xf32> to vector<2xf32>
    %495 = vector.shape_cast %494 : vector<2xf32> to vector<2x1xf32>
    %496 = vector.broadcast %495 : vector<2x1xf32> to vector<2x8xf32>
    %497 = arith.divf %493, %496 : vector<2x8xf32>
    %498 = vector.shape_cast %497 : vector<2x8xf32> to vector<2x8x1xf32>
    %499 = vector.broadcast %498 : vector<2x8x1xf32> to vector<2x8x64xf32>
    %500 = arith.mulf %499, %0 : vector<2x8x64xf32>
    %cst_128 = arith.constant dense<0.000000e+00> : vector<2x64xf32>
    %501 = vector.multi_reduction <add>, %500, %cst_128 [1] : vector<2x8x64xf32> to vector<2x64xf32>
    %502 = arith.index_cast %c7_i32 : i32 to index
    %c0_129 = arith.constant 0 : index
    %c0_130 = arith.constant 0 : index
    %503 = vector.load %arg1[%502, %c0_129, %c0_130] : memref<8x2x96xf32, #tpu.memory_space<vmem>>, vector<1x2x96xf32>
    %504 = vector.shape_cast %503 : vector<1x2x96xf32> to vector<2x96xf32>
    %cst_131 = arith.constant dense<0.000000e+00> : vector<2x96xf32>
    %505 = tpu.matmul %501, %5, %cst_131 {dimension_numbers = #tpu.dot_dimension_numbers<[1], [0], [0], [1], [0, 0, 1, 1], [], []>} : vector<2x64xf32>, vector<64x96xf32>, vector<2x96xf32> -> vector<2x96xf32>
    %506 = arith.addf %504, %505 : vector<2x96xf32>
    %507 = vector.extract_strided_slice %506 {offsets = [0, 0], sizes = [2, 32], strides = [1, 1]} : vector<2x96xf32> to vector<2x32xf32>
    %508 = vector.extract_strided_slice %479 {offsets = [0, 0], sizes = [2, 32], strides = [1, 1]} : vector<2x96xf32> to vector<2x32xf32>
    %509 = arith.addf %507, %508 : vector<2x32xf32>
    %510 = arith.negf %509 : vector<2x32xf32>
    %511 = math.exp %510 : vector<2x32xf32>
    %cst_132 = arith.constant 1.000000e+00 : f32
    %512 = vector.broadcast %cst_132 : f32 to vector<2x32xf32>
    %513 = arith.addf %512, %511 : vector<2x32xf32>
    %514 = arith.divf %512, %513 : vector<2x32xf32>
    %515 = vector.extract_strided_slice %506 {offsets = [0, 32], sizes = [2, 32], strides = [1, 1]} : vector<2x96xf32> to vector<2x32xf32>
    %516 = vector.extract_strided_slice %479 {offsets = [0, 32], sizes = [2, 32], strides = [1, 1]} : vector<2x96xf32> to vector<2x32xf32>
    %517 = arith.addf %515, %516 : vector<2x32xf32>
    %518 = arith.negf %517 : vector<2x32xf32>
    %519 = math.exp %518 : vector<2x32xf32>
    %cst_133 = arith.constant 1.000000e+00 : f32
    %520 = vector.broadcast %cst_133 : f32 to vector<2x32xf32>
    %521 = arith.addf %520, %519 : vector<2x32xf32>
    %522 = arith.divf %520, %521 : vector<2x32xf32>
    %523 = vector.extract_strided_slice %506 {offsets = [0, 64], sizes = [2, 32], strides = [1, 1]} : vector<2x96xf32> to vector<2x32xf32>
    %524 = vector.extract_strided_slice %479 {offsets = [0, 64], sizes = [2, 32], strides = [1, 1]} : vector<2x96xf32> to vector<2x32xf32>
    %525 = arith.mulf %514, %524 : vector<2x32xf32>
    %526 = arith.addf %523, %525 : vector<2x32xf32>
    %527 = math.tanh %526 : vector<2x32xf32>
    %cst_134 = arith.constant 1.000000e+00 : f32
    %528 = vector.broadcast %cst_134 : f32 to vector<2x32xf32>
    %529 = arith.subf %528, %522 : vector<2x32xf32>
    %530 = arith.mulf %529, %527 : vector<2x32xf32>
    %531 = arith.mulf %522, %466 : vector<2x32xf32>
    %532 = arith.addf %530, %531 : vector<2x32xf32>
    %533 = arith.index_cast %c7_i32 : i32 to index
    %c0_135 = arith.constant 0 : index
    %c0_136 = arith.constant 0 : index
    %534 = vector.load %arg10[%533, %c0_135, %c0_136] : memref<8x2x32xf32, #tpu.memory_space<vmem>>, vector<1x2x32xf32>
    %535 = vector.shape_cast %534 : vector<1x2x32xf32> to vector<2x32xf32>
    %536 = vector.shape_cast %532 : vector<2x32xf32> to vector<1x2x32xf32>
    tpu.vector_store %arg10[%533, %c0_135, %c0_136], %536 {strides = array<i32>} : memref<8x2x32xf32, #tpu.memory_space<vmem>>, vector<1x2x32xf32>,
    %537 = arith.index_cast %c7_i32 : i32 to index
    %c0_137 = arith.constant 0 : index
    %c0_138 = arith.constant 0 : index
    %538 = vector.load %arg11[%537, %c0_137, %c0_138] : memref<8x2x64xf32, #tpu.memory_space<vmem>>, vector<1x2x64xf32>
    %539 = vector.shape_cast %538 : vector<1x2x64xf32> to vector<2x64xf32>
    %540 = vector.shape_cast %501 : vector<2x64xf32> to vector<1x2x64xf32>
    tpu.vector_store %arg11[%537, %c0_137, %c0_138], %540 {strides = array<i32>} : memref<8x2x64xf32, #tpu.memory_space<vmem>>, vector<1x2x64xf32>,
    %c8_i32 = arith.constant 8 : i32
    %c0_139 = arith.constant 0 : index
    %c0_140 = arith.constant 0 : index
    %541 = vector.load %arg12[%c0_139, %c0_140] : memref<2x32xf32, #tpu.memory_space<vmem>>, vector<2x32xf32>
    tpu.vector_store %arg12[%c0_139, %c0_140], %532 {strides = array<i32>} : memref<2x32xf32, #tpu.memory_space<vmem>>, vector<2x32xf32>,
    return
  }
  func.func @transform_0(%arg0: i32) -> (i32, i32, i32) {
    %c0_i32 = arith.constant 0 : i32
    %c0_i32_0 = arith.constant 0 : i32
    %c0_i32_1 = arith.constant 0 : i32
    return %c0_i32, %arg0, %c0_i32_0 : i32, i32, i32
  }
  func.func @transform_1(%arg0: i32) -> (i32, i32, i32) {
    %c0_i32 = arith.constant 0 : i32
    %c0_i32_0 = arith.constant 0 : i32
    %c0_i32_1 = arith.constant 0 : i32
    return %arg0, %c0_i32, %c0_i32_0 : i32, i32, i32
  }
  func.func @transform_2(%arg0: i32) -> (i32, i32, i32) {
    %c0_i32 = arith.constant 0 : i32
    %c0_i32_0 = arith.constant 0 : i32
    %c0_i32_1 = arith.constant 0 : i32
    return %arg0, %c0_i32, %c0_i32_0 : i32, i32, i32
  }
  func.func @transform_3(%arg0: i32) -> (i32, i32) {
    %c0_i32 = arith.constant 0 : i32
    %c0_i32_0 = arith.constant 0 : i32
    return %arg0, %c0_i32 : i32, i32
  }
  func.func @transform_4(%arg0: i32) -> (i32, i32) {
    %c0_i32 = arith.constant 0 : i32
    %c0_i32_0 = arith.constant 0 : i32
    return %arg0, %c0_i32 : i32, i32
  }
  func.func @transform_5(%arg0: i32) -> (i32, i32) {
    %c0_i32 = arith.constant 0 : i32
    %c0_i32_0 = arith.constant 0 : i32
    %c0_i32_1 = arith.constant 0 : i32
    return %c0_i32, %c0_i32_0 : i32, i32
  }
  func.func @transform_6(%arg0: i32) -> (i32, i32) {
    %c0_i32 = arith.constant 0 : i32
    %c0_i32_0 = arith.constant 0 : i32
    %c0_i32_1 = arith.constant 0 : i32
    return %c0_i32, %c0_i32_0 : i32, i32
  }
  func.func @transform_7(%arg0: i32) -> (i32, i32) {
    %c0_i32 = arith.constant 0 : i32
    %c0_i32_0 = arith.constant 0 : i32
    %c0_i32_1 = arith.constant 0 : i32
    return %c0_i32, %c0_i32_0 : i32, i32
  }
  func.func @transform_8(%arg0: i32) -> (i32, i32) {
    %c0_i32 = arith.constant 0 : i32
    %c0_i32_0 = arith.constant 0 : i32
    %c0_i32_1 = arith.constant 0 : i32
    return %c0_i32, %c0_i32_0 : i32, i32
  }
  func.func @transform_9(%arg0: i32) -> (i32, i32, i32) {
    %c0_i32 = arith.constant 0 : i32
    %c0_i32_0 = arith.constant 0 : i32
    %c0_i32_1 = arith.constant 0 : i32
    return %c0_i32, %arg0, %c0_i32_0 : i32, i32, i32
  }
  func.func @transform_10(%arg0: i32) -> (i32, i32, i32) {
    %c0_i32 = arith.constant 0 : i32
    %c0_i32_0 = arith.constant 0 : i32
    %c0_i32_1 = arith.constant 0 : i32
    return %c0_i32, %arg0, %c0_i32_0 : i32, i32, i32
  }
  func.func @transform_11(%arg0: i32) -> (i32, i32) {
    %c0_i32 = arith.constant 0 : i32
    %c0_i32_0 = arith.constant 0 : i32
    return %arg0, %c0_i32 : i32, i32
  }
}

</mosaic_0001>

<llo_original>
// kernel: decoder_forward.1
$region0: #{decoder_forward.1}
  #allocation0 [shape = 'u32[]', space=smem, size = 0x4, offset = 0x4, fixed_abs, tag = 'smem constant byte address 0x4 - core index']
  #allocation1 [shape = 'u32[144,128]{1,0:T(1,128)}', space=vmem, size = 0x12000, scoped, tag = 'internal scratch']
  %s0 = inlined_call_operand.vmem [shape: f32[8,2,96], index: 0, kind: input, shape index: {}]
  %s1 = inlined_call_operand.vmem [shape: f32[2,8,64], index: 1, kind: input, shape index: {}]
  %s2 = inlined_call_operand.vmem [shape: f32[2,8,32], index: 2, kind: input, shape index: {}]
  %s3 = inlined_call_operand.vmem [shape: f32[2,8], index: 3, kind: input, shape index: {}]
  %s4 = inlined_call_operand.vmem [shape: f32[2,32], index: 4, kind: input, shape index: {}]
  %s5 = inlined_call_operand.vmem [shape: f32[32,128], index: 5, kind: input, shape index: {}]
  %s6 = inlined_call_operand.vmem [shape: f32[1,128], index: 6, kind: input, shape index: {}]
  %s7 = inlined_call_operand.vmem [shape: f32[1,32], index: 7, kind: input, shape index: {}]
  %s8 = inlined_call_operand.vmem [shape: f32[64,96], index: 8, kind: input, shape index: {}]
  %s9 = inlined_call_operand.vmem [shape: f32[8,2,32], index: 9, kind: output, shape index: {0}]
  %s10 = inlined_call_operand.vmem [shape: f32[8,2,64], index: 10, kind: output, shape index: {1}]
  %s11 = inlined_call_operand.hbm [shape: f32[2,32], index: 11, kind: output, shape index: {2}]
  %12 = xla_tuple %s9, %s10, %s11
  %s13 = sld [smem:[#allocation0]]
  $region62: #{decoder_forward.1} parent=0
    _
  %s15 = ssub.s32 1, %s13
  %s16 = scalar_select 0, %s15, %s13
  $region1: #{decoder_forward.1} parent=0
    #allocation2 [shape = 'u8[1024]{0}', space=vmem, size = 0x400, scoped, tag = 'output window, operand 2, single buffered']
    #allocation3 [shape = 's32[1]{0}', space=sflag, size = 0x4, scoped, tag = 'scoped memory for decoder_forward.1']
    %17 = vsyncpa [#allocation3], 0
    // Predicated region
    $region2: #{decoder_forward.1} parent=1 // pred_check
      _
    $region3: #{decoder_forward.1} parent=1 // pred_check_branch
      %19 = sbr.rel (0) target = $region5
    $region4: #{decoder_forward.1} parent=1 // pred_region
      _
    $region5: #{decoder_forward.1} parent=1 // pred_fallthru
      _
    // Predicated region
    $region6: #{decoder_forward.1} parent=1 // pred_check
      _
    $region7: #{decoder_forward.1} parent=1 // pred_check_branch
      %21 = sbr.rel (0) target = $region9
    $region8: #{decoder_forward.1} parent=1 // pred_region
      _
    $region9: #{decoder_forward.1} parent=1 // pred_fallthru
      _
    // Predicated region
    $region10: #{decoder_forward.1} parent=1 // pred_check
      _
    $region11: #{decoder_forward.1} parent=1 // pred_check_branch
      %23 = sbr.rel (0) target = $region13
    $region12: #{decoder_forward.1} parent=1 // pred_region
      _
    $region13: #{decoder_forward.1} parent=1 // pred_fallthru
      _
    // Predicated region
    $region14: #{decoder_forward.1} parent=1 // pred_check
      _
    $region15: #{decoder_forward.1} parent=1 // pred_check_branch
      %25 = sbr.rel (0) target = $region17
    $region16: #{decoder_forward.1} parent=1 // pred_region
      _
    $region17: #{decoder_forward.1} parent=1 // pred_fallthru
      _
    // Predicated region
    $region18: #{decoder_forward.1} parent=1 // pred_check
      _
    $region19: #{decoder_forward.1} parent=1 // pred_check_branch
      %27 = sbr.rel (0) target = $region21
    $region20: #{decoder_forward.1} parent=1 // pred_region
      _
    $region21: #{decoder_forward.1} parent=1 // pred_fallthru
      _
    // Predicated region
    $region22: #{decoder_forward.1} parent=1 // pred_check
      _
    $region23: #{decoder_forward.1} parent=1 // pred_check_branch
      %29 = sbr.rel (0) target = $region25
    $region24: #{decoder_forward.1} parent=1 // pred_region
      _
    $region25: #{decoder_forward.1} parent=1 // pred_fallthru
      _
    // Predicated region
    $region26: #{decoder_forward.1} parent=1 // pred_check
      _
    $region27: #{decoder_forward.1} parent=1 // pred_check_branch
      %31 = sbr.rel (0) target = $region29
    $region28: #{decoder_forward.1} parent=1 // pred_region
      _
    $region29: #{decoder_forward.1} parent=1 // pred_fallthru
      _
    // Predicated region
    $region30: #{decoder_forward.1} parent=1 // pred_check
      _
    $region31: #{decoder_forward.1} parent=1 // pred_check_branch
      %33 = sbr.rel (0) target = $region33
    $region32: #{decoder_forward.1} parent=1 // pred_region
      _
    $region33: #{decoder_forward.1} parent=1 // pred_fallthru
      _
    // Predicated region
    $region34: #{decoder_forward.1} parent=1 // pred_check
      _
    $region35: #{decoder_forward.1} parent=1 // pred_check_branch
      %35 = sbr.rel (0) target = $region37
    $region36: #{decoder_forward.1} parent=1 // pred_region
      _
    $region37: #{decoder_forward.1} parent=1 // pred_fallthru
      _
    %v36 = vld [vmem:[%s1] sm:$0xff]
    %v37 = vld [vmem:[%s1 + $0x8] sm:$0xff]
    %v38 = vld [vmem:[%s2] sm:$0xff]
    %v39 = vld [vmem:[%s2 + $0x8] sm:$0xff]
    %v40 = vld [vmem:[%s5] sm:$0xff]
    %v41 = vld [vmem:[%s5 + $0x8] sm:$0xff]
    %v42 = vld [vmem:[%s5 + $0x10] sm:$0xff]
    %v43 = vld [vmem:[%s5 + $0x18] sm:$0xff]
    %v44 = vld [vmem:[%s6] sm:$0x1]
    %v45 = vld [vmem:[%s7] sm:$0x1]
    %v46 = vld [vmem:[%s8] sm:$0xff]
    %v47 = vld [vmem:[%s8 + $0x8] sm:$0xff]
    %v48 = vld [vmem:[%s8 + $0x10] sm:$0xff]
    %v49 = vld [vmem:[%s8 + $0x18] sm:$0xff]
    %v50 = vld [vmem:[%s8 + $0x20] sm:$0xff]
    %v51 = vld [vmem:[%s8 + $0x28] sm:$0xff]
    %v52 = vld [vmem:[%s8 + $0x30] sm:$0xff]
    %v53 = vld [vmem:[%s8 + $0x38] sm:$0xff]
    %v54 = vld [vmem:[%s3] sm:$0x3]
    %vm55 = vcmp.gt.f32.partialorder %v54, 0.0
    %v56 = vsel %vm55, 0.0, -1e+30
    %v57 = vld [vmem:[%s4] sm:$0x3]
    %v59 = vlaneseq
    %v60 = vshrl.u32 %v59, 7
    %v61 = vsub.s32 0, %v60
    %v62 = vrot.slane %v44, %v61
    %vm64 = vcmask 261120
    %v66 = vsel %vm64, %v57, 0
    %68 = vmatprep.subr.mxu0 0.0
    %69 = vmatpush1.msra.mxu0 %v40
    %70 = vmatprep.subr.mxu0 0.0
    %71 = vmatpush1.msra.mxu0 %v41
    %72 = vmatprep.subr.mxu0 0.0
    %73 = vmatpush1.msra.mxu0 %v42
    %74 = vmatprep.subr.mxu0 0.0
    %75 = vmatpush1.msra.mxu0 %v43
    %76 = vmatprep.subr.mxu0 0.0
    %77 = vmatpush1.msra.mxu0 0.0
    %78 = vmatprep.subr.mxu0 0.0
    %79 = vmatpush1.msra.mxu0 0.0
    %80 = vmatprep.subr.mxu0 0.0
    %81 = vmatpush1.msra.mxu0 0.0
    %82 = vmatprep.subr.mxu0 0.0
    %83 = vmatpush1.msra.mxu0 0.0
    %84 = vmatprep.subr.mxu0 0.0
    %85 = vmatpush1.msra.mxu0 0.0
    %86 = vmatprep.subr.mxu0 0.0
    %87 = vmatpush1.msra.mxu0 0.0
    %88 = vmatprep.subr.mxu0 0.0
    %89 = vmatpush1.msra.mxu0 0.0
    %90 = vmatprep.subr.mxu0 0.0
    %91 = vmatpush1.msra.mxu0 0.0
    %92 = vmatprep.subr.mxu0 0.0
    %93 = vmatpush1.msra.mxu0 0.0
    %94 = vmatprep.subr.mxu0 0.0
    %95 = vmatpush1.msra.mxu0 0.0
    %96 = vmatprep.subr.mxu0 0.0
    %97 = vmatpush1.msra.mxu0 0.0
    %98 = vmatprep.subr.mxu0 0.0
    %99 = vmatpush1.msra.mxu0 0.0
    %100 = vmatprep.subr.mxu0 0.0
    %101 = vmatpush1.msra.mxu0 0.0
    %102 = vmatprep.subr.mxu0 0.0
    %103 = vmatpush1.msra.mxu0 0.0
    %104 = vmatprep.subr.mxu0 0.0
    %105 = vmatpush1.msra.mxu0 0.0
    %106 = vmatprep.subr.mxu0 0.0
    %107 = vmatpush1.msra.mxu0 0.0
    %108 = vmatprep.subr.mxu0 0.0
    %109 = vmatpush1.msra.mxu0 0.0
    %110 = vmatprep.subr.mxu0 0.0
    %111 = vmatpush1.msra.mxu0 0.0
    %112 = vmatprep.subr.mxu0 0.0
    %113 = vmatpush1.msra.mxu0 0.0
    %114 = vmatprep.subr.mxu0 0.0
    %115 = vmatpush1.msra.mxu0 0.0
    %116 = vmatprep.subr.mxu0 0.0
    %117 = vmatpush1.msra.mxu0 0.0
    %118 = vmatprep.subr.mxu0 0.0
    %119 = vmatpush1.msra.mxu0 0.0
    %120 = vmatprep.subr.mxu0 0.0
    %121 = vmatpush1.msra.mxu0 0.0
    %122 = vmatprep.subr.mxu0 0.0
    %123 = vmatpush1.msra.mxu0 0.0
    %124 = vmatprep.subr.mxu0 0.0
    %125 = vmatpush1.msra.mxu0 0.0
    %126 = vmatprep.subr.mxu0 0.0
    %127 = vmatpush1.msra.mxu0 0.0
    %128 = vmatprep.subr.mxu0 0.0
    %129 = vmatpush1.msra.mxu0 0.0
    %130 = vmatprep.subr.mxu0 0.0
    %131 = vmatpush1.msra.mxu0 0.0
    %132 = vmatprep.mubr.f32.mxu0 0.0
    %133 = vmatmul.mubr.f32.gmra.mrb[0].mxu0 %v66
    %v134 = vpop.f32.mrb[0].mxu0
    %v135 = vadd.f32 %v62, %v134
    %v136 = vpop.f32.mrb[0].mxu0
    %137 = vdwg.mxu0
    %v140 = vunpack.c.l.s4 1966171168
    %v141 = vunpack.c.0.s8 %v140
    %v142 = vlaneseq
    %v143 = vshrl.u32 %v142, 7
    %v144 = vsub.s32 %v141, %v143
    %v145 = vrot.slane %v135, %v144
    %v146 = vcombine.high %v145, %v145
    %v148 = vunpack.c.l.s4 1966171168
    %v149 = vunpack.c.0.s8 %v148
    %v150 = vlaneseq
    %v151 = vshrl.u32 %v150, 7
    %v152 = vsub.s32 %v149, %v151
    %v153 = vrot.slane %v145, %v152
    %v155 = vunpack.c.l.s4 1966171168
    %v156 = vunpack.c.0.s8 %v155
    %v157 = vlaneseq
    %v158 = vshrl.u32 %v157, 7
    %v159 = vsub.s32 %v156, %v158
    %v160 = vrot.slane %v146, %v159
    %v161 = vlaneseq
    %v162 = vshrl.u32 %v161, 7
    %v163 = vsub.s32 0, %v162
    %v164 = vrot.slane %v153, %v163
    %v165 = vlaneseq
    %v166 = vshrl.u32 %v165, 7
    %v167 = vsub.s32 0, %v166
    %v168 = vrot.slane %v160, %v167
    %v171 = vadd.f32 %v164, %v38
    %v172 = vadd.f32 %v168, %v39
    %v173 = vtanh.pop %v171
    %v174 = vtanh.pop %v172
    %v176 = vlaneseq
    %v177 = vshrl.u32 %v176, 7
    %v178 = vsub.s32 0, %v177
    %v179 = vrot.slane %v45, %v178
    %v181 = vmul.f32 %v173, %v179
    %v182 = vmul.f32 %v174, %v179
    %v183 = vsel %vm64, %v181, 0.0
    %184 = vadd.xlane.f32.xlu0 %v183
    %v185 = vpop.xlane.xlu0 %184
    %v186 = vsel %vm64, %v182, 0.0
    %187 = vadd.xlane.f32.xlu0 %v186
    %v188 = vpop.xlane.xlu0 %187
    %v190 = vlaneseq
    %v191 = vshrl.u32 %v190, 7
    %v192 = vsub.s32 0, %v191
    %v193 = vrot.slane %v56, %v192
    %195 = vbcast.lane.b32.xlu0 %v193, 256
    %v196 = vpop.permute.xlu0 %195
    %v197 = vlaneseq
    %v198 = vshrl.u32 %v197, 7
    %v199 = vsub.s32 1, %v198
    %v200 = vrot.slane %v56, %v199
    %202 = vbcast.lane.b32.xlu0 %v200, 256
    %v203 = vpop.permute.xlu0 %202
    %v206 = vadd.f32 %v185, %v196
    %v207 = vadd.f32 %v188, %v203
    %210 = vset.pattern.permute.xlu0 0
    %211 = vperm.xlu0 %210, %v206
    %v212 = vpop.permute.xlu0 %211
    %213 = vset.pattern.permute.xlu0 0
    %214 = vperm.xlu0 %213, %v207
    %v215 = vpop.permute.xlu0 %214
    %v216 = vlaneseq
    %v217 = vand.u32 %v216, 127
    %v218 = vlaneseq
    %v219 = vshrl.u32 %v218, 7
    %v220 = vsub.s32 %v217, %v219
    %v221 = vrot.slane %v212, %v220
    %v222 = vlaneseq
    %v223 = vshrl.u32 %v222, 7
    %v224 = vsub.s32 %v217, %v223
    %v225 = vrot.slane %v215, %v224
    %vm226 = vcmask 1041409
    %v227 = vsel %vm226, %v225, %v221
    %vm229 = vcmask 58368
    %v230 = vsel %vm229, %v227, -inf
    %231 = vmax.xlane.f32.xlu0 %v230
    %v232 = vpop.xlane.xlu0 %231
    %v234 = vlaneseq
    %v235 = vshrl.u32 %v234, 7
    %v236 = vsub.s32 0, %v235
    %v237 = vrot.slane %v232, %v236
    %v238 = vlaneseq
    %v239 = vshrl.u32 %v238, 7
    %v240 = vsub.s32 1, %v239
    %v241 = vrot.slane %v232, %v240
    %v244 = vsub.f32 %v206, %v237
    %v245 = vsub.f32 %v207, %v241
    %v246 = vmul.f32 %v244, 1.442695
    %v247 = vpow.pop %v246
    %v248 = vmul.f32 %v245, 1.442695
    %v249 = vpow.pop %v248
    %252 = vset.pattern.permute.xlu0 0
    %253 = vperm.xlu0 %252, %v247
    %v254 = vpop.permute.xlu0 %253
    %255 = vset.pattern.permute.xlu0 0
    %256 = vperm.xlu0 %255, %v249
    %v257 = vpop.permute.xlu0 %256
    %v258 = vlaneseq
    %v259 = vshrl.u32 %v258, 7
    %v260 = vsub.s32 %v217, %v259
    %v261 = vrot.slane %v254, %v260
    %v262 = vlaneseq
    %v263 = vshrl.u32 %v262, 7
    %v264 = vsub.s32 %v217, %v263
    %v265 = vrot.slane %v257, %v264
    %v266 = vsel %vm226, %v265, %v261
    %v268 = vsel %vm229, %v266, 0.0
    %269 = vadd.xlane.f32.xlu0 %v268
    %v270 = vpop.xlane.xlu0 %269
    %v272 = vlaneseq
    %v273 = vshrl.u32 %v272, 7
    %v274 = vsub.s32 0, %v273
    %v275 = vrot.slane %v270, %v274
    %v276 = vlaneseq
    %v277 = vshrl.u32 %v276, 7
    %v278 = vsub.s32 1, %v277
    %v279 = vrot.slane %v270, %v278
    %v282 = vrcp.pop %v275
    %v283 = vmul.f32 %v247, %v282
    %v284 = vrcp.pop %v279
    %v285 = vmul.f32 %v249, %v284
    %287 = vset.pattern.permute.xlu0 0
    %288 = vperm.xlu0 %287, %v283
    %v289 = vpop.permute.xlu0 %288
    %292 = vset.pattern.permute.xlu0 0
    %293 = vperm.xlu0 %292, %v285
    %v294 = vpop.permute.xlu0 %293
    %v296 = vmul.f32 %v289, %v36
    %v297 = vmul.f32 %v294, %v37
    %vm298 = vcmask 523264
    %v299 = vsel %vm298, %v296, 0.0
    %v300 = vrot.slane %v299, 4
    %v301 = vadd.f32 %v299, %v300
    %v302 = vrot.slane %v301, 2
    %v303 = vadd.f32 %v301, %v302
    %v304 = vrot.slane %v303, 1
    %v305 = vadd.f32 %v303, %v304
    %v306 = vsel %vm298, %v297, 0.0
    %v307 = vrot.slane %v306, 4
    %v308 = vadd.f32 %v306, %v307
    %v309 = vrot.slane %v308, 2
    %v310 = vadd.f32 %v308, %v309
    %v311 = vrot.slane %v310, 1
    %v312 = vadd.f32 %v310, %v311
    %v313 = vld [vmem:[%s0] sm:$0x3]
    %v316 = vsel %vm226, %v312, %v305
    %v317 = vsel %vm298, %v316, 0
    %319 = vmatprep.subr.mxu0 0.0
    %320 = vmatpush1.msra.mxu0 %v46
    %321 = vmatprep.subr.mxu0 0.0
    %322 = vmatpush1.msra.mxu0 %v47
    %323 = vmatprep.subr.mxu0 0.0
    %324 = vmatpush1.msra.mxu0 %v48
    %325 = vmatprep.subr.mxu0 0.0
    %326 = vmatpush1.msra.mxu0 %v49
    %327 = vmatprep.subr.mxu0 0.0
    %328 = vmatpush1.msra.mxu0 %v50
    %329 = vmatprep.subr.mxu0 0.0
    %330 = vmatpush1.msra.mxu0 %v51
    %331 = vmatprep.subr.mxu0 0.0
    %332 = vmatpush1.msra.mxu0 %v52
    %333 = vmatprep.subr.mxu0 0.0
    %334 = vmatpush1.msra.mxu0 %v53
    %335 = vmatprep.subr.mxu0 0.0
    %336 = vmatpush1.msra.mxu0 0.0
    %337 = vmatprep.subr.mxu0 0.0
    %338 = vmatpush1.msra.mxu0 0.0
    %339 = vmatprep.subr.mxu0 0.0
    %340 = vmatpush1.msra.mxu0 0.0
    %341 = vmatprep.subr.mxu0 0.0
    %342 = vmatpush1.msra.mxu0 0.0
    %343 = vmatprep.subr.mxu0 0.0
    %344 = vmatpush1.msra.mxu0 0.0
    %345 = vmatprep.subr.mxu0 0.0
    %346 = vmatpush1.msra.mxu0 0.0
    %347 = vmatprep.subr.mxu0 0.0
    %348 = vmatpush1.msra.mxu0 0.0
    %349 = vmatprep.subr.mxu0 0.0
    %350 = vmatpush1.msra.mxu0 0.0
    %351 = vmatprep.subr.mxu0 0.0
    %352 = vmatpush1.msra.mxu0 0.0
    %353 = vmatprep.subr.mxu0 0.0
    %354 = vmatpush1.msra.mxu0 0.0
    %355 = vmatprep.subr.mxu0 0.0
    %356 = vmatpush1.msra.mxu0 0.0
    %357 = vmatprep.subr.mxu0 0.0
    %358 = vmatpush1.msra.mxu0 0.0
    %359 = vmatprep.subr.mxu0 0.0
    %360 = vmatpush1.msra.mxu0 0.0
    %361 = vmatprep.subr.mxu0 0.0
    %362 = vmatpush1.msra.mxu0 0.0
    %363 = vmatprep.subr.mxu0 0.0
    %364 = vmatpush1.msra.mxu0 0.0
    %365 = vmatprep.subr.mxu0 0.0
    %366 = vmatpush1.msra.mxu0 0.0
    %367 = vmatprep.subr.mxu0 0.0
    %368 = vmatpush1.msra.mxu0 0.0
    %369 = vmatprep.subr.mxu0 0.0
    %370 = vmatpush1.msra.mxu0 0.0
    %371 = vmatprep.subr.mxu0 0.0
    %372 = vmatpush1.msra.mxu0 0.0
    %373 = vmatprep.subr.mxu0 0.0
    %374 = vmatpush1.msra.mxu0 0.0
    %375 = vmatprep.subr.mxu0 0.0
    %376 = vmatpush1.msra.mxu0 0.0
    %377 = vmatprep.subr.mxu0 0.0
    %378 = vmatpush1.msra.mxu0 0.0
    %379 = vmatprep.subr.mxu0 0.0
    %380 = vmatpush1.msra.mxu0 0.0
    %381 = vmatprep.subr.mxu0 0.0
    %382 = vmatpush1.msra.mxu0 0.0
    %383 = vmatprep.mubr.f32.mxu0 0.0
    %384 = vmatmul.mubr.f32.gmra.mrb[0].mxu0 %v317
    %v385 = vpop.f32.mrb[0].mxu0
    %v386 = vadd.f32 0.0, %v385
    %v387 = vpop.f32.mrb[0].mxu0
    %388 = vdwg.mxu0
    %v389 = vadd.f32 %v313, %v386
    %390 = vrot.lane.b32.xlu0 %v135, 96
    %v391 = vpop.permute.xlu0 %390
    %v393 = vadd.f32 %v389, %v391
    %v394 = vxor.u32 %v393, 2147483648
    %v395 = vmul.f32 %v394, 1.442695
    %v396 = vpow.pop %v395
    %v397 = vadd.f32 %v396, 1.0
    %v398 = vrcp.pop %v397
    %v399 = vmul.f32 1.0, %v398
    %400 = vrot.lane.b32.xlu0 %v135, 32
    %v401 = vpop.permute.xlu0 %400
    %v403 = vmul.f32 %v399, %v401
    %405 = vrot.lane.b32.xlu0 %v403, 64
    %v406 = vpop.permute.xlu0 %405
    %v408 = vadd.f32 %v389, %v406
    %v409 = vtanh.pop %v408
    %v410 = vsub.f32 1.0, %v399
    %412 = vrot.lane.b32.xlu0 %v409, 96
    %v413 = vpop.permute.xlu0 %412
    %v415 = vmul.f32 %v410, %v413
    %416 = vrot.lane.b32.xlu0 %v57, 32
    %v417 = vpop.permute.xlu0 %416
    %v419 = vmul.f32 %v399, %v417
    %v420 = vadd.f32 %v415, %v419
    %422 = vrot.lane.b32.xlu0 %v420, 96
    %v423 = vpop.permute.xlu0 %422
    %vm425 = vcmask 254976
    %426 = vst.msk [vmem:[%s9] sm:$0x3] %vm425, %v423
    %vm428 = vcmask 517120
    %429 = vst.msk [vmem:[%s10] sm:$0x3] %vm428, %v316
    %v430 = vsel %vm64, %v423, 0
    %432 = vmatprep.subr.mxu0 0.0
    %433 = vmatpush1.msra.mxu0 %v40
    %434 = vmatprep.subr.mxu0 0.0
    %435 = vmatpush1.msra.mxu0 %v41
    %436 = vmatprep.subr.mxu0 0.0
    %437 = vmatpush1.msra.mxu0 %v42
    %438 = vmatprep.subr.mxu0 0.0
    %439 = vmatpush1.msra.mxu0 %v43
    %440 = vmatprep.subr.mxu0 0.0
    %441 = vmatpush1.msra.mxu0 0.0
    %442 = vmatprep.subr.mxu0 0.0
    %443 = vmatpush1.msra.mxu0 0.0
    %444 = vmatprep.subr.mxu0 0.0
    %445 = vmatpush1.msra.mxu0 0.0
    %446 = vmatprep.subr.mxu0 0.0
    %447 = vmatpush1.msra.mxu0 0.0
    %448 = vmatprep.subr.mxu0 0.0
    %449 = vmatpush1.msra.mxu0 0.0
    %450 = vmatprep.subr.mxu0 0.0
    %451 = vmatpush1.msra.mxu0 0.0
    %452 = vmatprep.subr.mxu0 0.0
    %453 = vmatpush1.msra.mxu0 0.0
    %454 = vmatprep.subr.mxu0 0.0
    %455 = vmatpush1.msra.mxu0 0.0
    %456 = vmatprep.subr.mxu0 0.0
    %457 = vmatpush1.msra.mxu0 0.0
    %458 = vmatprep.subr.mxu0 0.0
    %459 = vmatpush1.msra.mxu0 0.0
    %460 = vmatprep.subr.mxu0 0.0
    %461 = vmatpush1.msra.mxu0 0.0
    %462 = vmatprep.subr.mxu0 0.0
    %463 = vmatpush1.msra.mxu0 0.0
    %464 = vmatprep.subr.mxu0 0.0
    %465 = vmatpush1.msra.mxu0 0.0
    %466 = vmatprep.subr.mxu0 0.0
    %467 = vmatpush1.msra.mxu0 0.0
    %468 = vmatprep.subr.mxu0 0.0
    %469 = vmatpush1.msra.mxu0 0.0
    %470 = vmatprep.subr.mxu0 0.0
    %471 = vmatpush1.msra.mxu0 0.0
    %472 = vmatprep.subr.mxu0 0.0
    %473 = vmatpush1.msra.mxu0 0.0
    %474 = vmatprep.subr.mxu0 0.0
    %475 = vmatpush1.msra.mxu0 0.0
    %476 = vmatprep.subr.mxu0 0.0
    %477 = vmatpush1.msra.mxu0 0.0
    %478 = vmatprep.subr.mxu0 0.0
    %479 = vmatpush1.msra.mxu0 0.0
    %480 = vmatprep.subr.mxu0 0.0
    %481 = vmatpush1.msra.mxu0 0.0
    %482 = vmatprep.subr.mxu0 0.0
    %483 = vmatpush1.msra.mxu0 0.0
    %484 = vmatprep.subr.mxu0 0.0
    %485 = vmatpush1.msra.mxu0 0.0
    %486 = vmatprep.subr.mxu0 0.0
    %487 = vmatpush1.msra.mxu0 0.0
    %488 = vmatprep.subr.mxu0 0.0
    %489 = vmatpush1.msra.mxu0 0.0
    %490 = vmatprep.subr.mxu0 0.0
    %491 = vmatpush1.msra.mxu0 0.0
    %492 = vmatprep.subr.mxu0 0.0
    %493 = vmatpush1.msra.mxu0 0.0
    %494 = vmatprep.subr.mxu0 0.0
    %495 = vmatpush1.msra.mxu0 0.0
    %496 = vmatprep.mubr.f32.mxu0 0.0
    %497 = vmatmul.mubr.f32.gmra.mrb[0].mxu0 %v430
    %v498 = vpop.f32.mrb[0].mxu0
    %v499 = vadd.f32 %v62, %v498
    %v500 = vpop.f32.mrb[0].mxu0
    %501 = vdwg.mxu0
    %v504 = vunpack.c.l.s4 1966171168
    %v505 = vunpack.c.0.s8 %v504
    %v506 = vlaneseq
    %v507 = vshrl.u32 %v506, 7
    %v508 = vsub.s32 %v505, %v507
    %v509 = vrot.slane %v499, %v508
    %v510 = vcombine.high %v509, %v509
    %v512 = vunpack.c.l.s4 1966171168
    %v513 = vunpack.c.0.s8 %v512
    %v514 = vlaneseq
    %v515 = vshrl.u32 %v514, 7
    %v516 = vsub.s32 %v513, %v515
    %v517 = vrot.slane %v509, %v516
    %v519 = vunpack.c.l.s4 1966171168
    %v520 = vunpack.c.0.s8 %v519
    %v521 = vlaneseq
    %v522 = vshrl.u32 %v521, 7
    %v523 = vsub.s32 %v520, %v522
    %v524 = vrot.slane %v510, %v523
    %v525 = vlaneseq
    %v526 = vshrl.u32 %v525, 7
    %v527 = vsub.s32 0, %v526
    %v528 = vrot.slane %v517, %v527
    %v529 = vlaneseq
    %v530 = vshrl.u32 %v529, 7
    %v531 = vsub.s32 0, %v530
    %v532 = vrot.slane %v524, %v531
    %v535 = vadd.f32 %v528, %v38
    %v536 = vadd.f32 %v532, %v39
    %v537 = vtanh.pop %v535
    %v538 = vtanh.pop %v536
    %v539 = vmul.f32 %v537, %v179
    %v540 = vmul.f32 %v538, %v179
    %v541 = vsel %vm64, %v539, 0.0
    %542 = vadd.xlane.f32.xlu0 %v541
    %v543 = vpop.xlane.xlu0 %542
    %v544 = vsel %vm64, %v540, 0.0
    %545 = vadd.xlane.f32.xlu0 %v544
    %v546 = vpop.xlane.xlu0 %545
    %v547 = vadd.f32 %v543, %v196
    %v548 = vadd.f32 %v546, %v203
    %551 = vset.pattern.permute.xlu0 0
    %552 = vperm.xlu0 %551, %v547
    %v553 = vpop.permute.xlu0 %552
    %554 = vset.pattern.permute.xlu0 0
    %555 = vperm.xlu0 %554, %v548
    %v556 = vpop.permute.xlu0 %555
    %v557 = vlaneseq
    %v558 = vshrl.u32 %v557, 7
    %v559 = vsub.s32 %v217, %v558
    %v560 = vrot.slane %v553, %v559
    %v561 = vlaneseq
    %v562 = vshrl.u32 %v561, 7
    %v563 = vsub.s32 %v217, %v562
    %v564 = vrot.slane %v556, %v563
    %v565 = vsel %vm226, %v564, %v560
    %v567 = vsel %vm229, %v565, -inf
    %568 = vmax.xlane.f32.xlu0 %v567
    %v569 = vpop.xlane.xlu0 %568
    %v571 = vlaneseq
    %v572 = vshrl.u32 %v571, 7
    %v573 = vsub.s32 0, %v572
    %v574 = vrot.slane %v569, %v573
    %v575 = vlaneseq
    %v576 = vshrl.u32 %v575, 7
    %v577 = vsub.s32 1, %v576
    %v578 = vrot.slane %v569, %v577
    %v581 = vsub.f32 %v547, %v574
    %v582 = vsub.f32 %v548, %v578
    %v583 = vmul.f32 %v581, 1.442695
    %v584 = vpow.pop %v583
    %v585 = vmul.f32 %v582, 1.442695
    %v586 = vpow.pop %v585
    %589 = vset.pattern.permute.xlu0 0
    %590 = vperm.xlu0 %589, %v584
    %v591 = vpop.permute.xlu0 %590
    %592 = vset.pattern.permute.xlu0 0
    %593 = vperm.xlu0 %592, %v586
    %v594 = vpop.permute.xlu0 %593
    %v595 = vlaneseq
    %v596 = vshrl.u32 %v595, 7
    %v597 = vsub.s32 %v217, %v596
    %v598 = vrot.slane %v591, %v597
    %v599 = vlaneseq
    %v600 = vshrl.u32 %v599, 7
    %v601 = vsub.s32 %v217, %v600
    %v602 = vrot.slane %v594, %v601
    %v603 = vsel %vm226, %v602, %v598
    %v605 = vsel %vm229, %v603, 0.0
    %606 = vadd.xlane.f32.xlu0 %v605
    %v607 = vpop.xlane.xlu0 %606
    %v609 = vlaneseq
    %v610 = vshrl.u32 %v609, 7
    %v611 = vsub.s32 0, %v610
    %v612 = vrot.slane %v607, %v611
    %v613 = vlaneseq
    %v614 = vshrl.u32 %v613, 7
    %v615 = vsub.s32 1, %v614
    %v616 = vrot.slane %v607, %v615
    %v619 = vrcp.pop %v612
    %v620 = vmul.f32 %v584, %v619
    %v621 = vrcp.pop %v616
    %v622 = vmul.f32 %v586, %v621
    %624 = vset.pattern.permute.xlu0 0
    %625 = vperm.xlu0 %624, %v620
    %v626 = vpop.permute.xlu0 %625
    %629 = vset.pattern.permute.xlu0 0
    %630 = vperm.xlu0 %629, %v622
    %v631 = vpop.permute.xlu0 %630
    %v633 = vmul.f32 %v626, %v36
    %v634 = vmul.f32 %v631, %v37
    %v635 = vsel %vm298, %v633, 0.0
    %v636 = vrot.slane %v635, 4
    %v637 = vadd.f32 %v635, %v636
    %v638 = vrot.slane %v637, 2
    %v639 = vadd.f32 %v637, %v638
    %v640 = vrot.slane %v639, 1
    %v641 = vadd.f32 %v639, %v640
    %v642 = vsel %vm298, %v634, 0.0
    %v643 = vrot.slane %v642, 4
    %v644 = vadd.f32 %v642, %v643
    %v645 = vrot.slane %v644, 2
    %v646 = vadd.f32 %v644, %v645
    %v647 = vrot.slane %v646, 1
    %v648 = vadd.f32 %v646, %v647
    %s649 = scalar_lea.vmem %s0, 2
    %v650 = vld [vmem:[%s649] sm:$0x3]
    %v653 = vsel %vm226, %v648, %v641
    %v654 = vsel %vm298, %v653, 0
    %656 = vmatprep.subr.mxu0 0.0
    %657 = vmatpush1.msra.mxu0 %v46
    %658 = vmatprep.subr.mxu0 0.0
    %659 = vmatpush1.msra.mxu0 %v47
    %660 = vmatprep.subr.mxu0 0.0
    %661 = vmatpush1.msra.mxu0 %v48
    %662 = vmatprep.subr.mxu0 0.0
    %663 = vmatpush1.msra.mxu0 %v49
    %664 = vmatprep.subr.mxu0 0.0
    %665 = vmatpush1.msra.mxu0 %v50
    %666 = vmatprep.subr.mxu0 0.0
    %667 = vmatpush1.msra.mxu0 %v51
    %668 = vmatprep.subr.mxu0 0.0
    %669 = vmatpush1.msra.mxu0 %v52
    %670 = vmatprep.subr.mxu0 0.0
    %671 = vmatpush1.msra.mxu0 %v53
    %672 = vmatprep.subr.mxu0 0.0
    %673 = vmatpush1.msra.mxu0 0.0
    %674 = vmatprep.subr.mxu0 0.0
    %675 = vmatpush1.msra.mxu0 0.0
    %676 = vmatprep.subr.mxu0 0.0
    %677 = vmatpush1.msra.mxu0 0.0
    %678 = vmatprep.subr.mxu0 0.0
    %679 = vmatpush1.msra.mxu0 0.0
    %680 = vmatprep.subr.mxu0 0.0
    %681 = vmatpush1.msra.mxu0 0.0
    %682 = vmatprep.subr.mxu0 0.0
    %683 = vmatpush1.msra.mxu0 0.0
    %684 = vmatprep.subr.mxu0 0.0
    %685 = vmatpush1.msra.mxu0 0.0
    %686 = vmatprep.subr.mxu0 0.0
    %687 = vmatpush1.msra.mxu0 0.0
    %688 = vmatprep.subr.mxu0 0.0
    %689 = vmatpush1.msra.mxu0 0.0
    %690 = vmatprep.subr.mxu0 0.0
    %691 = vmatpush1.msra.mxu0 0.0
    %692 = vmatprep.subr.mxu0 0.0
    %693 = vmatpush1.msra.mxu0 0.0
    %694 = vmatprep.subr.mxu0 0.0
    %695 = vmatpush1.msra.mxu0 0.0
    %696 = vmatprep.subr.mxu0 0.0
    %697 = vmatpush1.msra.mxu0 0.0
    %698 = vmatprep.subr.mxu0 0.0
    %699 = vmatpush1.msra.mxu0 0.0
    %700 = vmatprep.subr.mxu0 0.0
    %701 = vmatpush1.msra.mxu0 0.0
    %702 = vmatprep.subr.mxu0 0.0
    %703 = vmatpush1.msra.mxu0 0.0
    %704 = vmatprep.subr.mxu0 0.0
    %705 = vmatpush1.msra.mxu0 0.0
    %706 = vmatprep.subr.mxu0 0.0
    %707 = vmatpush1.msra.mxu0 0.0
    %708 = vmatprep.subr.mxu0 0.0
    %709 = vmatpush1.msra.mxu0 0.0
    %710 = vmatprep.subr.mxu0 0.0
    %711 = vmatpush1.msra.mxu0 0.0
    %712 = vmatprep.subr.mxu0 0.0
    %713 = vmatpush1.msra.mxu0 0.0
    %714 = vmatprep.subr.mxu0 0.0
    %715 = vmatpush1.msra.mxu0 0.0
    %716 = vmatprep.subr.mxu0 0.0
    %717 = vmatpush1.msra.mxu0 0.0
    %718 = vmatprep.subr.mxu0 0.0
    %719 = vmatpush1.msra.mxu0 0.0
    %720 = vmatprep.mubr.f32.mxu0 0.0
    %721 = vmatmul.mubr.f32.gmra.mrb[0].mxu0 %v654
    %v722 = vpop.f32.mrb[0].mxu0
    %v723 = vadd.f32 0.0, %v722
    %v724 = vpop.f32.mrb[0].mxu0
    %725 = vdwg.mxu0
    %v726 = vadd.f32 %v650, %v723
    %727 = vrot.lane.b32.xlu0 %v499, 96
    %v728 = vpop.permute.xlu0 %727
    %v730 = vadd.f32 %v726, %v728
    %v731 = vxor.u32 %v730, 2147483648
    %v732 = vmul.f32 %v731, 1.442695
    %v733 = vpow.pop %v732
    %v734 = vadd.f32 %v733, 1.0
    %v735 = vrcp.pop %v734
    %v736 = vmul.f32 1.0, %v735
    %737 = vrot.lane.b32.xlu0 %v499, 32
    %v738 = vpop.permute.xlu0 %737
    %v740 = vmul.f32 %v736, %v738
    %742 = vrot.lane.b32.xlu0 %v740, 64
    %v743 = vpop.permute.xlu0 %742
    %v745 = vadd.f32 %v726, %v743
    %v746 = vtanh.pop %v745
    %v747 = vsub.f32 1.0, %v736
    %749 = vrot.lane.b32.xlu0 %v746, 96
    %v750 = vpop.permute.xlu0 %749
    %v752 = vmul.f32 %v747, %v750
    %v753 = vmul.f32 %v736, %v420
    %v754 = vadd.f32 %v752, %v753
    %756 = vrot.lane.b32.xlu0 %v754, 96
    %v757 = vpop.permute.xlu0 %756
    %s759 = scalar_lea.vmem %s9, 2
    %760 = vst.msk [vmem:[%s759] sm:$0x3] %vm425, %v757
    %s762 = scalar_lea.vmem %s10, 2
    %763 = vst.msk [vmem:[%s762] sm:$0x3] %vm428, %v653
    %v764 = vsel %vm64, %v757, 0
    %766 = vmatprep.subr.mxu0 0.0
    %767 = vmatpush1.msra.mxu0 %v40
    %768 = vmatprep.subr.mxu0 0.0
    %769 = vmatpush1.msra.mxu0 %v41
    %770 = vmatprep.subr.mxu0 0.0
    %771 = vmatpush1.msra.mxu0 %v42
    %772 = vmatprep.subr.mxu0 0.0
    %773 = vmatpush1.msra.mxu0 %v43
    %774 = vmatprep.subr.mxu0 0.0
    %775 = vmatpush1.msra.mxu0 0.0
    %776 = vmatprep.subr.mxu0 0.0
    %777 = vmatpush1.msra.mxu0 0.0
    %778 = vmatprep.subr.mxu0 0.0
    %779 = vmatpush1.msra.mxu0 0.0
    %780 = vmatprep.subr.mxu0 0.0
    %781 = vmatpush1.msra.mxu0 0.0
    %782 = vmatprep.subr.mxu0 0.0
    %783 = vmatpush1.msra.mxu0 0.0
    %784 = vmatprep.subr.mxu0 0.0
    %785 = vmatpush1.msra.mxu0 0.0
    %786 = vmatprep.subr.mxu0 0.0
    %787 = vmatpush1.msra.mxu0 0.0
    %788 = vmatprep.subr.mxu0 0.0
    %789 = vmatpush1.msra.mxu0 0.0
    %790 = vmatprep.subr.mxu0 0.0
    %791 = vmatpush1.msra.mxu0 0.0
    %792 = vmatprep.subr.mxu0 0.0
    %793 = vmatpush1.msra.mxu0 0.0
    %794 = vmatprep.subr.mxu0 0.0
    %795 = vmatpush1.msra.mxu0 0.0
    %796 = vmatprep.subr.mxu0 0.0
    %797 = vmatpush1.msra.mxu0 0.0
    %798 = vmatprep.subr.mxu0 0.0
    %799 = vmatpush1.msra.mxu0 0.0
    %800 = vmatprep.subr.mxu0 0.0
    %801 = vmatpush1.msra.mxu0 0.0
    %802 = vmatprep.subr.mxu0 0.0
    %803 = vmatpush1.msra.mxu0 0.0
    %804 = vmatprep.subr.mxu0 0.0
    %805 = vmatpush1.msra.mxu0 0.0
    %806 = vmatprep.subr.mxu0 0.0
    %807 = vmatpush1.msra.mxu0 0.0
    %808 = vmatprep.subr.mxu0 0.0
    %809 = vmatpush1.msra.mxu0 0.0
    %810 = vmatprep.subr.mxu0 0.0
    %811 = vmatpush1.msra.mxu0 0.0
    %812 = vmatprep.subr.mxu0 0.0
    %813 = vmatpush1.msra.mxu0 0.0
    %814 = vmatprep.subr.mxu0 0.0
    %815 = vmatpush1.msra.mxu0 0.0
    %816 = vmatprep.subr.mxu0 0.0
    %817 = vmatpush1.msra.mxu0 0.0
    %818 = vmatprep.subr.mxu0 0.0
    %819 = vmatpush1.msra.mxu0 0.0
    %820 = vmatprep.subr.mxu0 0.0
    %821 = vmatpush1.msra.mxu0 0.0
    %822 = vmatprep.subr.mxu0 0.0
    %823 = vmatpush1.msra.mxu0 0.0
    %824 = vmatprep.subr.mxu0 0.0
    %825 = vmatpush1.msra.mxu0 0.0
    %826 = vmatprep.subr.mxu0 0.0
    %827 = vmatpush1.msra.mxu0 0.0
    %828 = vmatprep.subr.mxu0 0.0
    %829 = vmatpush1.msra.mxu0 0.0
    %830 = vmatprep.mubr.f32.mxu0 0.0
    %831 = vmatmul.mubr.f32.gmra.mrb[0].mxu0 %v764
    %v832 = vpop.f32.mrb[0].mxu0
    %v833 = vadd.f32 %v62, %v832
    %v834 = vpop.f32.mrb[0].mxu0
    %835 = vdwg.mxu0
    %v838 = vunpack.c.l.s4 1966171168
    %v839 = vunpack.c.0.s8 %v838
    %v840 = vlaneseq
    %v841 = vshrl.u32 %v840, 7
    %v842 = vsub.s32 %v839, %v841
    %v843 = vrot.slane %v833, %v842
    %v844 = vcombine.high %v843, %v843
    %v846 = vunpack.c.l.s4 1966171168
    %v847 = vunpack.c.0.s8 %v846
    %v848 = vlaneseq
    %v849 = vshrl.u32 %v848, 7
    %v850 = vsub.s32 %v847, %v849
    %v851 = vrot.slane %v843, %v850
    %v853 = vunpack.c.l.s4 1966171168
    %v854 = vunpack.c.0.s8 %v853
    %v855 = vlaneseq
    %v856 = vshrl.u32 %v855, 7
    %v857 = vsub.s32 %v854, %v856
    %v858 = vrot.slane %v844, %v857
    %v859 = vlaneseq
    %v860 = vshrl.u32 %v859, 7
    %v861 = vsub.s32 0, %v860
    %v862 = vrot.slane %v851, %v861
    %v863 = vlaneseq
    %v864 = vshrl.u32 %v863, 7
    %v865 = vsub.s32 0, %v864
    %v866 = vrot.slane %v858, %v865
    %v869 = vadd.f32 %v862, %v38
    %v870 = vadd.f32 %v866, %v39
    %v871 = vtanh.pop %v869
    %v872 = vtanh.pop %v870
    %v873 = vmul.f32 %v871, %v179
    %v874 = vmul.f32 %v872, %v179
    %v875 = vsel %vm64, %v873, 0.0
    %876 = vadd.xlane.f32.xlu0 %v875
    %v877 = vpop.xlane.xlu0 %876
    %v878 = vsel %vm64, %v874, 0.0
    %879 = vadd.xlane.f32.xlu0 %v878
    %v880 = vpop.xlane.xlu0 %879
    %v881 = vadd.f32 %v877, %v196
    %v882 = vadd.f32 %v880, %v203
    %885 = vset.pattern.permute.xlu0 0
    %886 = vperm.xlu0 %885, %v881
    %v887 = vpop.permute.xlu0 %886
    %888 = vset.pattern.permute.xlu0 0
    %889 = vperm.xlu0 %888, %v882
    %v890 = vpop.permute.xlu0 %889
    %v891 = vlaneseq
    %v892 = vshrl.u32 %v891, 7
    %v893 = vsub.s32 %v217, %v892
    %v894 = vrot.slane %v887, %v893
    %v895 = vlaneseq
    %v896 = vshrl.u32 %v895, 7
    %v897 = vsub.s32 %v217, %v896
    %v898 = vrot.slane %v890, %v897
    %v899 = vsel %vm226, %v898, %v894
    %v901 = vsel %vm229, %v899, -inf
    %902 = vmax.xlane.f32.xlu0 %v901
    %v903 = vpop.xlane.xlu0 %902
    %v905 = vlaneseq
    %v906 = vshrl.u32 %v905, 7
    %v907 = vsub.s32 0, %v906
    %v908 = vrot.slane %v903, %v907
    %v909 = vlaneseq
    %v910 = vshrl.u32 %v909, 7
    %v911 = vsub.s32 1, %v910
    %v912 = vrot.slane %v903, %v911
    %v915 = vsub.f32 %v881, %v908
    %v916 = vsub.f32 %v882, %v912
    %v917 = vmul.f32 %v915, 1.442695
    %v918 = vpow.pop %v917
    %v919 = vmul.f32 %v916, 1.442695
    %v920 = vpow.pop %v919
    %923 = vset.pattern.permute.xlu0 0
    %924 = vperm.xlu0 %923, %v918
    %v925 = vpop.permute.xlu0 %924
    %926 = vset.pattern.permute.xlu0 0
    %927 = vperm.xlu0 %926, %v920
    %v928 = vpop.permute.xlu0 %927
    %v929 = vlaneseq
    %v930 = vshrl.u32 %v929, 7
    %v931 = vsub.s32 %v217, %v930
    %v932 = vrot.slane %v925, %v931
    %v933 = vlaneseq
    %v934 = vshrl.u32 %v933, 7
    %v935 = vsub.s32 %v217, %v934
    %v936 = vrot.slane %v928, %v935
    %v937 = vsel %vm226, %v936, %v932
    %v939 = vsel %vm229, %v937, 0.0
    %940 = vadd.xlane.f32.xlu0 %v939
    %v941 = vpop.xlane.xlu0 %940
    %v943 = vlaneseq
    %v944 = vshrl.u32 %v943, 7
    %v945 = vsub.s32 0, %v944
    %v946 = vrot.slane %v941, %v945
    %v947 = vlaneseq
    %v948 = vshrl.u32 %v947, 7
    %v949 = vsub.s32 1, %v948
    %v950 = vrot.slane %v941, %v949
    %v953 = vrcp.pop %v946
    %v954 = vmul.f32 %v918, %v953
    %v955 = vrcp.pop %v950
    %v956 = vmul.f32 %v920, %v955
    %958 = vset.pattern.permute.xlu0 0
    %959 = vperm.xlu0 %958, %v954
    %v960 = vpop.permute.xlu0 %959
    %963 = vset.pattern.permute.xlu0 0
    %964 = vperm.xlu0 %963, %v956
    %v965 = vpop.permute.xlu0 %964
    %v967 = vmul.f32 %v960, %v36
    %v968 = vmul.f32 %v965, %v37
    %v969 = vsel %vm298, %v967, 0.0
    %v970 = vrot.slane %v969, 4
    %v971 = vadd.f32 %v969, %v970
    %v972 = vrot.slane %v971, 2
    %v973 = vadd.f32 %v971, %v972
    %v974 = vrot.slane %v973, 1
    %v975 = vadd.f32 %v973, %v974
    %v976 = vsel %vm298, %v968, 0.0
    %v977 = vrot.slane %v976, 4
    %v978 = vadd.f32 %v976, %v977
    %v979 = vrot.slane %v978, 2
    %v980 = vadd.f32 %v978, %v979
    %v981 = vrot.slane %v980, 1
    %v982 = vadd.f32 %v980, %v981
    %s983 = scalar_lea.vmem %s0, 4
    %v984 = vld [vmem:[%s983] sm:$0x3]
    %v987 = vsel %vm226, %v982, %v975
    %v988 = vsel %vm298, %v987, 0
    %990 = vmatprep.subr.mxu0 0.0
    %991 = vmatpush1.msra.mxu0 %v46
    %992 = vmatprep.subr.mxu0 0.0
    %993 = vmatpush1.msra.mxu0 %v47
    %994 = vmatprep.subr.mxu0 0.0
    %995 = vmatpush1.msra.mxu0 %v48
    %996 = vmatprep.subr.mxu0 0.0
    %997 = vmatpush1.msra.mxu0 %v49
    %998 = vmatprep.subr.mxu0 0.0
    %999 = vmatpush1.msra.mxu0 %v50
    %1000 = vmatprep.subr.mxu0 0.0
    %1001 = vmatpush1.msra.mxu0 %v51
    %1002 = vmatprep.subr.mxu0 0.0
    %1003 = vmatpush1.msra.mxu0 %v52
    %1004 = vmatprep.subr.mxu0 0.0
    %1005 = vmatpush1.msra.mxu0 %v53
    %1006 = vmatprep.subr.mxu0 0.0
    %1007 = vmatpush1.msra.mxu0 0.0
    %1008 = vmatprep.subr.mxu0 0.0
    %1009 = vmatpush1.msra.mxu0 0.0
    %1010 = vmatprep.subr.mxu0 0.0
    %1011 = vmatpush1.msra.mxu0 0.0
    %1012 = vmatprep.subr.mxu0 0.0
    %1013 = vmatpush1.msra.mxu0 0.0
    %1014 = vmatprep.subr.mxu0 0.0
    %1015 = vmatpush1.msra.mxu0 0.0
    %1016 = vmatprep.subr.mxu0 0.0
    %1017 = vmatpush1.msra.mxu0 0.0
    %1018 = vmatprep.subr.mxu0 0.0
    %1019 = vmatpush1.msra.mxu0 0.0
    %1020 = vmatprep.subr.mxu0 0.0
    %1021 = vmatpush1.msra.mxu0 0.0
    %1022 = vmatprep.subr.mxu0 0.0
    %1023 = vmatpush1.msra.mxu0 0.0
    %1024 = vmatprep.subr.mxu0 0.0
    %1025 = vmatpush1.msra.mxu0 0.0
    %1026 = vmatprep.subr.mxu0 0.0
    %1027 = vmatpush1.msra.mxu0 0.0
    %1028 = vmatprep.subr.mxu0 0.0
    %1029 = vmatpush1.msra.mxu0 0.0
    %1030 = vmatprep.subr.mxu0 0.0
    %1031 = vmatpush1.msra.mxu0 0.0
    %1032 = vmatprep.subr.mxu0 0.0
    %1033 = vmatpush1.msra.mxu0 0.0
    %1034 = vmatprep.subr.mxu0 0.0
    %1035 = vmatpush1.msra.mxu0 0.0
    %1036 = vmatprep.subr.mxu0 0.0
    %1037 = vmatpush1.msra.mxu0 0.0
    %1038 = vmatprep.subr.mxu0 0.0
    %1039 = vmatpush1.msra.mxu0 0.0
    %1040 = vmatprep.subr.mxu0 0.0
    %1041 = vmatpush1.msra.mxu0 0.0
    %1042 = vmatprep.subr.mxu0 0.0
    %1043 = vmatpush1.msra.mxu0 0.0
    %1044 = vmatprep.subr.mxu0 0.0
    %1045 = vmatpush1.msra.mxu0 0.0
    %1046 = vmatprep.subr.mxu0 0.0
    %1047 = vmatpush1.msra.mxu0 0.0
    %1048 = vmatprep.subr.mxu0 0.0
    %1049 = vmatpush1.msra.mxu0 0.0
    %1050 = vmatprep.subr.mxu0 0.0
    %1051 = vmatpush1.msra.mxu0 0.0
    %1052 = vmatprep.subr.mxu0 0.0
    %1053 = vmatpush1.msra.mxu0 0.0
    %1054 = vmatprep.mubr.f32.mxu0 0.0
    %1055 = vmatmul.mubr.f32.gmra.mrb[0].mxu0 %v988
    %v1056 = vpop.f32.mrb[0].mxu0
    %v1057 = vadd.f32 0.0, %v1056
    %v1058 = vpop.f32.mrb[0].mxu0
    %1059 = vdwg.mxu0
    %v1060 = vadd.f32 %v984, %v1057
    %1061 = vrot.lane.b32.xlu0 %v833, 96
    %v1062 = vpop.permute.xlu0 %1061
    %v1064 = vadd.f32 %v1060, %v1062
    %v1065 = vxor.u32 %v1064, 2147483648
    %v1066 = vmul.f32 %v1065, 1.442695
    %v1067 = vpow.pop %v1066
    %v1068 = vadd.f32 %v1067, 1.0
    %v1069 = vrcp.pop %v1068
    %v1070 = vmul.f32 1.0, %v1069
    %1071 = vrot.lane.b32.xlu0 %v833, 32
    %v1072 = vpop.permute.xlu0 %1071
    %v1074 = vmul.f32 %v1070, %v1072
    %1076 = vrot.lane.b32.xlu0 %v1074, 64
    %v1077 = vpop.permute.xlu0 %1076
    %v1079 = vadd.f32 %v1060, %v1077
    %v1080 = vtanh.pop %v1079
    %v1081 = vsub.f32 1.0, %v1070
    %1083 = vrot.lane.b32.xlu0 %v1080, 96
    %v1084 = vpop.permute.xlu0 %1083
    %v1086 = vmul.f32 %v1081, %v1084
    %v1087 = vmul.f32 %v1070, %v754
    %v1088 = vadd.f32 %v1086, %v1087
    %1090 = vrot.lane.b32.xlu0 %v1088, 96
    %v1091 = vpop.permute.xlu0 %1090
    %s1093 = scalar_lea.vmem %s9, 4
    %1094 = vst.msk [vmem:[%s1093] sm:$0x3] %vm425, %v1091
    %s1096 = scalar_lea.vmem %s10, 4
    %1097 = vst.msk [vmem:[%s1096] sm:$0x3] %vm428, %v987
    %v1098 = vsel %vm64, %v1091, 0
    %1100 = vmatprep.subr.mxu0 0.0
    %1101 = vmatpush1.msra.mxu0 %v40
    %1102 = vmatprep.subr.mxu0 0.0
    %1103 = vmatpush1.msra.mxu0 %v41
    %1104 = vmatprep.subr.mxu0 0.0
    %1105 = vmatpush1.msra.mxu0 %v42
    %1106 = vmatprep.subr.mxu0 0.0
    %1107 = vmatpush1.msra.mxu0 %v43
    %1108 = vmatprep.subr.mxu0 0.0
    %1109 = vmatpush1.msra.mxu0 0.0
    %1110 = vmatprep.subr.mxu0 0.0
    %1111 = vmatpush1.msra.mxu0 0.0
    %1112 = vmatprep.subr.mxu0 0.0
    %1113 = vmatpush1.msra.mxu0 0.0
    %1114 = vmatprep.subr.mxu0 0.0
    %1115 = vmatpush1.msra.mxu0 0.0
    %1116 = vmatprep.subr.mxu0 0.0
    %1117 = vmatpush1.msra.mxu0 0.0
    %1118 = vmatprep.subr.mxu0 0.0
    %1119 = vmatpush1.msra.mxu0 0.0
    %1120 = vmatprep.subr.mxu0 0.0
    %1121 = vmatpush1.msra.mxu0 0.0
    %1122 = vmatprep.subr.mxu0 0.0
    %1123 = vmatpush1.msra.mxu0 0.0
    %1124 = vmatprep.subr.mxu0 0.0
    %1125 = vmatpush1.msra.mxu0 0.0
    %1126 = vmatprep.subr.mxu0 0.0
    %1127 = vmatpush1.msra.mxu0 0.0
    %1128 = vmatprep.subr.mxu0 0.0
    %1129 = vmatpush1.msra.mxu0 0.0
    %1130 = vmatprep.subr.mxu0 0.0
    %1131 = vmatpush1.msra.mxu0 0.0
    %1132 = vmatprep.subr.mxu0 0.0
    %1133 = vmatpush1.msra.mxu0 0.0
    %1134 = vmatprep.subr.mxu0 0.0
    %1135 = vmatpush1.msra.mxu0 0.0
    %1136 = vmatprep.subr.mxu0 0.0
    %1137 = vmatpush1.msra.mxu0 0.0
    %1138 = vmatprep.subr.mxu0 0.0
    %1139 = vmatpush1.msra.mxu0 0.0
    %1140 = vmatprep.subr.mxu0 0.0
    %1141 = vmatpush1.msra.mxu0 0.0
    %1142 = vmatprep.subr.mxu0 0.0
    %1143 = vmatpush1.msra.mxu0 0.0
    %1144 = vmatprep.subr.mxu0 0.0
    %1145 = vmatpush1.msra.mxu0 0.0
    %1146 = vmatprep.subr.mxu0 0.0
    %1147 = vmatpush1.msra.mxu0 0.0
    %1148 = vmatprep.subr.mxu0 0.0
    %1149 = vmatpush1.msra.mxu0 0.0
    %1150 = vmatprep.subr.mxu0 0.0
    %1151 = vmatpush1.msra.mxu0 0.0
    %1152 = vmatprep.subr.mxu0 0.0
    %1153 = vmatpush1.msra.mxu0 0.0
    %1154 = vmatprep.subr.mxu0 0.0
    %1155 = vmatpush1.msra.mxu0 0.0
    %1156 = vmatprep.subr.mxu0 0.0
    %1157 = vmatpush1.msra.mxu0 0.0
    %1158 = vmatprep.subr.mxu0 0.0
    %1159 = vmatpush1.msra.mxu0 0.0
    %1160 = vmatprep.subr.mxu0 0.0
    %1161 = vmatpush1.msra.mxu0 0.0
    %1162 = vmatprep.subr.mxu0 0.0
    %1163 = vmatpush1.msra.mxu0 0.0
    %1164 = vmatprep.mubr.f32.mxu0 0.0
    %1165 = vmatmul.mubr.f32.gmra.mrb[0].mxu0 %v1098
    %v1166 = vpop.f32.mrb[0].mxu0
    %v1167 = vadd.f32 %v62, %v1166
    %v1168 = vpop.f32.mrb[0].mxu0
    %1169 = vdwg.mxu0
    %v1172 = vunpack.c.l.s4 1966171168
    %v1173 = vunpack.c.0.s8 %v1172
    %v1174 = vlaneseq
    %v1175 = vshrl.u32 %v1174, 7
    %v1176 = vsub.s32 %v1173, %v1175
    %v1177 = vrot.slane %v1167, %v1176
    %v1178 = vcombine.high %v1177, %v1177
    %v1180 = vunpack.c.l.s4 1966171168
    %v1181 = vunpack.c.0.s8 %v1180
    %v1182 = vlaneseq
    %v1183 = vshrl.u32 %v1182, 7
    %v1184 = vsub.s32 %v1181, %v1183
    %v1185 = vrot.slane %v1177, %v1184
    %v1187 = vunpack.c.l.s4 1966171168
    %v1188 = vunpack.c.0.s8 %v1187
    %v1189 = vlaneseq
    %v1190 = vshrl.u32 %v1189, 7
    %v1191 = vsub.s32 %v1188, %v1190
    %v1192 = vrot.slane %v1178, %v1191
    %v1193 = vlaneseq
    %v1194 = vshrl.u32 %v1193, 7
    %v1195 = vsub.s32 0, %v1194
    %v1196 = vrot.slane %v1185, %v1195
    %v1197 = vlaneseq
    %v1198 = vshrl.u32 %v1197, 7
    %v1199 = vsub.s32 0, %v1198
    %v1200 = vrot.slane %v1192, %v1199
    %v1203 = vadd.f32 %v1196, %v38
    %v1204 = vadd.f32 %v1200, %v39
    %v1205 = vtanh.pop %v1203
    %v1206 = vtanh.pop %v1204
    %v1207 = vmul.f32 %v1205, %v179
    %v1208 = vmul.f32 %v1206, %v179
    %v1209 = vsel %vm64, %v1207, 0.0
    %1210 = vadd.xlane.f32.xlu0 %v1209
    %v1211 = vpop.xlane.xlu0 %1210
    %v1212 = vsel %vm64, %v1208, 0.0
    %1213 = vadd.xlane.f32.xlu0 %v1212
    %v1214 = vpop.xlane.xlu0 %1213
    %v1215 = vadd.f32 %v1211, %v196
    %v1216 = vadd.f32 %v1214, %v203
    %1219 = vset.pattern.permute.xlu0 0
    %1220 = vperm.xlu0 %1219, %v1215
    %v1221 = vpop.permute.xlu0 %1220
    %1222 = vset.pattern.permute.xlu0 0
    %1223 = vperm.xlu0 %1222, %v1216
    %v1224 = vpop.permute.xlu0 %1223
    %v1225 = vlaneseq
    %v1226 = vshrl.u32 %v1225, 7
    %v1227 = vsub.s32 %v217, %v1226
    %v1228 = vrot.slane %v1221, %v1227
    %v1229 = vlaneseq
    %v1230 = vshrl.u32 %v1229, 7
    %v1231 = vsub.s32 %v217, %v1230
    %v1232 = vrot.slane %v1224, %v1231
    %v1233 = vsel %vm226, %v1232, %v1228
    %v1235 = vsel %vm229, %v1233, -inf
    %1236 = vmax.xlane.f32.xlu0 %v1235
    %v1237 = vpop.xlane.xlu0 %1236
    %v1239 = vlaneseq
    %v1240 = vshrl.u32 %v1239, 7
    %v1241 = vsub.s32 0, %v1240
    %v1242 = vrot.slane %v1237, %v1241
    %v1243 = vlaneseq
    %v1244 = vshrl.u32 %v1243, 7
    %v1245 = vsub.s32 1, %v1244
    %v1246 = vrot.slane %v1237, %v1245
    %v1249 = vsub.f32 %v1215, %v1242
    %v1250 = vsub.f32 %v1216, %v1246
    %v1251 = vmul.f32 %v1249, 1.442695
    %v1252 = vpow.pop %v1251
    %v1253 = vmul.f32 %v1250, 1.442695
    %v1254 = vpow.pop %v1253
    %1257 = vset.pattern.permute.xlu0 0
    %1258 = vperm.xlu0 %1257, %v1252
    %v1259 = vpop.permute.xlu0 %1258
    %1260 = vset.pattern.permute.xlu0 0
    %1261 = vperm.xlu0 %1260, %v1254
    %v1262 = vpop.permute.xlu0 %1261
    %v1263 = vlaneseq
    %v1264 = vshrl.u32 %v1263, 7
    %v1265 = vsub.s32 %v217, %v1264
    %v1266 = vrot.slane %v1259, %v1265
    %v1267 = vlaneseq
    %v1268 = vshrl.u32 %v1267, 7
    %v1269 = vsub.s32 %v217, %v1268
    %v1270 = vrot.slane %v1262, %v1269
    %v1271 = vsel %vm226, %v1270, %v1266
    %v1273 = vsel %vm229, %v1271, 0.0
    %1274 = vadd.xlane.f32.xlu0 %v1273
    %v1275 = vpop.xlane.xlu0 %1274
    %v1277 = vlaneseq
    %v1278 = vshrl.u32 %v1277, 7
    %v1279 = vsub.s32 0, %v1278
    %v1280 = vrot.slane %v1275, %v1279
    %v1281 = vlaneseq
    %v1282 = vshrl.u32 %v1281, 7
    %v1283 = vsub.s32 1, %v1282
    %v1284 = vrot.slane %v1275, %v1283
    %v1287 = vrcp.pop %v1280
    %v1288 = vmul.f32 %v1252, %v1287
    %v1289 = vrcp.pop %v1284
    %v1290 = vmul.f32 %v1254, %v1289
    %1292 = vset.pattern.permute.xlu0 0
    %1293 = vperm.xlu0 %1292, %v1288
    %v1294 = vpop.permute.xlu0 %1293
    %1297 = vset.pattern.permute.xlu0 0
    %1298 = vperm.xlu0 %1297, %v1290
    %v1299 = vpop.permute.xlu0 %1298
    %v1301 = vmul.f32 %v1294, %v36
    %v1302 = vmul.f32 %v1299, %v37
    %v1303 = vsel %vm298, %v1301, 0.0
    %v1304 = vrot.slane %v1303, 4
    %v1305 = vadd.f32 %v1303, %v1304
    %v1306 = vrot.slane %v1305, 2
    %v1307 = vadd.f32 %v1305, %v1306
    %v1308 = vrot.slane %v1307, 1
    %v1309 = vadd.f32 %v1307, %v1308
    %v1310 = vsel %vm298, %v1302, 0.0
    %v1311 = vrot.slane %v1310, 4
    %v1312 = vadd.f32 %v1310, %v1311
    %v1313 = vrot.slane %v1312, 2
    %v1314 = vadd.f32 %v1312, %v1313
    %v1315 = vrot.slane %v1314, 1
    %v1316 = vadd.f32 %v1314, %v1315
    %s1317 = scalar_lea.vmem %s0, 6
    %v1318 = vld [vmem:[%s1317] sm:$0x3]
    %v1321 = vsel %vm226, %v1316, %v1309
    %v1322 = vsel %vm298, %v1321, 0
    %1324 = vmatprep.subr.mxu0 0.0
    %1325 = vmatpush1.msra.mxu0 %v46
    %1326 = vmatprep.subr.mxu0 0.0
    %1327 = vmatpush1.msra.mxu0 %v47
    %1328 = vmatprep.subr.mxu0 0.0
    %1329 = vmatpush1.msra.mxu0 %v48
    %1330 = vmatprep.subr.mxu0 0.0
    %1331 = vmatpush1.msra.mxu0 %v49
    %1332 = vmatprep.subr.mxu0 0.0
    %1333 = vmatpush1.msra.mxu0 %v50
    %1334 = vmatprep.subr.mxu0 0.0
    %1335 = vmatpush1.msra.mxu0 %v51
    %1336 = vmatprep.subr.mxu0 0.0
    %1337 = vmatpush1.msra.mxu0 %v52
    %1338 = vmatprep.subr.mxu0 0.0
    %1339 = vmatpush1.msra.mxu0 %v53
    %1340 = vmatprep.subr.mxu0 0.0
    %1341 = vmatpush1.msra.mxu0 0.0
    %1342 = vmatprep.subr.mxu0 0.0
    %1343 = vmatpush1.msra.mxu0 0.0
    %1344 = vmatprep.subr.mxu0 0.0
    %1345 = vmatpush1.msra.mxu0 0.0
    %1346 = vmatprep.subr.mxu0 0.0
    %1347 = vmatpush1.msra.mxu0 0.0
    %1348 = vmatprep.subr.mxu0 0.0
    %1349 = vmatpush1.msra.mxu0 0.0
    %1350 = vmatprep.subr.mxu0 0.0
    %1351 = vmatpush1.msra.mxu0 0.0
    %1352 = vmatprep.subr.mxu0 0.0
    %1353 = vmatpush1.msra.mxu0 0.0
    %1354 = vmatprep.subr.mxu0 0.0
    %1355 = vmatpush1.msra.mxu0 0.0
    %1356 = vmatprep.subr.mxu0 0.0
    %1357 = vmatpush1.msra.mxu0 0.0
    %1358 = vmatprep.subr.mxu0 0.0
    %1359 = vmatpush1.msra.mxu0 0.0
    %1360 = vmatprep.subr.mxu0 0.0
    %1361 = vmatpush1.msra.mxu0 0.0
    %1362 = vmatprep.subr.mxu0 0.0
    %1363 = vmatpush1.msra.mxu0 0.0
    %1364 = vmatprep.subr.mxu0 0.0
    %1365 = vmatpush1.msra.mxu0 0.0
    %1366 = vmatprep.subr.mxu0 0.0
    %1367 = vmatpush1.msra.mxu0 0.0
    %1368 = vmatprep.subr.mxu0 0.0
    %1369 = vmatpush1.msra.mxu0 0.0
    %1370 = vmatprep.subr.mxu0 0.0
    %1371 = vmatpush1.msra.mxu0 0.0
    %1372 = vmatprep.subr.mxu0 0.0
    %1373 = vmatpush1.msra.mxu0 0.0
    %1374 = vmatprep.subr.mxu0 0.0
    %1375 = vmatpush1.msra.mxu0 0.0
    %1376 = vmatprep.subr.mxu0 0.0
    %1377 = vmatpush1.msra.mxu0 0.0
    %1378 = vmatprep.subr.mxu0 0.0
    %1379 = vmatpush1.msra.mxu0 0.0
    %1380 = vmatprep.subr.mxu0 0.0
    %1381 = vmatpush1.msra.mxu0 0.0
    %1382 = vmatprep.subr.mxu0 0.0
    %1383 = vmatpush1.msra.mxu0 0.0
    %1384 = vmatprep.subr.mxu0 0.0
    %1385 = vmatpush1.msra.mxu0 0.0
    %1386 = vmatprep.subr.mxu0 0.0
    %1387 = vmatpush1.msra.mxu0 0.0
    %1388 = vmatprep.mubr.f32.mxu0 0.0
    %1389 = vmatmul.mubr.f32.gmra.mrb[0].mxu0 %v1322
    %v1390 = vpop.f32.mrb[0].mxu0
    %v1391 = vadd.f32 0.0, %v1390
    %v1392 = vpop.f32.mrb[0].mxu0
    %1393 = vdwg.mxu0
    %v1394 = vadd.f32 %v1318, %v1391
    %1395 = vrot.lane.b32.xlu0 %v1167, 96
    %v1396 = vpop.permute.xlu0 %1395
    %v1398 = vadd.f32 %v1394, %v1396
    %v1399 = vxor.u32 %v1398, 2147483648
    %v1400 = vmul.f32 %v1399, 1.442695
    %v1401 = vpow.pop %v1400
    %v1402 = vadd.f32 %v1401, 1.0
    %v1403 = vrcp.pop %v1402
    %v1404 = vmul.f32 1.0, %v1403
    %1405 = vrot.lane.b32.xlu0 %v1167, 32
    %v1406 = vpop.permute.xlu0 %1405
    %v1408 = vmul.f32 %v1404, %v1406
    %1410 = vrot.lane.b32.xlu0 %v1408, 64
    %v1411 = vpop.permute.xlu0 %1410
    %v1413 = vadd.f32 %v1394, %v1411
    %v1414 = vtanh.pop %v1413
    %v1415 = vsub.f32 1.0, %v1404
    %1417 = vrot.lane.b32.xlu0 %v1414, 96
    %v1418 = vpop.permute.xlu0 %1417
    %v1420 = vmul.f32 %v1415, %v1418
    %v1421 = vmul.f32 %v1404, %v1088
    %v1422 = vadd.f32 %v1420, %v1421
    %1424 = vrot.lane.b32.xlu0 %v1422, 96
    %v1425 = vpop.permute.xlu0 %1424
    %s1427 = scalar_lea.vmem %s9, 6
    %1428 = vst.msk [vmem:[%s1427] sm:$0x3] %vm425, %v1425
    %s1430 = scalar_lea.vmem %s10, 6
    %1431 = vst.msk [vmem:[%s1430] sm:$0x3] %vm428, %v1321
    %v1432 = vsel %vm64, %v1425, 0
    %1434 = vmatprep.subr.mxu0 0.0
    %1435 = vmatpush1.msra.mxu0 %v40
    %1436 = vmatprep.subr.mxu0 0.0
    %1437 = vmatpush1.msra.mxu0 %v41
    %1438 = vmatprep.subr.mxu0 0.0
    %1439 = vmatpush1.msra.mxu0 %v42
    %1440 = vmatprep.subr.mxu0 0.0
    %1441 = vmatpush1.msra.mxu0 %v43
    %1442 = vmatprep.subr.mxu0 0.0
    %1443 = vmatpush1.msra.mxu0 0.0
    %1444 = vmatprep.subr.mxu0 0.0
    %1445 = vmatpush1.msra.mxu0 0.0
    %1446 = vmatprep.subr.mxu0 0.0
    %1447 = vmatpush1.msra.mxu0 0.0
    %1448 = vmatprep.subr.mxu0 0.0
    %1449 = vmatpush1.msra.mxu0 0.0
    %1450 = vmatprep.subr.mxu0 0.0
    %1451 = vmatpush1.msra.mxu0 0.0
    %1452 = vmatprep.subr.mxu0 0.0
    %1453 = vmatpush1.msra.mxu0 0.0
    %1454 = vmatprep.subr.mxu0 0.0
    %1455 = vmatpush1.msra.mxu0 0.0
    %1456 = vmatprep.subr.mxu0 0.0
    %1457 = vmatpush1.msra.mxu0 0.0
    %1458 = vmatprep.subr.mxu0 0.0
    %1459 = vmatpush1.msra.mxu0 0.0
    %1460 = vmatprep.subr.mxu0 0.0
    %1461 = vmatpush1.msra.mxu0 0.0
    %1462 = vmatprep.subr.mxu0 0.0
    %1463 = vmatpush1.msra.mxu0 0.0
    %1464 = vmatprep.subr.mxu0 0.0
    %1465 = vmatpush1.msra.mxu0 0.0
    %1466 = vmatprep.subr.mxu0 0.0
    %1467 = vmatpush1.msra.mxu0 0.0
    %1468 = vmatprep.subr.mxu0 0.0
    %1469 = vmatpush1.msra.mxu0 0.0
    %1470 = vmatprep.subr.mxu0 0.0
    %1471 = vmatpush1.msra.mxu0 0.0
    %1472 = vmatprep.subr.mxu0 0.0
    %1473 = vmatpush1.msra.mxu0 0.0
    %1474 = vmatprep.subr.mxu0 0.0
    %1475 = vmatpush1.msra.mxu0 0.0
    %1476 = vmatprep.subr.mxu0 0.0
    %1477 = vmatpush1.msra.mxu0 0.0
    %1478 = vmatprep.subr.mxu0 0.0
    %1479 = vmatpush1.msra.mxu0 0.0
    %1480 = vmatprep.subr.mxu0 0.0
    %1481 = vmatpush1.msra.mxu0 0.0
    %1482 = vmatprep.subr.mxu0 0.0
    %1483 = vmatpush1.msra.mxu0 0.0
    %1484 = vmatprep.subr.mxu0 0.0
    %1485 = vmatpush1.msra.mxu0 0.0
    %1486 = vmatprep.subr.mxu0 0.0
    %1487 = vmatpush1.msra.mxu0 0.0
    %1488 = vmatprep.subr.mxu0 0.0
    %1489 = vmatpush1.msra.mxu0 0.0
    %1490 = vmatprep.subr.mxu0 0.0
    %1491 = vmatpush1.msra.mxu0 0.0
    %1492 = vmatprep.subr.mxu0 0.0
    %1493 = vmatpush1.msra.mxu0 0.0
    %1494 = vmatprep.subr.mxu0 0.0
    %1495 = vmatpush1.msra.mxu0 0.0
    %1496 = vmatprep.subr.mxu0 0.0
    %1497 = vmatpush1.msra.mxu0 0.0
    %1498 = vmatprep.mubr.f32.mxu0 0.0
    %1499 = vmatmul.mubr.f32.gmra.mrb[0].mxu0 %v1432
    %v1500 = vpop.f32.mrb[0].mxu0
    %v1501 = vadd.f32 %v62, %v1500
    %v1502 = vpop.f32.mrb[0].mxu0
    %1503 = vdwg.mxu0
    %v1506 = vunpack.c.l.s4 1966171168
    %v1507 = vunpack.c.0.s8 %v1506
    %v1508 = vlaneseq
    %v1509 = vshrl.u32 %v1508, 7
    %v1510 = vsub.s32 %v1507, %v1509
    %v1511 = vrot.slane %v1501, %v1510
    %v1512 = vcombine.high %v1511, %v1511
    %v1514 = vunpack.c.l.s4 1966171168
    %v1515 = vunpack.c.0.s8 %v1514
    %v1516 = vlaneseq
    %v1517 = vshrl.u32 %v1516, 7
    %v1518 = vsub.s32 %v1515, %v1517
    %v1519 = vrot.slane %v1511, %v1518
    %v1521 = vunpack.c.l.s4 1966171168
    %v1522 = vunpack.c.0.s8 %v1521
    %v1523 = vlaneseq
    %v1524 = vshrl.u32 %v1523, 7
    %v1525 = vsub.s32 %v1522, %v1524
    %v1526 = vrot.slane %v1512, %v1525
    %v1527 = vlaneseq
    %v1528 = vshrl.u32 %v1527, 7
    %v1529 = vsub.s32 0, %v1528
    %v1530 = vrot.slane %v1519, %v1529
    %v1531 = vlaneseq
    %v1532 = vshrl.u32 %v1531, 7
    %v1533 = vsub.s32 0, %v1532
    %v1534 = vrot.slane %v1526, %v1533
    %v1537 = vadd.f32 %v1530, %v38
    %v1538 = vadd.f32 %v1534, %v39
    %v1539 = vtanh.pop %v1537
    %v1540 = vtanh.pop %v1538
    %v1541 = vmul.f32 %v1539, %v179
    %v1542 = vmul.f32 %v1540, %v179
    %v1543 = vsel %vm64, %v1541, 0.0
    %1544 = vadd.xlane.f32.xlu0 %v1543
    %v1545 = vpop.xlane.xlu0 %1544
    %v1546 = vsel %vm64, %v1542, 0.0
    %1547 = vadd.xlane.f32.xlu0 %v1546
    %v1548 = vpop.xlane.xlu0 %1547
    %v1549 = vadd.f32 %v1545, %v196
    %v1550 = vadd.f32 %v1548, %v203
    %1553 = vset.pattern.permute.xlu0 0
    %1554 = vperm.xlu0 %1553, %v1549
    %v1555 = vpop.permute.xlu0 %1554
    %1556 = vset.pattern.permute.xlu0 0
    %1557 = vperm.xlu0 %1556, %v1550
    %v1558 = vpop.permute.xlu0 %1557
    %v1559 = vlaneseq
    %v1560 = vshrl.u32 %v1559, 7
    %v1561 = vsub.s32 %v217, %v1560
    %v1562 = vrot.slane %v1555, %v1561
    %v1563 = vlaneseq
    %v1564 = vshrl.u32 %v1563, 7
    %v1565 = vsub.s32 %v217, %v1564
    %v1566 = vrot.slane %v1558, %v1565
    %v1567 = vsel %vm226, %v1566, %v1562
    %v1569 = vsel %vm229, %v1567, -inf
    %1570 = vmax.xlane.f32.xlu0 %v1569
    %v1571 = vpop.xlane.xlu0 %1570
    %v1573 = vlaneseq
    %v1574 = vshrl.u32 %v1573, 7
    %v1575 = vsub.s32 0, %v1574
    %v1576 = vrot.slane %v1571, %v1575
    %v1577 = vlaneseq
    %v1578 = vshrl.u32 %v1577, 7
    %v1579 = vsub.s32 1, %v1578
    %v1580 = vrot.slane %v1571, %v1579
    %v1583 = vsub.f32 %v1549, %v1576
    %v1584 = vsub.f32 %v1550, %v1580
    %v1585 = vmul.f32 %v1583, 1.442695
    %v1586 = vpow.pop %v1585
    %v1587 = vmul.f32 %v1584, 1.442695
    %v1588 = vpow.pop %v1587
    %1591 = vset.pattern.permute.xlu0 0
    %1592 = vperm.xlu0 %1591, %v1586
    %v1593 = vpop.permute.xlu0 %1592
    %1594 = vset.pattern.permute.xlu0 0
    %1595 = vperm.xlu0 %1594, %v1588
    %v1596 = vpop.permute.xlu0 %1595
    %v1597 = vlaneseq
    %v1598 = vshrl.u32 %v1597, 7
    %v1599 = vsub.s32 %v217, %v1598
    %v1600 = vrot.slane %v1593, %v1599
    %v1601 = vlaneseq
    %v1602 = vshrl.u32 %v1601, 7
    %v1603 = vsub.s32 %v217, %v1602
    %v1604 = vrot.slane %v1596, %v1603
    %v1605 = vsel %vm226, %v1604, %v1600
    %v1607 = vsel %vm229, %v1605, 0.0
    %1608 = vadd.xlane.f32.xlu0 %v1607
    %v1609 = vpop.xlane.xlu0 %1608
    %v1611 = vlaneseq
    %v1612 = vshrl.u32 %v1611, 7
    %v1613 = vsub.s32 0, %v1612
    %v1614 = vrot.slane %v1609, %v1613
    %v1615 = vlaneseq
    %v1616 = vshrl.u32 %v1615, 7
    %v1617 = vsub.s32 1, %v1616
    %v1618 = vrot.slane %v1609, %v1617
    %v1621 = vrcp.pop %v1614
    %v1622 = vmul.f32 %v1586, %v1621
    %v1623 = vrcp.pop %v1618
    %v1624 = vmul.f32 %v1588, %v1623
    %1626 = vset.pattern.permute.xlu0 0
    %1627 = vperm.xlu0 %1626, %v1622
    %v1628 = vpop.permute.xlu0 %1627
    %1631 = vset.pattern.permute.xlu0 0
    %1632 = vperm.xlu0 %1631, %v1624
    %v1633 = vpop.permute.xlu0 %1632
    %v1635 = vmul.f32 %v1628, %v36
    %v1636 = vmul.f32 %v1633, %v37
    %v1637 = vsel %vm298, %v1635, 0.0
    %v1638 = vrot.slane %v1637, 4
    %v1639 = vadd.f32 %v1637, %v1638
    %v1640 = vrot.slane %v1639, 2
    %v1641 = vadd.f32 %v1639, %v1640
    %v1642 = vrot.slane %v1641, 1
    %v1643 = vadd.f32 %v1641, %v1642
    %v1644 = vsel %vm298, %v1636, 0.0
    %v1645 = vrot.slane %v1644, 4
    %v1646 = vadd.f32 %v1644, %v1645
    %v1647 = vrot.slane %v1646, 2
    %v1648 = vadd.f32 %v1646, %v1647
    %v1649 = vrot.slane %v1648, 1
    %v1650 = vadd.f32 %v1648, %v1649
    %s1651 = scalar_lea.vmem %s0, 8
    %v1652 = vld [vmem:[%s1651] sm:$0x3]
    %v1655 = vsel %vm226, %v1650, %v1643
    %v1656 = vsel %vm298, %v1655, 0
    %1658 = vmatprep.subr.mxu0 0.0
    %1659 = vmatpush1.msra.mxu0 %v46
    %1660 = vmatprep.subr.mxu0 0.0
    %1661 = vmatpush1.msra.mxu0 %v47
    %1662 = vmatprep.subr.mxu0 0.0
    %1663 = vmatpush1.msra.mxu0 %v48
    %1664 = vmatprep.subr.mxu0 0.0
    %1665 = vmatpush1.msra.mxu0 %v49
    %1666 = vmatprep.subr.mxu0 0.0
    %1667 = vmatpush1.msra.mxu0 %v50
    %1668 = vmatprep.subr.mxu0 0.0
    %1669 = vmatpush1.msra.mxu0 %v51
    %1670 = vmatprep.subr.mxu0 0.0
    %1671 = vmatpush1.msra.mxu0 %v52
    %1672 = vmatprep.subr.mxu0 0.0
    %1673 = vmatpush1.msra.mxu0 %v53
    %1674 = vmatprep.subr.mxu0 0.0
    %1675 = vmatpush1.msra.mxu0 0.0
    %1676 = vmatprep.subr.mxu0 0.0
    %1677 = vmatpush1.msra.mxu0 0.0
    %1678 = vmatprep.subr.mxu0 0.0
    %1679 = vmatpush1.msra.mxu0 0.0
    %1680 = vmatprep.subr.mxu0 0.0
    %1681 = vmatpush1.msra.mxu0 0.0
    %1682 = vmatprep.subr.mxu0 0.0
    %1683 = vmatpush1.msra.mxu0 0.0
    %1684 = vmatprep.subr.mxu0 0.0
    %1685 = vmatpush1.msra.mxu0 0.0
    %1686 = vmatprep.subr.mxu0 0.0
    %1687 = vmatpush1.msra.mxu0 0.0
    %1688 = vmatprep.subr.mxu0 0.0
    %1689 = vmatpush1.msra.mxu0 0.0
    %1690 = vmatprep.subr.mxu0 0.0
    %1691 = vmatpush1.msra.mxu0 0.0
    %1692 = vmatprep.subr.mxu0 0.0
    %1693 = vmatpush1.msra.mxu0 0.0
    %1694 = vmatprep.subr.mxu0 0.0
    %1695 = vmatpush1.msra.mxu0 0.0
    %1696 = vmatprep.subr.mxu0 0.0
    %1697 = vmatpush1.msra.mxu0 0.0
    %1698 = vmatprep.subr.mxu0 0.0
    %1699 = vmatpush1.msra.mxu0 0.0
    %1700 = vmatprep.subr.mxu0 0.0
    %1701 = vmatpush1.msra.mxu0 0.0
    %1702 = vmatprep.subr.mxu0 0.0
    %1703 = vmatpush1.msra.mxu0 0.0
    %1704 = vmatprep.subr.mxu0 0.0
    %1705 = vmatpush1.msra.mxu0 0.0
    %1706 = vmatprep.subr.mxu0 0.0
    %1707 = vmatpush1.msra.mxu0 0.0
    %1708 = vmatprep.subr.mxu0 0.0
    %1709 = vmatpush1.msra.mxu0 0.0
    %1710 = vmatprep.subr.mxu0 0.0
    %1711 = vmatpush1.msra.mxu0 0.0
    %1712 = vmatprep.subr.mxu0 0.0
    %1713 = vmatpush1.msra.mxu0 0.0
    %1714 = vmatprep.subr.mxu0 0.0
    %1715 = vmatpush1.msra.mxu0 0.0
    %1716 = vmatprep.subr.mxu0 0.0
    %1717 = vmatpush1.msra.mxu0 0.0
    %1718 = vmatprep.subr.mxu0 0.0
    %1719 = vmatpush1.msra.mxu0 0.0
    %1720 = vmatprep.subr.mxu0 0.0
    %1721 = vmatpush1.msra.mxu0 0.0
    %1722 = vmatprep.mubr.f32.mxu0 0.0
    %1723 = vmatmul.mubr.f32.gmra.mrb[0].mxu0 %v1656
    %v1724 = vpop.f32.mrb[0].mxu0
    %v1725 = vadd.f32 0.0, %v1724
    %v1726 = vpop.f32.mrb[0].mxu0
    %1727 = vdwg.mxu0
    %v1728 = vadd.f32 %v1652, %v1725
    %1729 = vrot.lane.b32.xlu0 %v1501, 96
    %v1730 = vpop.permute.xlu0 %1729
    %v1732 = vadd.f32 %v1728, %v1730
    %v1733 = vxor.u32 %v1732, 2147483648
    %v1734 = vmul.f32 %v1733, 1.442695
    %v1735 = vpow.pop %v1734
    %v1736 = vadd.f32 %v1735, 1.0
    %v1737 = vrcp.pop %v1736
    %v1738 = vmul.f32 1.0, %v1737
    %1739 = vrot.lane.b32.xlu0 %v1501, 32
    %v1740 = vpop.permute.xlu0 %1739
    %v1742 = vmul.f32 %v1738, %v1740
    %1744 = vrot.lane.b32.xlu0 %v1742, 64
    %v1745 = vpop.permute.xlu0 %1744
    %v1747 = vadd.f32 %v1728, %v1745
    %v1748 = vtanh.pop %v1747
    %v1749 = vsub.f32 1.0, %v1738
    %1751 = vrot.lane.b32.xlu0 %v1748, 96
    %v1752 = vpop.permute.xlu0 %1751
    %v1754 = vmul.f32 %v1749, %v1752
    %v1755 = vmul.f32 %v1738, %v1422
    %v1756 = vadd.f32 %v1754, %v1755
    %1758 = vrot.lane.b32.xlu0 %v1756, 96
    %v1759 = vpop.permute.xlu0 %1758
    %s1761 = scalar_lea.vmem %s9, 8
    %1762 = vst.msk [vmem:[%s1761] sm:$0x3] %vm425, %v1759
    %s1764 = scalar_lea.vmem %s10, 8
    %1765 = vst.msk [vmem:[%s1764] sm:$0x3] %vm428, %v1655
    %v1766 = vsel %vm64, %v1759, 0
    %1768 = vmatprep.subr.mxu0 0.0
    %1769 = vmatpush1.msra.mxu0 %v40
    %1770 = vmatprep.subr.mxu0 0.0
    %1771 = vmatpush1.msra.mxu0 %v41
    %1772 = vmatprep.subr.mxu0 0.0
    %1773 = vmatpush1.msra.mxu0 %v42
    %1774 = vmatprep.subr.mxu0 0.0
    %1775 = vmatpush1.msra.mxu0 %v43
    %1776 = vmatprep.subr.mxu0 0.0
    %1777 = vmatpush1.msra.mxu0 0.0
    %1778 = vmatprep.subr.mxu0 0.0
    %1779 = vmatpush1.msra.mxu0 0.0
    %1780 = vmatprep.subr.mxu0 0.0
    %1781 = vmatpush1.msra.mxu0 0.0
    %1782 = vmatprep.subr.mxu0 0.0
    %1783 = vmatpush1.msra.mxu0 0.0
    %1784 = vmatprep.subr.mxu0 0.0
    %1785 = vmatpush1.msra.mxu0 0.0
    %1786 = vmatprep.subr.mxu0 0.0
    %1787 = vmatpush1.msra.mxu0 0.0
    %1788 = vmatprep.subr.mxu0 0.0
    %1789 = vmatpush1.msra.mxu0 0.0
    %1790 = vmatprep.subr.mxu0 0.0
    %1791 = vmatpush1.msra.mxu0 0.0
    %1792 = vmatprep.subr.mxu0 0.0
    %1793 = vmatpush1.msra.mxu0 0.0
    %1794 = vmatprep.subr.mxu0 0.0
    %1795 = vmatpush1.msra.mxu0 0.0
    %1796 = vmatprep.subr.mxu0 0.0
    %1797 = vmatpush1.msra.mxu0 0.0
    %1798 = vmatprep.subr.mxu0 0.0
    %1799 = vmatpush1.msra.mxu0 0.0
    %1800 = vmatprep.subr.mxu0 0.0
    %1801 = vmatpush1.msra.mxu0 0.0
    %1802 = vmatprep.subr.mxu0 0.0
    %1803 = vmatpush1.msra.mxu0 0.0
    %1804 = vmatprep.subr.mxu0 0.0
    %1805 = vmatpush1.msra.mxu0 0.0
    %1806 = vmatprep.subr.mxu0 0.0
    %1807 = vmatpush1.msra.mxu0 0.0
    %1808 = vmatprep.subr.mxu0 0.0
    %1809 = vmatpush1.msra.mxu0 0.0
    %1810 = vmatprep.subr.mxu0 0.0
    %1811 = vmatpush1.msra.mxu0 0.0
    %1812 = vmatprep.subr.mxu0 0.0
    %1813 = vmatpush1.msra.mxu0 0.0
    %1814 = vmatprep.subr.mxu0 0.0
    %1815 = vmatpush1.msra.mxu0 0.0
    %1816 = vmatprep.subr.mxu0 0.0
    %1817 = vmatpush1.msra.mxu0 0.0
    %1818 = vmatprep.subr.mxu0 0.0
    %1819 = vmatpush1.msra.mxu0 0.0
    %1820 = vmatprep.subr.mxu0 0.0
    %1821 = vmatpush1.msra.mxu0 0.0
    %1822 = vmatprep.subr.mxu0 0.0
    %1823 = vmatpush1.msra.mxu0 0.0
    %1824 = vmatprep.subr.mxu0 0.0
    %1825 = vmatpush1.msra.mxu0 0.0
    %1826 = vmatprep.subr.mxu0 0.0
    %1827 = vmatpush1.msra.mxu0 0.0
    %1828 = vmatprep.subr.mxu0 0.0
    %1829 = vmatpush1.msra.mxu0 0.0
    %1830 = vmatprep.subr.mxu0 0.0
    %1831 = vmatpush1.msra.mxu0 0.0
    %1832 = vmatprep.mubr.f32.mxu0 0.0
    %1833 = vmatmul.mubr.f32.gmra.mrb[0].mxu0 %v1766
    %v1834 = vpop.f32.mrb[0].mxu0
    %v1835 = vadd.f32 %v62, %v1834
    %v1836 = vpop.f32.mrb[0].mxu0
    %1837 = vdwg.mxu0
    %v1840 = vunpack.c.l.s4 1966171168
    %v1841 = vunpack.c.0.s8 %v1840
    %v1842 = vlaneseq
    %v1843 = vshrl.u32 %v1842, 7
    %v1844 = vsub.s32 %v1841, %v1843
    %v1845 = vrot.slane %v1835, %v1844
    %v1846 = vcombine.high %v1845, %v1845
    %v1848 = vunpack.c.l.s4 1966171168
    %v1849 = vunpack.c.0.s8 %v1848
    %v1850 = vlaneseq
    %v1851 = vshrl.u32 %v1850, 7
    %v1852 = vsub.s32 %v1849, %v1851
    %v1853 = vrot.slane %v1845, %v1852
    %v1855 = vunpack.c.l.s4 1966171168
    %v1856 = vunpack.c.0.s8 %v1855
    %v1857 = vlaneseq
    %v1858 = vshrl.u32 %v1857, 7
    %v1859 = vsub.s32 %v1856, %v1858
    %v1860 = vrot.slane %v1846, %v1859
    %v1861 = vlaneseq
    %v1862 = vshrl.u32 %v1861, 7
    %v1863 = vsub.s32 0, %v1862
    %v1864 = vrot.slane %v1853, %v1863
    %v1865 = vlaneseq
    %v1866 = vshrl.u32 %v1865, 7
    %v1867 = vsub.s32 0, %v1866
    %v1868 = vrot.slane %v1860, %v1867
    %v1871 = vadd.f32 %v1864, %v38
    %v1872 = vadd.f32 %v1868, %v39
    %v1873 = vtanh.pop %v1871
    %v1874 = vtanh.pop %v1872
    %v1875 = vmul.f32 %v1873, %v179
    %v1876 = vmul.f32 %v1874, %v179
    %v1877 = vsel %vm64, %v1875, 0.0
    %1878 = vadd.xlane.f32.xlu0 %v1877
    %v1879 = vpop.xlane.xlu0 %1878
    %v1880 = vsel %vm64, %v1876, 0.0
    %1881 = vadd.xlane.f32.xlu0 %v1880
    %v1882 = vpop.xlane.xlu0 %1881
    %v1883 = vadd.f32 %v1879, %v196
    %v1884 = vadd.f32 %v1882, %v203
    %1887 = vset.pattern.permute.xlu0 0
    %1888 = vperm.xlu0 %1887, %v1883
    %v1889 = vpop.permute.xlu0 %1888
    %1890 = vset.pattern.permute.xlu0 0
    %1891 = vperm.xlu0 %1890, %v1884
    %v1892 = vpop.permute.xlu0 %1891
    %v1893 = vlaneseq
    %v1894 = vshrl.u32 %v1893, 7
    %v1895 = vsub.s32 %v217, %v1894
    %v1896 = vrot.slane %v1889, %v1895
    %v1897 = vlaneseq
    %v1898 = vshrl.u32 %v1897, 7
    %v1899 = vsub.s32 %v217, %v1898
    %v1900 = vrot.slane %v1892, %v1899
    %v1901 = vsel %vm226, %v1900, %v1896
    %v1903 = vsel %vm229, %v1901, -inf
    %1904 = vmax.xlane.f32.xlu0 %v1903
    %v1905 = vpop.xlane.xlu0 %1904
    %v1907 = vlaneseq
    %v1908 = vshrl.u32 %v1907, 7
    %v1909 = vsub.s32 0, %v1908
    %v1910 = vrot.slane %v1905, %v1909
    %v1911 = vlaneseq
    %v1912 = vshrl.u32 %v1911, 7
    %v1913 = vsub.s32 1, %v1912
    %v1914 = vrot.slane %v1905, %v1913
    %v1917 = vsub.f32 %v1883, %v1910
    %v1918 = vsub.f32 %v1884, %v1914
    %v1919 = vmul.f32 %v1917, 1.442695
    %v1920 = vpow.pop %v1919
    %v1921 = vmul.f32 %v1918, 1.442695
    %v1922 = vpow.pop %v1921
    %1925 = vset.pattern.permute.xlu0 0
    %1926 = vperm.xlu0 %1925, %v1920
    %v1927 = vpop.permute.xlu0 %1926
    %1928 = vset.pattern.permute.xlu0 0
    %1929 = vperm.xlu0 %1928, %v1922
    %v1930 = vpop.permute.xlu0 %1929
    %v1931 = vlaneseq
    %v1932 = vshrl.u32 %v1931, 7
    %v1933 = vsub.s32 %v217, %v1932
    %v1934 = vrot.slane %v1927, %v1933
    %v1935 = vlaneseq
    %v1936 = vshrl.u32 %v1935, 7
    %v1937 = vsub.s32 %v217, %v1936
    %v1938 = vrot.slane %v1930, %v1937
    %v1939 = vsel %vm226, %v1938, %v1934
    %v1941 = vsel %vm229, %v1939, 0.0
    %1942 = vadd.xlane.f32.xlu0 %v1941
    %v1943 = vpop.xlane.xlu0 %1942
    %v1945 = vlaneseq
    %v1946 = vshrl.u32 %v1945, 7
    %v1947 = vsub.s32 0, %v1946
    %v1948 = vrot.slane %v1943, %v1947
    %v1949 = vlaneseq
    %v1950 = vshrl.u32 %v1949, 7
    %v1951 = vsub.s32 1, %v1950
    %v1952 = vrot.slane %v1943, %v1951
    %v1955 = vrcp.pop %v1948
    %v1956 = vmul.f32 %v1920, %v1955
    %v1957 = vrcp.pop %v1952
    %v1958 = vmul.f32 %v1922, %v1957
    %1960 = vset.pattern.permute.xlu0 0
    %1961 = vperm.xlu0 %1960, %v1956
    %v1962 = vpop.permute.xlu0 %1961
    %1965 = vset.pattern.permute.xlu0 0
    %1966 = vperm.xlu0 %1965, %v1958
    %v1967 = vpop.permute.xlu0 %1966
    %v1969 = vmul.f32 %v1962, %v36
    %v1970 = vmul.f32 %v1967, %v37
    %v1971 = vsel %vm298, %v1969, 0.0
    %v1972 = vrot.slane %v1971, 4
    %v1973 = vadd.f32 %v1971, %v1972
    %v1974 = vrot.slane %v1973, 2
    %v1975 = vadd.f32 %v1973, %v1974
    %v1976 = vrot.slane %v1975, 1
    %v1977 = vadd.f32 %v1975, %v1976
    %v1978 = vsel %vm298, %v1970, 0.0
    %v1979 = vrot.slane %v1978, 4
    %v1980 = vadd.f32 %v1978, %v1979
    %v1981 = vrot.slane %v1980, 2
    %v1982 = vadd.f32 %v1980, %v1981
    %v1983 = vrot.slane %v1982, 1
    %v1984 = vadd.f32 %v1982, %v1983
    %s1985 = scalar_lea.vmem %s0, 10
    %v1986 = vld [vmem:[%s1985] sm:$0x3]
    %v1989 = vsel %vm226, %v1984, %v1977
    %v1990 = vsel %vm298, %v1989, 0
    %1992 = vmatprep.subr.mxu0 0.0
    %1993 = vmatpush1.msra.mxu0 %v46
    %1994 = vmatprep.subr.mxu0 0.0
    %1995 = vmatpush1.msra.mxu0 %v47
    %1996 = vmatprep.subr.mxu0 0.0
    %1997 = vmatpush1.msra.mxu0 %v48
    %1998 = vmatprep.subr.mxu0 0.0
    %1999 = vmatpush1.msra.mxu0 %v49
    %2000 = vmatprep.subr.mxu0 0.0
    %2001 = vmatpush1.msra.mxu0 %v50
    %2002 = vmatprep.subr.mxu0 0.0
    %2003 = vmatpush1.msra.mxu0 %v51
    %2004 = vmatprep.subr.mxu0 0.0
    %2005 = vmatpush1.msra.mxu0 %v52
    %2006 = vmatprep.subr.mxu0 0.0
    %2007 = vmatpush1.msra.mxu0 %v53
    %2008 = vmatprep.subr.mxu0 0.0
    %2009 = vmatpush1.msra.mxu0 0.0
    %2010 = vmatprep.subr.mxu0 0.0
    %2011 = vmatpush1.msra.mxu0 0.0
    %2012 = vmatprep.subr.mxu0 0.0
    %2013 = vmatpush1.msra.mxu0 0.0
    %2014 = vmatprep.subr.mxu0 0.0
    %2015 = vmatpush1.msra.mxu0 0.0
    %2016 = vmatprep.subr.mxu0 0.0
    %2017 = vmatpush1.msra.mxu0 0.0
    %2018 = vmatprep.subr.mxu0 0.0
    %2019 = vmatpush1.msra.mxu0 0.0
    %2020 = vmatprep.subr.mxu0 0.0
    %2021 = vmatpush1.msra.mxu0 0.0
    %2022 = vmatprep.subr.mxu0 0.0
    %2023 = vmatpush1.msra.mxu0 0.0
    %2024 = vmatprep.subr.mxu0 0.0
    %2025 = vmatpush1.msra.mxu0 0.0
    %2026 = vmatprep.subr.mxu0 0.0
    %2027 = vmatpush1.msra.mxu0 0.0
    %2028 = vmatprep.subr.mxu0 0.0
    %2029 = vmatpush1.msra.mxu0 0.0
    %2030 = vmatprep.subr.mxu0 0.0
    %2031 = vmatpush1.msra.mxu0 0.0
    %2032 = vmatprep.subr.mxu0 0.0
    %2033 = vmatpush1.msra.mxu0 0.0
    %2034 = vmatprep.subr.mxu0 0.0
    %2035 = vmatpush1.msra.mxu0 0.0
    %2036 = vmatprep.subr.mxu0 0.0
    %2037 = vmatpush1.msra.mxu0 0.0
    %2038 = vmatprep.subr.mxu0 0.0
    %2039 = vmatpush1.msra.mxu0 0.0
    %2040 = vmatprep.subr.mxu0 0.0
    %2041 = vmatpush1.msra.mxu0 0.0
    %2042 = vmatprep.subr.mxu0 0.0
    %2043 = vmatpush1.msra.mxu0 0.0
    %2044 = vmatprep.subr.mxu0 0.0
    %2045 = vmatpush1.msra.mxu0 0.0
    %2046 = vmatprep.subr.mxu0 0.0
    %2047 = vmatpush1.msra.mxu0 0.0
    %2048 = vmatprep.subr.mxu0 0.0
    %2049 = vmatpush1.msra.mxu0 0.0
    %2050 = vmatprep.subr.mxu0 0.0
    %2051 = vmatpush1.msra.mxu0 0.0
    %2052 = vmatprep.subr.mxu0 0.0
    %2053 = vmatpush1.msra.mxu0 0.0
    %2054 = vmatprep.subr.mxu0 0.0
    %2055 = vmatpush1.msra.mxu0 0.0
    %2056 = vmatprep.mubr.f32.mxu0 0.0
    %2057 = vmatmul.mubr.f32.gmra.mrb[0].mxu0 %v1990
    %v2058 = vpop.f32.mrb[0].mxu0
    %v2059 = vadd.f32 0.0, %v2058
    %v2060 = vpop.f32.mrb[0].mxu0
    %2061 = vdwg.mxu0
    %v2062 = vadd.f32 %v1986, %v2059
    %2063 = vrot.lane.b32.xlu0 %v1835, 96
    %v2064 = vpop.permute.xlu0 %2063
    %v2066 = vadd.f32 %v2062, %v2064
    %v2067 = vxor.u32 %v2066, 2147483648
    %v2068 = vmul.f32 %v2067, 1.442695
    %v2069 = vpow.pop %v2068
    %v2070 = vadd.f32 %v2069, 1.0
    %v2071 = vrcp.pop %v2070
    %v2072 = vmul.f32 1.0, %v2071
    %2073 = vrot.lane.b32.xlu0 %v1835, 32
    %v2074 = vpop.permute.xlu0 %2073
    %v2076 = vmul.f32 %v2072, %v2074
    %2078 = vrot.lane.b32.xlu0 %v2076, 64
    %v2079 = vpop.permute.xlu0 %2078
    %v2081 = vadd.f32 %v2062, %v2079
    %v2082 = vtanh.pop %v2081
    %v2083 = vsub.f32 1.0, %v2072
    %2085 = vrot.lane.b32.xlu0 %v2082, 96
    %v2086 = vpop.permute.xlu0 %2085
    %v2088 = vmul.f32 %v2083, %v2086
    %v2089 = vmul.f32 %v2072, %v1756
    %v2090 = vadd.f32 %v2088, %v2089
    %2092 = vrot.lane.b32.xlu0 %v2090, 96
    %v2093 = vpop.permute.xlu0 %2092
    %s2095 = scalar_lea.vmem %s9, 10
    %2096 = vst.msk [vmem:[%s2095] sm:$0x3] %vm425, %v2093
    %s2098 = scalar_lea.vmem %s10, 10
    %2099 = vst.msk [vmem:[%s2098] sm:$0x3] %vm428, %v1989
    %v2100 = vsel %vm64, %v2093, 0
    %2102 = vmatprep.subr.mxu0 0.0
    %2103 = vmatpush1.msra.mxu0 %v40
    %2104 = vmatprep.subr.mxu0 0.0
    %2105 = vmatpush1.msra.mxu0 %v41
    %2106 = vmatprep.subr.mxu0 0.0
    %2107 = vmatpush1.msra.mxu0 %v42
    %2108 = vmatprep.subr.mxu0 0.0
    %2109 = vmatpush1.msra.mxu0 %v43
    %2110 = vmatprep.subr.mxu0 0.0
    %2111 = vmatpush1.msra.mxu0 0.0
    %2112 = vmatprep.subr.mxu0 0.0
    %2113 = vmatpush1.msra.mxu0 0.0
    %2114 = vmatprep.subr.mxu0 0.0
    %2115 = vmatpush1.msra.mxu0 0.0
    %2116 = vmatprep.subr.mxu0 0.0
    %2117 = vmatpush1.msra.mxu0 0.0
    %2118 = vmatprep.subr.mxu0 0.0
    %2119 = vmatpush1.msra.mxu0 0.0
    %2120 = vmatprep.subr.mxu0 0.0
    %2121 = vmatpush1.msra.mxu0 0.0
    %2122 = vmatprep.subr.mxu0 0.0
    %2123 = vmatpush1.msra.mxu0 0.0
    %2124 = vmatprep.subr.mxu0 0.0
    %2125 = vmatpush1.msra.mxu0 0.0
    %2126 = vmatprep.subr.mxu0 0.0
    %2127 = vmatpush1.msra.mxu0 0.0
    %2128 = vmatprep.subr.mxu0 0.0
    %2129 = vmatpush1.msra.mxu0 0.0
    %2130 = vmatprep.subr.mxu0 0.0
    %2131 = vmatpush1.msra.mxu0 0.0
    %2132 = vmatprep.subr.mxu0 0.0
    %2133 = vmatpush1.msra.mxu0 0.0
    %2134 = vmatprep.subr.mxu0 0.0
    %2135 = vmatpush1.msra.mxu0 0.0
    %2136 = vmatprep.subr.mxu0 0.0
    %2137 = vmatpush1.msra.mxu0 0.0
    %2138 = vmatprep.subr.mxu0 0.0
    %2139 = vmatpush1.msra.mxu0 0.0
    %2140 = vmatprep.subr.mxu0 0.0
    %2141 = vmatpush1.msra.mxu0 0.0
    %2142 = vmatprep.subr.mxu0 0.0
    %2143 = vmatpush1.msra.mxu0 0.0
    %2144 = vmatprep.subr.mxu0 0.0
    %2145 = vmatpush1.msra.mxu0 0.0
    %2146 = vmatprep.subr.mxu0 0.0
    %2147 = vmatpush1.msra.mxu0 0.0
    %2148 = vmatprep.subr.mxu0 0.0
    %2149 = vmatpush1.msra.mxu0 0.0
    %2150 = vmatprep.subr.mxu0 0.0
    %2151 = vmatpush1.msra.mxu0 0.0
    %2152 = vmatprep.subr.mxu0 0.0
    %2153 = vmatpush1.msra.mxu0 0.0
    %2154 = vmatprep.subr.mxu0 0.0
    %2155 = vmatpush1.msra.mxu0 0.0
    %2156 = vmatprep.subr.mxu0 0.0
    %2157 = vmatpush1.msra.mxu0 0.0
    %2158 = vmatprep.subr.mxu0 0.0
    %2159 = vmatpush1.msra.mxu0 0.0
    %2160 = vmatprep.subr.mxu0 0.0
    %2161 = vmatpush1.msra.mxu0 0.0
    %2162 = vmatprep.subr.mxu0 0.0
    %2163 = vmatpush1.msra.mxu0 0.0
    %2164 = vmatprep.subr.mxu0 0.0
    %2165 = vmatpush1.msra.mxu0 0.0
    %2166 = vmatprep.mubr.f32.mxu0 0.0
    %2167 = vmatmul.mubr.f32.gmra.mrb[0].mxu0 %v2100
    %v2168 = vpop.f32.mrb[0].mxu0
    %v2169 = vadd.f32 %v62, %v2168
    %v2170 = vpop.f32.mrb[0].mxu0
    %2171 = vdwg.mxu0
    %v2174 = vunpack.c.l.s4 1966171168
    %v2175 = vunpack.c.0.s8 %v2174
    %v2176 = vlaneseq
    %v2177 = vshrl.u32 %v2176, 7
    %v2178 = vsub.s32 %v2175, %v2177
    %v2179 = vrot.slane %v2169, %v2178
    %v2180 = vcombine.high %v2179, %v2179
    %v2182 = vunpack.c.l.s4 1966171168
    %v2183 = vunpack.c.0.s8 %v2182
    %v2184 = vlaneseq
    %v2185 = vshrl.u32 %v2184, 7
    %v2186 = vsub.s32 %v2183, %v2185
    %v2187 = vrot.slane %v2179, %v2186
    %v2189 = vunpack.c.l.s4 1966171168
    %v2190 = vunpack.c.0.s8 %v2189
    %v2191 = vlaneseq
    %v2192 = vshrl.u32 %v2191, 7
    %v2193 = vsub.s32 %v2190, %v2192
    %v2194 = vrot.slane %v2180, %v2193
    %v2195 = vlaneseq
    %v2196 = vshrl.u32 %v2195, 7
    %v2197 = vsub.s32 0, %v2196
    %v2198 = vrot.slane %v2187, %v2197
    %v2199 = vlaneseq
    %v2200 = vshrl.u32 %v2199, 7
    %v2201 = vsub.s32 0, %v2200
    %v2202 = vrot.slane %v2194, %v2201
    %v2205 = vadd.f32 %v2198, %v38
    %v2206 = vadd.f32 %v2202, %v39
    %v2207 = vtanh.pop %v2205
    %v2208 = vtanh.pop %v2206
    %v2209 = vmul.f32 %v2207, %v179
    %v2210 = vmul.f32 %v2208, %v179
    %v2211 = vsel %vm64, %v2209, 0.0
    %2212 = vadd.xlane.f32.xlu0 %v2211
    %v2213 = vpop.xlane.xlu0 %2212
    %v2214 = vsel %vm64, %v2210, 0.0
    %2215 = vadd.xlane.f32.xlu0 %v2214
    %v2216 = vpop.xlane.xlu0 %2215
    %v2217 = vadd.f32 %v2213, %v196
    %v2218 = vadd.f32 %v2216, %v203
    %2221 = vset.pattern.permute.xlu0 0
    %2222 = vperm.xlu0 %2221, %v2217
    %v2223 = vpop.permute.xlu0 %2222
    %2224 = vset.pattern.permute.xlu0 0
    %2225 = vperm.xlu0 %2224, %v2218
    %v2226 = vpop.permute.xlu0 %2225
    %v2227 = vlaneseq
    %v2228 = vshrl.u32 %v2227, 7
    %v2229 = vsub.s32 %v217, %v2228
    %v2230 = vrot.slane %v2223, %v2229
    %v2231 = vlaneseq
    %v2232 = vshrl.u32 %v2231, 7
    %v2233 = vsub.s32 %v217, %v2232
    %v2234 = vrot.slane %v2226, %v2233
    %v2235 = vsel %vm226, %v2234, %v2230
    %v2237 = vsel %vm229, %v2235, -inf
    %2238 = vmax.xlane.f32.xlu0 %v2237
    %v2239 = vpop.xlane.xlu0 %2238
    %v2241 = vlaneseq
    %v2242 = vshrl.u32 %v2241, 7
    %v2243 = vsub.s32 0, %v2242
    %v2244 = vrot.slane %v2239, %v2243
    %v2245 = vlaneseq
    %v2246 = vshrl.u32 %v2245, 7
    %v2247 = vsub.s32 1, %v2246
    %v2248 = vrot.slane %v2239, %v2247
    %v2251 = vsub.f32 %v2217, %v2244
    %v2252 = vsub.f32 %v2218, %v2248
    %v2253 = vmul.f32 %v2251, 1.442695
    %v2254 = vpow.pop %v2253
    %v2255 = vmul.f32 %v2252, 1.442695
    %v2256 = vpow.pop %v2255
    %2259 = vset.pattern.permute.xlu0 0
    %2260 = vperm.xlu0 %2259, %v2254
    %v2261 = vpop.permute.xlu0 %2260
    %2262 = vset.pattern.permute.xlu0 0
    %2263 = vperm.xlu0 %2262, %v2256
    %v2264 = vpop.permute.xlu0 %2263
    %v2265 = vlaneseq
    %v2266 = vshrl.u32 %v2265, 7
    %v2267 = vsub.s32 %v217, %v2266
    %v2268 = vrot.slane %v2261, %v2267
    %v2269 = vlaneseq
    %v2270 = vshrl.u32 %v2269, 7
    %v2271 = vsub.s32 %v217, %v2270
    %v2272 = vrot.slane %v2264, %v2271
    %v2273 = vsel %vm226, %v2272, %v2268
    %v2275 = vsel %vm229, %v2273, 0.0
    %2276 = vadd.xlane.f32.xlu0 %v2275
    %v2277 = vpop.xlane.xlu0 %2276
    %v2279 = vlaneseq
    %v2280 = vshrl.u32 %v2279, 7
    %v2281 = vsub.s32 0, %v2280
    %v2282 = vrot.slane %v2277, %v2281
    %v2283 = vlaneseq
    %v2284 = vshrl.u32 %v2283, 7
    %v2285 = vsub.s32 1, %v2284
    %v2286 = vrot.slane %v2277, %v2285
    %v2289 = vrcp.pop %v2282
    %v2290 = vmul.f32 %v2254, %v2289
    %v2291 = vrcp.pop %v2286
    %v2292 = vmul.f32 %v2256, %v2291
    %2294 = vset.pattern.permute.xlu0 0
    %2295 = vperm.xlu0 %2294, %v2290
    %v2296 = vpop.permute.xlu0 %2295
    %2299 = vset.pattern.permute.xlu0 0
    %2300 = vperm.xlu0 %2299, %v2292
    %v2301 = vpop.permute.xlu0 %2300
    %v2303 = vmul.f32 %v2296, %v36
    %v2304 = vmul.f32 %v2301, %v37
    %v2305 = vsel %vm298, %v2303, 0.0
    %v2306 = vrot.slane %v2305, 4
    %v2307 = vadd.f32 %v2305, %v2306
    %v2308 = vrot.slane %v2307, 2
    %v2309 = vadd.f32 %v2307, %v2308
    %v2310 = vrot.slane %v2309, 1
    %v2311 = vadd.f32 %v2309, %v2310
    %v2312 = vsel %vm298, %v2304, 0.0
    %v2313 = vrot.slane %v2312, 4
    %v2314 = vadd.f32 %v2312, %v2313
    %v2315 = vrot.slane %v2314, 2
    %v2316 = vadd.f32 %v2314, %v2315
    %v2317 = vrot.slane %v2316, 1
    %v2318 = vadd.f32 %v2316, %v2317
    %s2319 = scalar_lea.vmem %s0, 12
    %v2320 = vld [vmem:[%s2319] sm:$0x3]
    %v2323 = vsel %vm226, %v2318, %v2311
    %v2324 = vsel %vm298, %v2323, 0
    %2326 = vmatprep.subr.mxu0 0.0
    %2327 = vmatpush1.msra.mxu0 %v46
    %2328 = vmatprep.subr.mxu0 0.0
    %2329 = vmatpush1.msra.mxu0 %v47
    %2330 = vmatprep.subr.mxu0 0.0
    %2331 = vmatpush1.msra.mxu0 %v48
    %2332 = vmatprep.subr.mxu0 0.0
    %2333 = vmatpush1.msra.mxu0 %v49
    %2334 = vmatprep.subr.mxu0 0.0
    %2335 = vmatpush1.msra.mxu0 %v50
    %2336 = vmatprep.subr.mxu0 0.0
    %2337 = vmatpush1.msra.mxu0 %v51
    %2338 = vmatprep.subr.mxu0 0.0
    %2339 = vmatpush1.msra.mxu0 %v52
    %2340 = vmatprep.subr.mxu0 0.0
    %2341 = vmatpush1.msra.mxu0 %v53
    %2342 = vmatprep.subr.mxu0 0.0
    %2343 = vmatpush1.msra.mxu0 0.0
    %2344 = vmatprep.subr.mxu0 0.0
    %2345 = vmatpush1.msra.mxu0 0.0
    %2346 = vmatprep.subr.mxu0 0.0
    %2347 = vmatpush1.msra.mxu0 0.0
    %2348 = vmatprep.subr.mxu0 0.0
    %2349 = vmatpush1.msra.mxu0 0.0
    %2350 = vmatprep.subr.mxu0 0.0
    %2351 = vmatpush1.msra.mxu0 0.0
    %2352 = vmatprep.subr.mxu0 0.0
    %2353 = vmatpush1.msra.mxu0 0.0
    %2354 = vmatprep.subr.mxu0 0.0
    %2355 = vmatpush1.msra.mxu0 0.0
    %2356 = vmatprep.subr.mxu0 0.0
    %2357 = vmatpush1.msra.mxu0 0.0
    %2358 = vmatprep.subr.mxu0 0.0
    %2359 = vmatpush1.msra.mxu0 0.0
    %2360 = vmatprep.subr.mxu0 0.0
    %2361 = vmatpush1.msra.mxu0 0.0
    %2362 = vmatprep.subr.mxu0 0.0
    %2363 = vmatpush1.msra.mxu0 0.0
    %2364 = vmatprep.subr.mxu0 0.0
    %2365 = vmatpush1.msra.mxu0 0.0
    %2366 = vmatprep.subr.mxu0 0.0
    %2367 = vmatpush1.msra.mxu0 0.0
    %2368 = vmatprep.subr.mxu0 0.0
    %2369 = vmatpush1.msra.mxu0 0.0
    %2370 = vmatprep.subr.mxu0 0.0
    %2371 = vmatpush1.msra.mxu0 0.0
    %2372 = vmatprep.subr.mxu0 0.0
    %2373 = vmatpush1.msra.mxu0 0.0
    %2374 = vmatprep.subr.mxu0 0.0
    %2375 = vmatpush1.msra.mxu0 0.0
    %2376 = vmatprep.subr.mxu0 0.0
    %2377 = vmatpush1.msra.mxu0 0.0
    %2378 = vmatprep.subr.mxu0 0.0
    %2379 = vmatpush1.msra.mxu0 0.0
    %2380 = vmatprep.subr.mxu0 0.0
    %2381 = vmatpush1.msra.mxu0 0.0
    %2382 = vmatprep.subr.mxu0 0.0
    %2383 = vmatpush1.msra.mxu0 0.0
    %2384 = vmatprep.subr.mxu0 0.0
    %2385 = vmatpush1.msra.mxu0 0.0
    %2386 = vmatprep.subr.mxu0 0.0
    %2387 = vmatpush1.msra.mxu0 0.0
    %2388 = vmatprep.subr.mxu0 0.0
    %2389 = vmatpush1.msra.mxu0 0.0
    %2390 = vmatprep.mubr.f32.mxu0 0.0
    %2391 = vmatmul.mubr.f32.gmra.mrb[0].mxu0 %v2324
    %v2392 = vpop.f32.mrb[0].mxu0
    %v2393 = vadd.f32 0.0, %v2392
    %v2394 = vpop.f32.mrb[0].mxu0
    %2395 = vdwg.mxu0
    %v2396 = vadd.f32 %v2320, %v2393
    %2397 = vrot.lane.b32.xlu0 %v2169, 96
    %v2398 = vpop.permute.xlu0 %2397
    %v2400 = vadd.f32 %v2396, %v2398
    %v2401 = vxor.u32 %v2400, 2147483648
    %v2402 = vmul.f32 %v2401, 1.442695
    %v2403 = vpow.pop %v2402
    %v2404 = vadd.f32 %v2403, 1.0
    %v2405 = vrcp.pop %v2404
    %v2406 = vmul.f32 1.0, %v2405
    %2407 = vrot.lane.b32.xlu0 %v2169, 32
    %v2408 = vpop.permute.xlu0 %2407
    %v2410 = vmul.f32 %v2406, %v2408
    %2412 = vrot.lane.b32.xlu0 %v2410, 64
    %v2413 = vpop.permute.xlu0 %2412
    %v2415 = vadd.f32 %v2396, %v2413
    %v2416 = vtanh.pop %v2415
    %v2417 = vsub.f32 1.0, %v2406
    %2419 = vrot.lane.b32.xlu0 %v2416, 96
    %v2420 = vpop.permute.xlu0 %2419
    %v2422 = vmul.f32 %v2417, %v2420
    %v2423 = vmul.f32 %v2406, %v2090
    %v2424 = vadd.f32 %v2422, %v2423
    %2426 = vrot.lane.b32.xlu0 %v2424, 96
    %v2427 = vpop.permute.xlu0 %2426
    %s2429 = scalar_lea.vmem %s9, 12
    %2430 = vst.msk [vmem:[%s2429] sm:$0x3] %vm425, %v2427
    %s2432 = scalar_lea.vmem %s10, 12
    %2433 = vst.msk [vmem:[%s2432] sm:$0x3] %vm428, %v2323
    %v2434 = vsel %vm64, %v2427, 0
    %2436 = vmatprep.subr.mxu0 0.0
    %2437 = vmatpush1.msra.mxu0 %v40
    %2438 = vmatprep.subr.mxu0 0.0
    %2439 = vmatpush1.msra.mxu0 %v41
    %2440 = vmatprep.subr.mxu0 0.0
    %2441 = vmatpush1.msra.mxu0 %v42
    %2442 = vmatprep.subr.mxu0 0.0
    %2443 = vmatpush1.msra.mxu0 %v43
    %2444 = vmatprep.subr.mxu0 0.0
    %2445 = vmatpush1.msra.mxu0 0.0
    %2446 = vmatprep.subr.mxu0 0.0
    %2447 = vmatpush1.msra.mxu0 0.0
    %2448 = vmatprep.subr.mxu0 0.0
    %2449 = vmatpush1.msra.mxu0 0.0
    %2450 = vmatprep.subr.mxu0 0.0
    %2451 = vmatpush1.msra.mxu0 0.0
    %2452 = vmatprep.subr.mxu0 0.0
    %2453 = vmatpush1.msra.mxu0 0.0
    %2454 = vmatprep.subr.mxu0 0.0
    %2455 = vmatpush1.msra.mxu0 0.0
    %2456 = vmatprep.subr.mxu0 0.0
    %2457 = vmatpush1.msra.mxu0 0.0
    %2458 = vmatprep.subr.mxu0 0.0
    %2459 = vmatpush1.msra.mxu0 0.0
    %2460 = vmatprep.subr.mxu0 0.0
    %2461 = vmatpush1.msra.mxu0 0.0
    %2462 = vmatprep.subr.mxu0 0.0
    %2463 = vmatpush1.msra.mxu0 0.0
    %2464 = vmatprep.subr.mxu0 0.0
    %2465 = vmatpush1.msra.mxu0 0.0
    %2466 = vmatprep.subr.mxu0 0.0
    %2467 = vmatpush1.msra.mxu0 0.0
    %2468 = vmatprep.subr.mxu0 0.0
    %2469 = vmatpush1.msra.mxu0 0.0
    %2470 = vmatprep.subr.mxu0 0.0
    %2471 = vmatpush1.msra.mxu0 0.0
    %2472 = vmatprep.subr.mxu0 0.0
    %2473 = vmatpush1.msra.mxu0 0.0
    %2474 = vmatprep.subr.mxu0 0.0
    %2475 = vmatpush1.msra.mxu0 0.0
    %2476 = vmatprep.subr.mxu0 0.0
    %2477 = vmatpush1.msra.mxu0 0.0
    %2478 = vmatprep.subr.mxu0 0.0
    %2479 = vmatpush1.msra.mxu0 0.0
    %2480 = vmatprep.subr.mxu0 0.0
    %2481 = vmatpush1.msra.mxu0 0.0
    %2482 = vmatprep.subr.mxu0 0.0
    %2483 = vmatpush1.msra.mxu0 0.0
    %2484 = vmatprep.subr.mxu0 0.0
    %2485 = vmatpush1.msra.mxu0 0.0
    %2486 = vmatprep.subr.mxu0 0.0
    %2487 = vmatpush1.msra.mxu0 0.0
    %2488 = vmatprep.subr.mxu0 0.0
    %2489 = vmatpush1.msra.mxu0 0.0
    %2490 = vmatprep.subr.mxu0 0.0
    %2491 = vmatpush1.msra.mxu0 0.0
    %2492 = vmatprep.subr.mxu0 0.0
    %2493 = vmatpush1.msra.mxu0 0.0
    %2494 = vmatprep.subr.mxu0 0.0
    %2495 = vmatpush1.msra.mxu0 0.0
    %2496 = vmatprep.subr.mxu0 0.0
    %2497 = vmatpush1.msra.mxu0 0.0
    %2498 = vmatprep.subr.mxu0 0.0
    %2499 = vmatpush1.msra.mxu0 0.0
    %2500 = vmatprep.mubr.f32.mxu0 0.0
    %2501 = vmatmul.mubr.f32.gmra.mrb[0].mxu0 %v2434
    %v2502 = vpop.f32.mrb[0].mxu0
    %v2503 = vadd.f32 %v62, %v2502
    %v2504 = vpop.f32.mrb[0].mxu0
    %2505 = vdwg.mxu0
    %v2508 = vunpack.c.l.s4 1966171168
    %v2509 = vunpack.c.0.s8 %v2508
    %v2510 = vlaneseq
    %v2511 = vshrl.u32 %v2510, 7
    %v2512 = vsub.s32 %v2509, %v2511
    %v2513 = vrot.slane %v2503, %v2512
    %v2514 = vcombine.high %v2513, %v2513
    %v2516 = vunpack.c.l.s4 1966171168
    %v2517 = vunpack.c.0.s8 %v2516
    %v2518 = vlaneseq
    %v2519 = vshrl.u32 %v2518, 7
    %v2520 = vsub.s32 %v2517, %v2519
    %v2521 = vrot.slane %v2513, %v2520
    %v2523 = vunpack.c.l.s4 1966171168
    %v2524 = vunpack.c.0.s8 %v2523
    %v2525 = vlaneseq
    %v2526 = vshrl.u32 %v2525, 7
    %v2527 = vsub.s32 %v2524, %v2526
    %v2528 = vrot.slane %v2514, %v2527
    %v2529 = vlaneseq
    %v2530 = vshrl.u32 %v2529, 7
    %v2531 = vsub.s32 0, %v2530
    %v2532 = vrot.slane %v2521, %v2531
    %v2533 = vlaneseq
    %v2534 = vshrl.u32 %v2533, 7
    %v2535 = vsub.s32 0, %v2534
    %v2536 = vrot.slane %v2528, %v2535
    %v2539 = vadd.f32 %v2532, %v38
    %v2540 = vadd.f32 %v2536, %v39
    %v2541 = vtanh.pop %v2539
    %v2542 = vtanh.pop %v2540
    %v2543 = vmul.f32 %v2541, %v179
    %v2544 = vmul.f32 %v2542, %v179
    %v2545 = vsel %vm64, %v2543, 0.0
    %2546 = vadd.xlane.f32.xlu0 %v2545
    %v2547 = vpop.xlane.xlu0 %2546
    %v2548 = vsel %vm64, %v2544, 0.0
    %2549 = vadd.xlane.f32.xlu0 %v2548
    %v2550 = vpop.xlane.xlu0 %2549
    %v2551 = vadd.f32 %v2547, %v196
    %v2552 = vadd.f32 %v2550, %v203
    %2555 = vset.pattern.permute.xlu0 0
    %2556 = vperm.xlu0 %2555, %v2551
    %v2557 = vpop.permute.xlu0 %2556
    %2558 = vset.pattern.permute.xlu0 0
    %2559 = vperm.xlu0 %2558, %v2552
    %v2560 = vpop.permute.xlu0 %2559
    %v2561 = vlaneseq
    %v2562 = vshrl.u32 %v2561, 7
    %v2563 = vsub.s32 %v217, %v2562
    %v2564 = vrot.slane %v2557, %v2563
    %v2565 = vlaneseq
    %v2566 = vshrl.u32 %v2565, 7
    %v2567 = vsub.s32 %v217, %v2566
    %v2568 = vrot.slane %v2560, %v2567
    %v2569 = vsel %vm226, %v2568, %v2564
    %v2571 = vsel %vm229, %v2569, -inf
    %2572 = vmax.xlane.f32.xlu0 %v2571
    %v2573 = vpop.xlane.xlu0 %2572
    %v2575 = vlaneseq
    %v2576 = vshrl.u32 %v2575, 7
    %v2577 = vsub.s32 0, %v2576
    %v2578 = vrot.slane %v2573, %v2577
    %v2579 = vlaneseq
    %v2580 = vshrl.u32 %v2579, 7
    %v2581 = vsub.s32 1, %v2580
    %v2582 = vrot.slane %v2573, %v2581
    %v2585 = vsub.f32 %v2551, %v2578
    %v2586 = vsub.f32 %v2552, %v2582
    %v2587 = vmul.f32 %v2585, 1.442695
    %v2588 = vpow.pop %v2587
    %v2589 = vmul.f32 %v2586, 1.442695
    %v2590 = vpow.pop %v2589
    %2593 = vset.pattern.permute.xlu0 0
    %2594 = vperm.xlu0 %2593, %v2588
    %v2595 = vpop.permute.xlu0 %2594
    %2596 = vset.pattern.permute.xlu0 0
    %2597 = vperm.xlu0 %2596, %v2590
    %v2598 = vpop.permute.xlu0 %2597
    %v2599 = vlaneseq
    %v2600 = vshrl.u32 %v2599, 7
    %v2601 = vsub.s32 %v217, %v2600
    %v2602 = vrot.slane %v2595, %v2601
    %v2603 = vlaneseq
    %v2604 = vshrl.u32 %v2603, 7
    %v2605 = vsub.s32 %v217, %v2604
    %v2606 = vrot.slane %v2598, %v2605
    %v2607 = vsel %vm226, %v2606, %v2602
    %v2609 = vsel %vm229, %v2607, 0.0
    %2610 = vadd.xlane.f32.xlu0 %v2609
    %v2611 = vpop.xlane.xlu0 %2610
    %v2613 = vlaneseq
    %v2614 = vshrl.u32 %v2613, 7
    %v2615 = vsub.s32 0, %v2614
    %v2616 = vrot.slane %v2611, %v2615
    %v2617 = vlaneseq
    %v2618 = vshrl.u32 %v2617, 7
    %v2619 = vsub.s32 1, %v2618
    %v2620 = vrot.slane %v2611, %v2619
    %v2623 = vrcp.pop %v2616
    %v2624 = vmul.f32 %v2588, %v2623
    %v2625 = vrcp.pop %v2620
    %v2626 = vmul.f32 %v2590, %v2625
    %2628 = vset.pattern.permute.xlu0 0
    %2629 = vperm.xlu0 %2628, %v2624
    %v2630 = vpop.permute.xlu0 %2629
    %2633 = vset.pattern.permute.xlu0 0
    %2634 = vperm.xlu0 %2633, %v2626
    %v2635 = vpop.permute.xlu0 %2634
    %v2637 = vmul.f32 %v2630, %v36
    %v2638 = vmul.f32 %v2635, %v37
    %v2639 = vsel %vm298, %v2637, 0.0
    %v2640 = vrot.slane %v2639, 4
    %v2641 = vadd.f32 %v2639, %v2640
    %v2642 = vrot.slane %v2641, 2
    %v2643 = vadd.f32 %v2641, %v2642
    %v2644 = vrot.slane %v2643, 1
    %v2645 = vadd.f32 %v2643, %v2644
    %v2646 = vsel %vm298, %v2638, 0.0
    %v2647 = vrot.slane %v2646, 4
    %v2648 = vadd.f32 %v2646, %v2647
    %v2649 = vrot.slane %v2648, 2
    %v2650 = vadd.f32 %v2648, %v2649
    %v2651 = vrot.slane %v2650, 1
    %v2652 = vadd.f32 %v2650, %v2651
    %s2653 = scalar_lea.vmem %s0, 14
    %v2654 = vld [vmem:[%s2653] sm:$0x3]
    %v2657 = vsel %vm226, %v2652, %v2645
    %v2658 = vsel %vm298, %v2657, 0
    %2660 = vmatprep.subr.mxu0 0.0
    %2661 = vmatpush1.msra.mxu0 %v46
    %2662 = vmatprep.subr.mxu0 0.0
    %2663 = vmatpush1.msra.mxu0 %v47
    %2664 = vmatprep.subr.mxu0 0.0
    %2665 = vmatpush1.msra.mxu0 %v48
    %2666 = vmatprep.subr.mxu0 0.0
    %2667 = vmatpush1.msra.mxu0 %v49
    %2668 = vmatprep.subr.mxu0 0.0
    %2669 = vmatpush1.msra.mxu0 %v50
    %2670 = vmatprep.subr.mxu0 0.0
    %2671 = vmatpush1.msra.mxu0 %v51
    %2672 = vmatprep.subr.mxu0 0.0
    %2673 = vmatpush1.msra.mxu0 %v52
    %2674 = vmatprep.subr.mxu0 0.0
    %2675 = vmatpush1.msra.mxu0 %v53
    %2676 = vmatprep.subr.mxu0 0.0
    %2677 = vmatpush1.msra.mxu0 0.0
    %2678 = vmatprep.subr.mxu0 0.0
    %2679 = vmatpush1.msra.mxu0 0.0
    %2680 = vmatprep.subr.mxu0 0.0
    %2681 = vmatpush1.msra.mxu0 0.0
    %2682 = vmatprep.subr.mxu0 0.0
    %2683 = vmatpush1.msra.mxu0 0.0
    %2684 = vmatprep.subr.mxu0 0.0
    %2685 = vmatpush1.msra.mxu0 0.0
    %2686 = vmatprep.subr.mxu0 0.0
    %2687 = vmatpush1.msra.mxu0 0.0
    %2688 = vmatprep.subr.mxu0 0.0
    %2689 = vmatpush1.msra.mxu0 0.0
    %2690 = vmatprep.subr.mxu0 0.0
    %2691 = vmatpush1.msra.mxu0 0.0
    %2692 = vmatprep.subr.mxu0 0.0
    %2693 = vmatpush1.msra.mxu0 0.0
    %2694 = vmatprep.subr.mxu0 0.0
    %2695 = vmatpush1.msra.mxu0 0.0
    %2696 = vmatprep.subr.mxu0 0.0
    %2697 = vmatpush1.msra.mxu0 0.0
    %2698 = vmatprep.subr.mxu0 0.0
    %2699 = vmatpush1.msra.mxu0 0.0
    %2700 = vmatprep.subr.mxu0 0.0
    %2701 = vmatpush1.msra.mxu0 0.0
    %2702 = vmatprep.subr.mxu0 0.0
    %2703 = vmatpush1.msra.mxu0 0.0
    %2704 = vmatprep.subr.mxu0 0.0
    %2705 = vmatpush1.msra.mxu0 0.0
    %2706 = vmatprep.subr.mxu0 0.0
    %2707 = vmatpush1.msra.mxu0 0.0
    %2708 = vmatprep.subr.mxu0 0.0
    %2709 = vmatpush1.msra.mxu0 0.0
    %2710 = vmatprep.subr.mxu0 0.0
    %2711 = vmatpush1.msra.mxu0 0.0
    %2712 = vmatprep.subr.mxu0 0.0
    %2713 = vmatpush1.msra.mxu0 0.0
    %2714 = vmatprep.subr.mxu0 0.0
    %2715 = vmatpush1.msra.mxu0 0.0
    %2716 = vmatprep.subr.mxu0 0.0
    %2717 = vmatpush1.msra.mxu0 0.0
    %2718 = vmatprep.subr.mxu0 0.0
    %2719 = vmatpush1.msra.mxu0 0.0
    %2720 = vmatprep.subr.mxu0 0.0
    %2721 = vmatpush1.msra.mxu0 0.0
    %2722 = vmatprep.subr.mxu0 0.0
    %2723 = vmatpush1.msra.mxu0 0.0
    %2724 = vmatprep.mubr.f32.mxu0 0.0
    %2725 = vmatmul.mubr.f32.gmra.mrb[0].mxu0 %v2658
    %v2726 = vpop.f32.mrb[0].mxu0
    %v2727 = vadd.f32 0.0, %v2726
    %v2728 = vpop.f32.mrb[0].mxu0
    %2729 = vdwg.mxu0
    %v2730 = vadd.f32 %v2654, %v2727
    %2731 = vrot.lane.b32.xlu0 %v2503, 96
    %v2732 = vpop.permute.xlu0 %2731
    %v2734 = vadd.f32 %v2730, %v2732
    %v2735 = vxor.u32 %v2734, 2147483648
    %v2736 = vmul.f32 %v2735, 1.442695
    %v2737 = vpow.pop %v2736
    %v2738 = vadd.f32 %v2737, 1.0
    %v2739 = vrcp.pop %v2738
    %v2740 = vmul.f32 1.0, %v2739
    %2741 = vrot.lane.b32.xlu0 %v2503, 32
    %v2742 = vpop.permute.xlu0 %2741
    %v2744 = vmul.f32 %v2740, %v2742
    %2746 = vrot.lane.b32.xlu0 %v2744, 64
    %v2747 = vpop.permute.xlu0 %2746
    %v2749 = vadd.f32 %v2730, %v2747
    %v2750 = vtanh.pop %v2749
    %v2751 = vsub.f32 1.0, %v2740
    %2753 = vrot.lane.b32.xlu0 %v2750, 96
    %v2754 = vpop.permute.xlu0 %2753
    %v2756 = vmul.f32 %v2751, %v2754
    %v2757 = vmul.f32 %v2740, %v2424
    %v2758 = vadd.f32 %v2756, %v2757
    %2760 = vrot.lane.b32.xlu0 %v2758, 96
    %v2761 = vpop.permute.xlu0 %2760
    %s2763 = scalar_lea.vmem %s9, 14
    %2764 = vst.msk [vmem:[%s2763] sm:$0x3] %vm425, %v2761
    %s2766 = scalar_lea.vmem %s10, 14
    %2767 = vst.msk [vmem:[%s2766] sm:$0x3] %vm428, %v2657
    %2768 = vst.msk [vmem:[#allocation2] sm:$0x3] %vm425, %v2761
    // Predicated region
    $region38: #{decoder_forward.1} parent=1 // pred_check
      _
    $region39: #{decoder_forward.1} parent=1 // pred_check_branch
      %2770 = sbr.rel (0) target = $region41
    $region40: #{decoder_forward.1} parent=1 // pred_region
      _
    $region41: #{decoder_forward.1} parent=1 // pred_fallthru
      _
    // Predicated region
    $region42: #{decoder_forward.1} parent=1 // pred_check
      _
    $region43: #{decoder_forward.1} parent=1 // pred_check_branch
      %2772 = sbr.rel (0) target = $region45
    $region44: #{decoder_forward.1} parent=1 // pred_region
      _
    $region45: #{decoder_forward.1} parent=1 // pred_fallthru
      _
    // Predicated region
    $region46: #{decoder_forward.1} parent=1 // pred_check
      _
    $region47: #{decoder_forward.1} parent=1 // pred_check_branch
      %2774 = sbr.rel (0) target = $region49
    $region48: #{decoder_forward.1} parent=1 // pred_region
      %s2776 = ssub.s32 32, 32
      %2777 = vsyncadd [#allocation3], %s2776
      %s2779 = sshll.u32 [#allocation2], 4
      %s2780 = int_to_ptr.vmem [resolvable:$true] %s2779
      %2782 = dma.vmem_to_hbm [thread:$0]  %s2780, 32, %s11, [#allocation3]
    $region49: #{decoder_forward.1} parent=1 // pred_fallthru
      _
    // Predicated region
    $region50: #{decoder_forward.1} parent=1 // pred_check
      _
    $region51: #{decoder_forward.1} parent=1 // pred_check_branch
      %2784 = sbr.rel (0) target = $region53
    $region52: #{decoder_forward.1} parent=1 // pred_region
      _
    $region53: #{decoder_forward.1} parent=1 // pred_fallthru
      _
    // Predicated region
    $region54: #{decoder_forward.1} parent=1 // pred_check
      _
    $region55: #{decoder_forward.1} parent=1 // pred_check_branch
      %2786 = sbr.rel (0) target = $region57
    $region56: #{decoder_forward.1} parent=1 // pred_region
      _
    $region57: #{decoder_forward.1} parent=1 // pred_fallthru
      _
    // Predicated region
    $region58: #{decoder_forward.1} parent=1 // pred_check
      _
    $region59: #{decoder_forward.1} parent=1 // pred_check_branch
      %2788 = sbr.rel (0) target = $region61
    $region60: #{decoder_forward.1} parent=1 // pred_region
      %2789 = dma.done [#allocation3], 32
    $region61: #{decoder_forward.1} parent=1 // pred_fallthru
      _
    %2790 = vsyncpa [#allocation3], 1

</llo_original>
